<compile_context>
chip_gen: v6e
topology: v6e:2x2x1
jax: 0.10.0
libtpu: 0.0.40
codegen_flags: <defaults>
</compile_context>

<pallas_src>
import math
import functools

import jax
import jax.numpy as jnp
from jax.experimental import pallas as pl
from jax.experimental.pallas import tpu as pltpu


# ----------------------------- fused kernel -------------------------------

def decoder_block_kernel(
    x_ref, enc_ref, tgt_bias_ref, src_bias_ref,
    ln1_g_ref, ln1_b_ref, ln3_g_ref, ln3_b_ref,
    sa_wqkv_ref, sa_wo_ref,
    ca_wq_ref, ca_wkv_ref, ca_wo_ref,
    ff_w1_ref, ff_b1_ref, ff_w2_ref, ff_b2_ref,
    o_ref, *, heads, head_dim):
    """Single invocation, no grid.  x/enc/o are (N, D) with N = B*L; the
    (N, N) additive biases are block-diagonal so cross-batch attention is
    masked out."""
    D = heads * head_dim
    scale = 1.0 / math.sqrt(head_dim)

    x = x_ref[...]        # (N, D) f32
    enc = enc_ref[...]    # (N, D) f32

    def layer_norm(v, g, b):
        mean = jnp.mean(v, axis=-1, keepdims=True)
        var = jnp.mean((v - mean) ** 2, axis=-1, keepdims=True)   # biased (torch)
        return (v - mean) * jax.lax.rsqrt(var + 1e-5) * g + b     # eps = 1e-5

    def mha(q_all, k_all, v_all, bias, wo_ref):
        # q_all/k_all/v_all: (N, D); bias: (N, N) additive (-1e9 on masked /
        # cross-batch entries).  Per-head Wo accumulation instead of a
        # lane-axis concatenation.
        out = None
        for h in range(heads):                       # heads=4, fully unrolled
            lo = h * head_dim
            qh = q_all[:, lo:lo + head_dim]
            kh = k_all[:, lo:lo + head_dim]
            vh = v_all[:, lo:lo + head_dim]
            s = jnp.dot(qh, kh.T, preferred_element_type=jnp.float32) * scale + bias
            s = s - jnp.max(s, axis=-1, keepdims=True)
            p = jnp.exp(s)
            p = p / jnp.sum(p, axis=-1, keepdims=True)   # exact normalization
            ctx = jnp.dot(p, vh, preferred_element_type=jnp.float32)       # (N, hd)
            part = jnp.dot(ctx, wo_ref[lo:lo + head_dim, :],               # sublane-
                           preferred_element_type=jnp.float32)             # aligned slice
            out = part if out is None else out + part
        return out                                    # (N, D)

    # --- LN1 + masked self-attention + residual ---------------------------
    norm1 = layer_norm(x, ln1_g_ref[...], ln1_b_ref[...])
    qkv = jnp.dot(norm1, sa_wqkv_ref[...], preferred_element_type=jnp.float32)  # (N, 3D)
    self_attn = mha(qkv[:, 0:D], qkv[:, D:2 * D], qkv[:, 2 * D:3 * D],
                    tgt_bias_ref[...], sa_wo_ref)
    x = x + self_attn                                 # dropout1 = identity (eval)

    # --- cross-attention (query = LN1 output, as in the PyTorch forward) ---
    q2 = jnp.dot(norm1, ca_wq_ref[...], preferred_element_type=jnp.float32)
    kv2 = jnp.dot(enc, ca_wkv_ref[...], preferred_element_type=jnp.float32)     # (N, 2D)
    cross_attn = mha(q2, kv2[:, 0:D], kv2[:, D:2 * D],
                     src_bias_ref[...], ca_wo_ref)
    x = x + cross_attn                                # dropout2 = identity (eval)

    # --- LN3 + feed-forward (exact erf GELU) + residual --------------------
    norm3 = layer_norm(x, ln3_g_ref[...], ln3_b_ref[...])
    h1 = jnp.dot(norm3, ff_w1_ref[...], preferred_element_type=jnp.float32) + ff_b1_ref[...]
    g1 = 0.5 * h1 * (1.0 + jax.lax.erf(h1 * (1.0 / math.sqrt(2.0))))
    ff = jnp.dot(g1, ff_w2_ref[...], preferred_element_type=jnp.float32) + ff_b2_ref[...]
    o_ref[...] = x + ff                               # dropout3 = identity (eval)


# --------------------- one-time parameter / mask prep ----------------------

def prepare_params(p):
    """One-time: fuse Q|K|V and K|V projections into single GEMM weights and
    reshape 1-D vectors to (1, D) rows.  Keeps this XLA work out of the
    per-call jit path."""
    sa, ca = p["self_attn"], p["cross_attn"]
    row = lambda v: v.reshape(1, -1)
    return {
        "ln1_g": row(p["ln1_g"]), "ln1_b": row(p["ln1_b"]),
        "ln3_g": row(p["ln3_g"]), "ln3_b": row(p["ln3_b"]),
        "sa_wqkv": jnp.concatenate([sa["wq"], sa["wk"], sa["wv"]], axis=1),  # (D, 3D)
        "sa_wo": sa["wo"],
        "ca_wq": ca["wq"],
        "ca_wkv": jnp.concatenate([ca["wk"], ca["wv"]], axis=1),             # (D, 2D)
        "ca_wo": ca["wo"],
        "ff_w1": p["ff_w1"], "ff_b1": row(p["ff_b1"]),
        "ff_w2": p["ff_w2"], "ff_b2": row(p["ff_b2"]),
    }


def prepare_biases(src_mask, tgt_mask, batch):
    """One-time: (L, L) {0,1} masks -> block-diagonal (B*L, B*L) additive f32
    biases (-1e9 on masked / cross-batch positions)."""
    def block_diag(mask2d):
        L = mask2d.shape[-1]
        base = jnp.where(mask2d == 0, jnp.float32(-1e9), jnp.float32(0.0))   # (L, L)
        n = batch * L
        blk = jnp.arange(n) // L
        same = blk[:, None] == blk[None, :]
        return jnp.where(same, jnp.tile(base, (batch, batch)), jnp.float32(-1e9))
    return block_diag(src_mask), block_diag(tgt_mask)


# ------------------------------- forward -----------------------------------

@functools.partial(jax.jit, static_argnames=("heads",))
def decoder_block_fwd(x, encoder_output, src_bias, tgt_bias, prep, heads):
    B, L, D = x.shape
    head_dim = D // heads
    N = B * L

    x2 = x.reshape(N, D)                    # free row-major view
    enc2 = encoder_output.reshape(N, D)

    vmem = pl.BlockSpec(memory_space=pltpu.MemorySpace.VMEM)  # whole array in VMEM

    out = pl.pallas_call(
        functools.partial(decoder_block_kernel, heads=heads, head_dim=head_dim),
        in_specs=[vmem] * 17,
        out_specs=vmem,
        out_shape=jax.ShapeDtypeStruct((N, D), jnp.float32),
    )(x2, enc2, tgt_bias, src_bias,
      prep["ln1_g"], prep["ln1_b"], prep["ln3_g"], prep["ln3_b"],
      prep["sa_wqkv"], prep["sa_wo"],
      prep["ca_wq"], prep["ca_wkv"], prep["ca_wo"],
      prep["ff_w1"], prep["ff_b1"], prep["ff_w2"], prep["ff_b2"])

    return out.reshape(B, L, D)


# --------------------------------- main ------------------------------------

if __name__ == "__main__":
    B, L, D, H, DFF = 2, 8, 32, 4, 64   # batch, seq, d_model, heads, d_ff

    key = jax.random.PRNGKey(0)
    ks = jax.random.split(key, 12)

    def w(k, shape, scale=0.02):
        return (scale * jax.random.normal(k, shape)).astype(jnp.float32)

    # Weights stored as (D_in, D_out), i.e. W_jax = W_torch.T; attention
    # projections have no bias (bias=False in the reference module).
    params = {
        "ln1_g": jnp.ones((D,), jnp.float32), "ln1_b": jnp.zeros((D,), jnp.float32),
        "ln3_g": jnp.ones((D,), jnp.float32), "ln3_b": jnp.zeros((D,), jnp.float32),
        # layer_norm2 / layer_norm4 exist in the PyTorch module but never affect
        # the forward output, so they are omitted here.
        "self_attn": {"wq": w(ks[0], (D, D)), "wk": w(ks[1], (D, D)),
                      "wv": w(ks[2], (D, D)), "wo": w(ks[3], (D, D))},
        "cross_attn": {"wq": w(ks[4], (D, D)), "wk": w(ks[5], (D, D)),
                       "wv": w(ks[6], (D, D)), "wo": w(ks[7], (D, D))},
        "ff_w1": w(ks[8], (D, DFF)), "ff_b1": jnp.zeros((DFF,), jnp.float32),
        "ff_w2": w(ks[9], (DFF, D)), "ff_b2": jnp.zeros((D,), jnp.float32),
    }

    x = jax.random.normal(ks[10], (B, L, D), jnp.float32)
    encoder_output = jax.random.normal(ks[11], (B, L, D), jnp.float32)
    tgt_mask = jnp.tril(jnp.ones((L, L), jnp.int32))   # causal mask, self-attention
    src_mask = jnp.ones((L, L), jnp.int32)             # full visibility, cross-attention

    # One-time setup work (hoisted out of the per-call path).
    prep = prepare_params(params)
    src_bias, tgt_bias = prepare_biases(src_mask, tgt_mask, B)

    out = decoder_block_fwd(x, encoder_output, src_bias, tgt_bias, prep, heads=H)
    jax.block_until_ready(out)
    assert out.shape == (B, L, D)
    assert bool(jnp.all(jnp.isfinite(out)))
    print("KERNEL_OK")
</pallas_src>

<mosaic_0001>
module attributes {stable_mosaic.version = 11 : i64} {
  func.func @decoder_block_kernel(%arg0: memref<16x32xf32, #tpu.memory_space<vmem>>, %arg1: memref<16x32xf32, #tpu.memory_space<vmem>>, %arg2: memref<16x16xf32, #tpu.memory_space<vmem>>, %arg3: memref<16x16xf32, #tpu.memory_space<vmem>>, %arg4: memref<1x32xf32, #tpu.memory_space<vmem>>, %arg5: memref<1x32xf32, #tpu.memory_space<vmem>>, %arg6: memref<1x32xf32, #tpu.memory_space<vmem>>, %arg7: memref<1x32xf32, #tpu.memory_space<vmem>>, %arg8: memref<32x96xf32, #tpu.memory_space<vmem>>, %arg9: memref<32x32xf32, #tpu.memory_space<vmem>>, %arg10: memref<32x32xf32, #tpu.memory_space<vmem>>, %arg11: memref<32x64xf32, #tpu.memory_space<vmem>>, %arg12: memref<32x32xf32, #tpu.memory_space<vmem>>, %arg13: memref<32x64xf32, #tpu.memory_space<vmem>>, %arg14: memref<1x64xf32, #tpu.memory_space<vmem>>, %arg15: memref<64x32xf32, #tpu.memory_space<vmem>>, %arg16: memref<1x32xf32, #tpu.memory_space<vmem>>, %arg17: memref<16x32xf32, #tpu.memory_space<vmem>>) attributes {dimension_semantics = [], scalar_prefetch = 0 : i64, scratch_operands = 0 : i64, tpu.core_type = #tpu.core_type<tc>} {
    %c0 = arith.constant 0 : index
    %c0_0 = arith.constant 0 : index
    %0 = vector.load %arg0[%c0, %c0_0] : memref<16x32xf32, #tpu.memory_space<vmem>>, vector<16x32xf32>
    %c0_1 = arith.constant 0 : index
    %c0_2 = arith.constant 0 : index
    %1 = vector.load %arg1[%c0_1, %c0_2] : memref<16x32xf32, #tpu.memory_space<vmem>>, vector<16x32xf32>
    %c0_3 = arith.constant 0 : index
    %c0_4 = arith.constant 0 : index
    %2 = vector.load %arg4[%c0_3, %c0_4] : memref<1x32xf32, #tpu.memory_space<vmem>>, vector<1x32xf32>
    %c0_5 = arith.constant 0 : index
    %c0_6 = arith.constant 0 : index
    %3 = vector.load %arg5[%c0_5, %c0_6] : memref<1x32xf32, #tpu.memory_space<vmem>>, vector<1x32xf32>
    %cst = arith.constant dense<0.000000e+00> : vector<16xf32>
    %4 = vector.multi_reduction <add>, %0, %cst [1] : vector<16x32xf32> to vector<16xf32>
    %5 = vector.shape_cast %4 : vector<16xf32> to vector<16x1xf32>
    %cst_7 = arith.constant 3.200000e+01 : f32
    %6 = vector.broadcast %cst_7 : f32 to vector<16x1xf32>
    %7 = arith.divf %5, %6 : vector<16x1xf32>
    %8 = vector.broadcast %7 : vector<16x1xf32> to vector<16x32xf32>
    %9 = arith.subf %0, %8 : vector<16x32xf32>
    %10 = arith.mulf %9, %9 : vector<16x32xf32>
    %cst_8 = arith.constant dense<0.000000e+00> : vector<16xf32>
    %11 = vector.multi_reduction <add>, %10, %cst_8 [1] : vector<16x32xf32> to vector<16xf32>
    %12 = vector.shape_cast %11 : vector<16xf32> to vector<16x1xf32>
    %cst_9 = arith.constant 3.200000e+01 : f32
    %13 = vector.broadcast %cst_9 : f32 to vector<16x1xf32>
    %14 = arith.divf %12, %13 : vector<16x1xf32>
    %15 = vector.broadcast %7 : vector<16x1xf32> to vector<16x32xf32>
    %16 = arith.subf %0, %15 : vector<16x32xf32>
    %cst_10 = arith.constant 9.99999974E-6 : f32
    %17 = vector.broadcast %cst_10 : f32 to vector<16x1xf32>
    %18 = arith.addf %14, %17 : vector<16x1xf32>
    %19 = math.rsqrt %18 : vector<16x1xf32>
    %20 = vector.broadcast %19 : vector<16x1xf32> to vector<16x32xf32>
    %21 = arith.mulf %16, %20 : vector<16x32xf32>
    %22 = vector.broadcast %2 : vector<1x32xf32> to vector<16x32xf32>
    %23 = arith.mulf %21, %22 : vector<16x32xf32>
    %24 = vector.broadcast %3 : vector<1x32xf32> to vector<16x32xf32>
    %25 = arith.addf %23, %24 : vector<16x32xf32>
    %c0_11 = arith.constant 0 : index
    %c0_12 = arith.constant 0 : index
    %26 = vector.load %arg8[%c0_11, %c0_12] : memref<32x96xf32, #tpu.memory_space<vmem>>, vector<32x96xf32>
    %cst_13 = arith.constant dense<0.000000e+00> : vector<16x96xf32>
    %27 = tpu.matmul %25, %26, %cst_13 {dimension_numbers = #tpu.dot_dimension_numbers<[1], [0], [0], [1], [0, 0, 1, 1], [], []>} : vector<16x32xf32>, vector<32x96xf32>, vector<16x96xf32> -> vector<16x96xf32>
    %28 = vector.extract_strided_slice %27 {offsets = [0, 0], sizes = [16, 32], strides = [1, 1]} : vector<16x96xf32> to vector<16x32xf32>
    %29 = vector.extract_strided_slice %27 {offsets = [0, 32], sizes = [16, 32], strides = [1, 1]} : vector<16x96xf32> to vector<16x32xf32>
    %30 = vector.extract_strided_slice %27 {offsets = [0, 64], sizes = [16, 32], strides = [1, 1]} : vector<16x96xf32> to vector<16x32xf32>
    %c0_14 = arith.constant 0 : index
    %c0_15 = arith.constant 0 : index
    %31 = vector.load %arg2[%c0_14, %c0_15] : memref<16x16xf32, #tpu.memory_space<vmem>>, vector<16x16xf32>
    %32 = vector.extract_strided_slice %28 {offsets = [0, 0], sizes = [16, 8], strides = [1, 1]} : vector<16x32xf32> to vector<16x8xf32>
    %33 = vector.extract_strided_slice %29 {offsets = [0, 0], sizes = [16, 8], strides = [1, 1]} : vector<16x32xf32> to vector<16x8xf32>
    %34 = vector.extract_strided_slice %30 {offsets = [0, 0], sizes = [16, 8], strides = [1, 1]} : vector<16x32xf32> to vector<16x8xf32>
    %35 = tpu.transpose %33, [1, 0] : vector<16x8xf32> -> vector<8x16xf32>
    %cst_16 = arith.constant dense<0.000000e+00> : vector<16x16xf32>
    %36 = tpu.matmul %32, %35, %cst_16 {dimension_numbers = #tpu.dot_dimension_numbers<[1], [0], [0], [1], [0, 0, 1, 1], [], []>} : vector<16x8xf32>, vector<8x16xf32>, vector<16x16xf32> -> vector<16x16xf32>
    %cst_17 = arith.constant 0.353553385 : f32
    %37 = vector.broadcast %cst_17 : f32 to vector<16x16xf32>
    %38 = arith.mulf %36, %37 : vector<16x16xf32>
    %39 = arith.addf %38, %31 : vector<16x16xf32>
    %cst_18 = arith.constant dense<0xFF800000> : vector<16xf32>
    %40 = vector.multi_reduction <maximumf>, %39, %cst_18 [1] : vector<16x16xf32> to vector<16xf32>
    %41 = vector.shape_cast %40 : vector<16xf32> to vector<16x1xf32>
    %42 = vector.broadcast %41 : vector<16x1xf32> to vector<16x16xf32>
    %43 = arith.subf %39, %42 : vector<16x16xf32>
    %44 = math.exp %43 : vector<16x16xf32>
    %cst_19 = arith.constant dense<0.000000e+00> : vector<16xf32>
    %45 = vector.multi_reduction <add>, %44, %cst_19 [1] : vector<16x16xf32> to vector<16xf32>
    %46 = vector.shape_cast %45 : vector<16xf32> to vector<16x1xf32>
    %47 = vector.broadcast %46 : vector<16x1xf32> to vector<16x16xf32>
    %48 = arith.divf %44, %47 : vector<16x16xf32>
    %cst_20 = arith.constant dense<0.000000e+00> : vector<16x8xf32>
    %49 = tpu.matmul %48, %34, %cst_20 {dimension_numbers = #tpu.dot_dimension_numbers<[1], [0], [0], [1], [0, 0, 1, 1], [], []>} : vector<16x16xf32>, vector<16x8xf32>, vector<16x8xf32> -> vector<16x8xf32>
    %c0_21 = arith.constant 0 : index
    %c0_22 = arith.constant 0 : index
    %50 = vector.load %arg9[%c0_21, %c0_22] : memref<32x32xf32, #tpu.memory_space<vmem>>, vector<8x32xf32>
    %cst_23 = arith.constant dense<0.000000e+00> : vector<16x32xf32>
    %51 = tpu.matmul %49, %50, %cst_23 {dimension_numbers = #tpu.dot_dimension_numbers<[1], [0], [0], [1], [0, 0, 1, 1], [], []>} : vector<16x8xf32>, vector<8x32xf32>, vector<16x32xf32> -> vector<16x32xf32>
    %52 = vector.extract_strided_slice %28 {offsets = [0, 8], sizes = [16, 8], strides = [1, 1]} : vector<16x32xf32> to vector<16x8xf32>
    %53 = vector.extract_strided_slice %29 {offsets = [0, 8], sizes = [16, 8], strides = [1, 1]} : vector<16x32xf32> to vector<16x8xf32>
    %54 = vector.extract_strided_slice %30 {offsets = [0, 8], sizes = [16, 8], strides = [1, 1]} : vector<16x32xf32> to vector<16x8xf32>
    %55 = tpu.transpose %53, [1, 0] : vector<16x8xf32> -> vector<8x16xf32>
    %cst_24 = arith.constant dense<0.000000e+00> : vector<16x16xf32>
    %56 = tpu.matmul %52, %55, %cst_24 {dimension_numbers = #tpu.dot_dimension_numbers<[1], [0], [0], [1], [0, 0, 1, 1], [], []>} : vector<16x8xf32>, vector<8x16xf32>, vector<16x16xf32> -> vector<16x16xf32>
    %cst_25 = arith.constant 0.353553385 : f32
    %57 = vector.broadcast %cst_25 : f32 to vector<16x16xf32>
    %58 = arith.mulf %56, %57 : vector<16x16xf32>
    %59 = arith.addf %58, %31 : vector<16x16xf32>
    %cst_26 = arith.constant dense<0xFF800000> : vector<16xf32>
    %60 = vector.multi_reduction <maximumf>, %59, %cst_26 [1] : vector<16x16xf32> to vector<16xf32>
    %61 = vector.shape_cast %60 : vector<16xf32> to vector<16x1xf32>
    %62 = vector.broadcast %61 : vector<16x1xf32> to vector<16x16xf32>
    %63 = arith.subf %59, %62 : vector<16x16xf32>
    %64 = math.exp %63 : vector<16x16xf32>
    %cst_27 = arith.constant dense<0.000000e+00> : vector<16xf32>
    %65 = vector.multi_reduction <add>, %64, %cst_27 [1] : vector<16x16xf32> to vector<16xf32>
    %66 = vector.shape_cast %65 : vector<16xf32> to vector<16x1xf32>
    %67 = vector.broadcast %66 : vector<16x1xf32> to vector<16x16xf32>
    %68 = arith.divf %64, %67 : vector<16x16xf32>
    %cst_28 = arith.constant dense<0.000000e+00> : vector<16x8xf32>
    %69 = tpu.matmul %68, %54, %cst_28 {dimension_numbers = #tpu.dot_dimension_numbers<[1], [0], [0], [1], [0, 0, 1, 1], [], []>} : vector<16x16xf32>, vector<16x8xf32>, vector<16x8xf32> -> vector<16x8xf32>
    %c8 = arith.constant 8 : index
    %c0_29 = arith.constant 0 : index
    %70 = vector.load %arg9[%c8, %c0_29] : memref<32x32xf32, #tpu.memory_space<vmem>>, vector<8x32xf32>
    %cst_30 = arith.constant dense<0.000000e+00> : vector<16x32xf32>
    %71 = tpu.matmul %69, %70, %cst_30 {dimension_numbers = #tpu.dot_dimension_numbers<[1], [0], [0], [1], [0, 0, 1, 1], [], []>} : vector<16x8xf32>, vector<8x32xf32>, vector<16x32xf32> -> vector<16x32xf32>
    %72 = arith.addf %51, %71 : vector<16x32xf32>
    %73 = vector.extract_strided_slice %28 {offsets = [0, 16], sizes = [16, 8], strides = [1, 1]} : vector<16x32xf32> to vector<16x8xf32>
    %74 = vector.extract_strided_slice %29 {offsets = [0, 16], sizes = [16, 8], strides = [1, 1]} : vector<16x32xf32> to vector<16x8xf32>
    %75 = vector.extract_strided_slice %30 {offsets = [0, 16], sizes = [16, 8], strides = [1, 1]} : vector<16x32xf32> to vector<16x8xf32>
    %76 = tpu.transpose %74, [1, 0] : vector<16x8xf32> -> vector<8x16xf32>
    %cst_31 = arith.constant dense<0.000000e+00> : vector<16x16xf32>
    %77 = tpu.matmul %73, %76, %cst_31 {dimension_numbers = #tpu.dot_dimension_numbers<[1], [0], [0], [1], [0, 0, 1, 1], [], []>} : vector<16x8xf32>, vector<8x16xf32>, vector<16x16xf32> -> vector<16x16xf32>
    %cst_32 = arith.constant 0.353553385 : f32
    %78 = vector.broadcast %cst_32 : f32 to vector<16x16xf32>
    %79 = arith.mulf %77, %78 : vector<16x16xf32>
    %80 = arith.addf %79, %31 : vector<16x16xf32>
    %cst_33 = arith.constant dense<0xFF800000> : vector<16xf32>
    %81 = vector.multi_reduction <maximumf>, %80, %cst_33 [1] : vector<16x16xf32> to vector<16xf32>
    %82 = vector.shape_cast %81 : vector<16xf32> to vector<16x1xf32>
    %83 = vector.broadcast %82 : vector<16x1xf32> to vector<16x16xf32>
    %84 = arith.subf %80, %83 : vector<16x16xf32>
    %85 = math.exp %84 : vector<16x16xf32>
    %cst_34 = arith.constant dense<0.000000e+00> : vector<16xf32>
    %86 = vector.multi_reduction <add>, %85, %cst_34 [1] : vector<16x16xf32> to vector<16xf32>
    %87 = vector.shape_cast %86 : vector<16xf32> to vector<16x1xf32>
    %88 = vector.broadcast %87 : vector<16x1xf32> to vector<16x16xf32>
    %89 = arith.divf %85, %88 : vector<16x16xf32>
    %cst_35 = arith.constant dense<0.000000e+00> : vector<16x8xf32>
    %90 = tpu.matmul %89, %75, %cst_35 {dimension_numbers = #tpu.dot_dimension_numbers<[1], [0], [0], [1], [0, 0, 1, 1], [], []>} : vector<16x16xf32>, vector<16x8xf32>, vector<16x8xf32> -> vector<16x8xf32>
    %c16 = arith.constant 16 : index
    %c0_36 = arith.constant 0 : index
    %91 = vector.load %arg9[%c16, %c0_36] : memref<32x32xf32, #tpu.memory_space<vmem>>, vector<8x32xf32>
    %cst_37 = arith.constant dense<0.000000e+00> : vector<16x32xf32>
    %92 = tpu.matmul %90, %91, %cst_37 {dimension_numbers = #tpu.dot_dimension_numbers<[1], [0], [0], [1], [0, 0, 1, 1], [], []>} : vector<16x8xf32>, vector<8x32xf32>, vector<16x32xf32> -> vector<16x32xf32>
    %93 = arith.addf %72, %92 : vector<16x32xf32>
    %94 = vector.extract_strided_slice %28 {offsets = [0, 24], sizes = [16, 8], strides = [1, 1]} : vector<16x32xf32> to vector<16x8xf32>
    %95 = vector.extract_strided_slice %29 {offsets = [0, 24], sizes = [16, 8], strides = [1, 1]} : vector<16x32xf32> to vector<16x8xf32>
    %96 = vector.extract_strided_slice %30 {offsets = [0, 24], sizes = [16, 8], strides = [1, 1]} : vector<16x32xf32> to vector<16x8xf32>
    %97 = tpu.transpose %95, [1, 0] : vector<16x8xf32> -> vector<8x16xf32>
    %cst_38 = arith.constant dense<0.000000e+00> : vector<16x16xf32>
    %98 = tpu.matmul %94, %97, %cst_38 {dimension_numbers = #tpu.dot_dimension_numbers<[1], [0], [0], [1], [0, 0, 1, 1], [], []>} : vector<16x8xf32>, vector<8x16xf32>, vector<16x16xf32> -> vector<16x16xf32>
    %cst_39 = arith.constant 0.353553385 : f32
    %99 = vector.broadcast %cst_39 : f32 to vector<16x16xf32>
    %100 = arith.mulf %98, %99 : vector<16x16xf32>
    %101 = arith.addf %100, %31 : vector<16x16xf32>
    %cst_40 = arith.constant dense<0xFF800000> : vector<16xf32>
    %102 = vector.multi_reduction <maximumf>, %101, %cst_40 [1] : vector<16x16xf32> to vector<16xf32>
    %103 = vector.shape_cast %102 : vector<16xf32> to vector<16x1xf32>
    %104 = vector.broadcast %103 : vector<16x1xf32> to vector<16x16xf32>
    %105 = arith.subf %101, %104 : vector<16x16xf32>
    %106 = math.exp %105 : vector<16x16xf32>
    %cst_41 = arith.constant dense<0.000000e+00> : vector<16xf32>
    %107 = vector.multi_reduction <add>, %106, %cst_41 [1] : vector<16x16xf32> to vector<16xf32>
    %108 = vector.shape_cast %107 : vector<16xf32> to vector<16x1xf32>
    %109 = vector.broadcast %108 : vector<16x1xf32> to vector<16x16xf32>
    %110 = arith.divf %106, %109 : vector<16x16xf32>
    %cst_42 = arith.constant dense<0.000000e+00> : vector<16x8xf32>
    %111 = tpu.matmul %110, %96, %cst_42 {dimension_numbers = #tpu.dot_dimension_numbers<[1], [0], [0], [1], [0, 0, 1, 1], [], []>} : vector<16x16xf32>, vector<16x8xf32>, vector<16x8xf32> -> vector<16x8xf32>
    %c24 = arith.constant 24 : index
    %c0_43 = arith.constant 0 : index
    %112 = vector.load %arg9[%c24, %c0_43] : memref<32x32xf32, #tpu.memory_space<vmem>>, vector<8x32xf32>
    %cst_44 = arith.constant dense<0.000000e+00> : vector<16x32xf32>
    %113 = tpu.matmul %111, %112, %cst_44 {dimension_numbers = #tpu.dot_dimension_numbers<[1], [0], [0], [1], [0, 0, 1, 1], [], []>} : vector<16x8xf32>, vector<8x32xf32>, vector<16x32xf32> -> vector<16x32xf32>
    %114 = arith.addf %93, %113 : vector<16x32xf32>
    %115 = arith.addf %0, %114 : vector<16x32xf32>
    %c0_45 = arith.constant 0 : index
    %c0_46 = arith.constant 0 : index
    %116 = vector.load %arg10[%c0_45, %c0_46] : memref<32x32xf32, #tpu.memory_space<vmem>>, vector<32x32xf32>
    %cst_47 = arith.constant dense<0.000000e+00> : vector<16x32xf32>
    %117 = tpu.matmul %25, %116, %cst_47 {dimension_numbers = #tpu.dot_dimension_numbers<[1], [0], [0], [1], [0, 0, 1, 1], [], []>} : vector<16x32xf32>, vector<32x32xf32>, vector<16x32xf32> -> vector<16x32xf32>
    %c0_48 = arith.constant 0 : index
    %c0_49 = arith.constant 0 : index
    %118 = vector.load %arg11[%c0_48, %c0_49] : memref<32x64xf32, #tpu.memory_space<vmem>>, vector<32x64xf32>
    %cst_50 = arith.constant dense<0.000000e+00> : vector<16x64xf32>
    %119 = tpu.matmul %1, %118, %cst_50 {dimension_numbers = #tpu.dot_dimension_numbers<[1], [0], [0], [1], [0, 0, 1, 1], [], []>} : vector<16x32xf32>, vector<32x64xf32>, vector<16x64xf32> -> vector<16x64xf32>
    %120 = vector.extract_strided_slice %119 {offsets = [0, 0], sizes = [16, 32], strides = [1, 1]} : vector<16x64xf32> to vector<16x32xf32>
    %121 = vector.extract_strided_slice %119 {offsets = [0, 32], sizes = [16, 32], strides = [1, 1]} : vector<16x64xf32> to vector<16x32xf32>
    %c0_51 = arith.constant 0 : index
    %c0_52 = arith.constant 0 : index
    %122 = vector.load %arg3[%c0_51, %c0_52] : memref<16x16xf32, #tpu.memory_space<vmem>>, vector<16x16xf32>
    %123 = vector.extract_strided_slice %117 {offsets = [0, 0], sizes = [16, 8], strides = [1, 1]} : vector<16x32xf32> to vector<16x8xf32>
    %124 = vector.extract_strided_slice %120 {offsets = [0, 0], sizes = [16, 8], strides = [1, 1]} : vector<16x32xf32> to vector<16x8xf32>
    %125 = vector.extract_strided_slice %121 {offsets = [0, 0], sizes = [16, 8], strides = [1, 1]} : vector<16x32xf32> to vector<16x8xf32>
    %126 = tpu.transpose %124, [1, 0] : vector<16x8xf32> -> vector<8x16xf32>
    %cst_53 = arith.constant dense<0.000000e+00> : vector<16x16xf32>
    %127 = tpu.matmul %123, %126, %cst_53 {dimension_numbers = #tpu.dot_dimension_numbers<[1], [0], [0], [1], [0, 0, 1, 1], [], []>} : vector<16x8xf32>, vector<8x16xf32>, vector<16x16xf32> -> vector<16x16xf32>
    %cst_54 = arith.constant 0.353553385 : f32
    %128 = vector.broadcast %cst_54 : f32 to vector<16x16xf32>
    %129 = arith.mulf %127, %128 : vector<16x16xf32>
    %130 = arith.addf %129, %122 : vector<16x16xf32>
    %cst_55 = arith.constant dense<0xFF800000> : vector<16xf32>
    %131 = vector.multi_reduction <maximumf>, %130, %cst_55 [1] : vector<16x16xf32> to vector<16xf32>
    %132 = vector.shape_cast %131 : vector<16xf32> to vector<16x1xf32>
    %133 = vector.broadcast %132 : vector<16x1xf32> to vector<16x16xf32>
    %134 = arith.subf %130, %133 : vector<16x16xf32>
    %135 = math.exp %134 : vector<16x16xf32>
    %cst_56 = arith.constant dense<0.000000e+00> : vector<16xf32>
    %136 = vector.multi_reduction <add>, %135, %cst_56 [1] : vector<16x16xf32> to vector<16xf32>
    %137 = vector.shape_cast %136 : vector<16xf32> to vector<16x1xf32>
    %138 = vector.broadcast %137 : vector<16x1xf32> to vector<16x16xf32>
    %139 = arith.divf %135, %138 : vector<16x16xf32>
    %cst_57 = arith.constant dense<0.000000e+00> : vector<16x8xf32>
    %140 = tpu.matmul %139, %125, %cst_57 {dimension_numbers = #tpu.dot_dimension_numbers<[1], [0], [0], [1], [0, 0, 1, 1], [], []>} : vector<16x16xf32>, vector<16x8xf32>, vector<16x8xf32> -> vector<16x8xf32>
    %c0_58 = arith.constant 0 : index
    %c0_59 = arith.constant 0 : index
    %141 = vector.load %arg12[%c0_58, %c0_59] : memref<32x32xf32, #tpu.memory_space<vmem>>, vector<8x32xf32>
    %cst_60 = arith.constant dense<0.000000e+00> : vector<16x32xf32>
    %142 = tpu.matmul %140, %141, %cst_60 {dimension_numbers = #tpu.dot_dimension_numbers<[1], [0], [0], [1], [0, 0, 1, 1], [], []>} : vector<16x8xf32>, vector<8x32xf32>, vector<16x32xf32> -> vector<16x32xf32>
    %143 = vector.extract_strided_slice %117 {offsets = [0, 8], sizes = [16, 8], strides = [1, 1]} : vector<16x32xf32> to vector<16x8xf32>
    %144 = vector.extract_strided_slice %120 {offsets = [0, 8], sizes = [16, 8], strides = [1, 1]} : vector<16x32xf32> to vector<16x8xf32>
    %145 = vector.extract_strided_slice %121 {offsets = [0, 8], sizes = [16, 8], strides = [1, 1]} : vector<16x32xf32> to vector<16x8xf32>
    %146 = tpu.transpose %144, [1, 0] : vector<16x8xf32> -> vector<8x16xf32>
    %cst_61 = arith.constant dense<0.000000e+00> : vector<16x16xf32>
    %147 = tpu.matmul %143, %146, %cst_61 {dimension_numbers = #tpu.dot_dimension_numbers<[1], [0], [0], [1], [0, 0, 1, 1], [], []>} : vector<16x8xf32>, vector<8x16xf32>, vector<16x16xf32> -> vector<16x16xf32>
    %cst_62 = arith.constant 0.353553385 : f32
    %148 = vector.broadcast %cst_62 : f32 to vector<16x16xf32>
    %149 = arith.mulf %147, %148 : vector<16x16xf32>
    %150 = arith.addf %149, %122 : vector<16x16xf32>
    %cst_63 = arith.constant dense<0xFF800000> : vector<16xf32>
    %151 = vector.multi_reduction <maximumf>, %150, %cst_63 [1] : vector<16x16xf32> to vector<16xf32>
    %152 = vector.shape_cast %151 : vector<16xf32> to vector<16x1xf32>
    %153 = vector.broadcast %152 : vector<16x1xf32> to vector<16x16xf32>
    %154 = arith.subf %150, %153 : vector<16x16xf32>
    %155 = math.exp %154 : vector<16x16xf32>
    %cst_64 = arith.constant dense<0.000000e+00> : vector<16xf32>
    %156 = vector.multi_reduction <add>, %155, %cst_64 [1] : vector<16x16xf32> to vector<16xf32>
    %157 = vector.shape_cast %156 : vector<16xf32> to vector<16x1xf32>
    %158 = vector.broadcast %157 : vector<16x1xf32> to vector<16x16xf32>
    %159 = arith.divf %155, %158 : vector<16x16xf32>
    %cst_65 = arith.constant dense<0.000000e+00> : vector<16x8xf32>
    %160 = tpu.matmul %159, %145, %cst_65 {dimension_numbers = #tpu.dot_dimension_numbers<[1], [0], [0], [1], [0, 0, 1, 1], [], []>} : vector<16x16xf32>, vector<16x8xf32>, vector<16x8xf32> -> vector<16x8xf32>
    %c8_66 = arith.constant 8 : index
    %c0_67 = arith.constant 0 : index
    %161 = vector.load %arg12[%c8_66, %c0_67] : memref<32x32xf32, #tpu.memory_space<vmem>>, vector<8x32xf32>
    %cst_68 = arith.constant dense<0.000000e+00> : vector<16x32xf32>
    %162 = tpu.matmul %160, %161, %cst_68 {dimension_numbers = #tpu.dot_dimension_numbers<[1], [0], [0], [1], [0, 0, 1, 1], [], []>} : vector<16x8xf32>, vector<8x32xf32>, vector<16x32xf32> -> vector<16x32xf32>
    %163 = arith.addf %142, %162 : vector<16x32xf32>
    %164 = vector.extract_strided_slice %117 {offsets = [0, 16], sizes = [16, 8], strides = [1, 1]} : vector<16x32xf32> to vector<16x8xf32>
    %165 = vector.extract_strided_slice %120 {offsets = [0, 16], sizes = [16, 8], strides = [1, 1]} : vector<16x32xf32> to vector<16x8xf32>
    %166 = vector.extract_strided_slice %121 {offsets = [0, 16], sizes = [16, 8], strides = [1, 1]} : vector<16x32xf32> to vector<16x8xf32>
    %167 = tpu.transpose %165, [1, 0] : vector<16x8xf32> -> vector<8x16xf32>
    %cst_69 = arith.constant dense<0.000000e+00> : vector<16x16xf32>
    %168 = tpu.matmul %164, %167, %cst_69 {dimension_numbers = #tpu.dot_dimension_numbers<[1], [0], [0], [1], [0, 0, 1, 1], [], []>} : vector<16x8xf32>, vector<8x16xf32>, vector<16x16xf32> -> vector<16x16xf32>
    %cst_70 = arith.constant 0.353553385 : f32
    %169 = vector.broadcast %cst_70 : f32 to vector<16x16xf32>
    %170 = arith.mulf %168, %169 : vector<16x16xf32>
    %171 = arith.addf %170, %122 : vector<16x16xf32>
    %cst_71 = arith.constant dense<0xFF800000> : vector<16xf32>
    %172 = vector.multi_reduction <maximumf>, %171, %cst_71 [1] : vector<16x16xf32> to vector<16xf32>
    %173 = vector.shape_cast %172 : vector<16xf32> to vector<16x1xf32>
    %174 = vector.broadcast %173 : vector<16x1xf32> to vector<16x16xf32>
    %175 = arith.subf %171, %174 : vector<16x16xf32>
    %176 = math.exp %175 : vector<16x16xf32>
    %cst_72 = arith.constant dense<0.000000e+00> : vector<16xf32>
    %177 = vector.multi_reduction <add>, %176, %cst_72 [1] : vector<16x16xf32> to vector<16xf32>
    %178 = vector.shape_cast %177 : vector<16xf32> to vector<16x1xf32>
    %179 = vector.broadcast %178 : vector<16x1xf32> to vector<16x16xf32>
    %180 = arith.divf %176, %179 : vector<16x16xf32>
    %cst_73 = arith.constant dense<0.000000e+00> : vector<16x8xf32>
    %181 = tpu.matmul %180, %166, %cst_73 {dimension_numbers = #tpu.dot_dimension_numbers<[1], [0], [0], [1], [0, 0, 1, 1], [], []>} : vector<16x16xf32>, vector<16x8xf32>, vector<16x8xf32> -> vector<16x8xf32>
    %c16_74 = arith.constant 16 : index
    %c0_75 = arith.constant 0 : index
    %182 = vector.load %arg12[%c16_74, %c0_75] : memref<32x32xf32, #tpu.memory_space<vmem>>, vector<8x32xf32>
    %cst_76 = arith.constant dense<0.000000e+00> : vector<16x32xf32>
    %183 = tpu.matmul %181, %182, %cst_76 {dimension_numbers = #tpu.dot_dimension_numbers<[1], [0], [0], [1], [0, 0, 1, 1], [], []>} : vector<16x8xf32>, vector<8x32xf32>, vector<16x32xf32> -> vector<16x32xf32>
    %184 = arith.addf %163, %183 : vector<16x32xf32>
    %185 = vector.extract_strided_slice %117 {offsets = [0, 24], sizes = [16, 8], strides = [1, 1]} : vector<16x32xf32> to vector<16x8xf32>
    %186 = vector.extract_strided_slice %120 {offsets = [0, 24], sizes = [16, 8], strides = [1, 1]} : vector<16x32xf32> to vector<16x8xf32>
    %187 = vector.extract_strided_slice %121 {offsets = [0, 24], sizes = [16, 8], strides = [1, 1]} : vector<16x32xf32> to vector<16x8xf32>
    %188 = tpu.transpose %186, [1, 0] : vector<16x8xf32> -> vector<8x16xf32>
    %cst_77 = arith.constant dense<0.000000e+00> : vector<16x16xf32>
    %189 = tpu.matmul %185, %188, %cst_77 {dimension_numbers = #tpu.dot_dimension_numbers<[1], [0], [0], [1], [0, 0, 1, 1], [], []>} : vector<16x8xf32>, vector<8x16xf32>, vector<16x16xf32> -> vector<16x16xf32>
    %cst_78 = arith.constant 0.353553385 : f32
    %190 = vector.broadcast %cst_78 : f32 to vector<16x16xf32>
    %191 = arith.mulf %189, %190 : vector<16x16xf32>
    %192 = arith.addf %191, %122 : vector<16x16xf32>
    %cst_79 = arith.constant dense<0xFF800000> : vector<16xf32>
    %193 = vector.multi_reduction <maximumf>, %192, %cst_79 [1] : vector<16x16xf32> to vector<16xf32>
    %194 = vector.shape_cast %193 : vector<16xf32> to vector<16x1xf32>
    %195 = vector.broadcast %194 : vector<16x1xf32> to vector<16x16xf32>
    %196 = arith.subf %192, %195 : vector<16x16xf32>
    %197 = math.exp %196 : vector<16x16xf32>
    %cst_80 = arith.constant dense<0.000000e+00> : vector<16xf32>
    %198 = vector.multi_reduction <add>, %197, %cst_80 [1] : vector<16x16xf32> to vector<16xf32>
    %199 = vector.shape_cast %198 : vector<16xf32> to vector<16x1xf32>
    %200 = vector.broadcast %199 : vector<16x1xf32> to vector<16x16xf32>
    %201 = arith.divf %197, %200 : vector<16x16xf32>
    %cst_81 = arith.constant dense<0.000000e+00> : vector<16x8xf32>
    %202 = tpu.matmul %201, %187, %cst_81 {dimension_numbers = #tpu.dot_dimension_numbers<[1], [0], [0], [1], [0, 0, 1, 1], [], []>} : vector<16x16xf32>, vector<16x8xf32>, vector<16x8xf32> -> vector<16x8xf32>
    %c24_82 = arith.constant 24 : index
    %c0_83 = arith.constant 0 : index
    %203 = vector.load %arg12[%c24_82, %c0_83] : memref<32x32xf32, #tpu.memory_space<vmem>>, vector<8x32xf32>
    %cst_84 = arith.constant dense<0.000000e+00> : vector<16x32xf32>
    %204 = tpu.matmul %202, %203, %cst_84 {dimension_numbers = #tpu.dot_dimension_numbers<[1], [0], [0], [1], [0, 0, 1, 1], [], []>} : vector<16x8xf32>, vector<8x32xf32>, vector<16x32xf32> -> vector<16x32xf32>
    %205 = arith.addf %184, %204 : vector<16x32xf32>
    %206 = arith.addf %115, %205 : vector<16x32xf32>
    %c0_85 = arith.constant 0 : index
    %c0_86 = arith.constant 0 : index
    %207 = vector.load %arg6[%c0_85, %c0_86] : memref<1x32xf32, #tpu.memory_space<vmem>>, vector<1x32xf32>
    %c0_87 = arith.constant 0 : index
    %c0_88 = arith.constant 0 : index
    %208 = vector.load %arg7[%c0_87, %c0_88] : memref<1x32xf32, #tpu.memory_space<vmem>>, vector<1x32xf32>
    %cst_89 = arith.constant dense<0.000000e+00> : vector<16xf32>
    %209 = vector.multi_reduction <add>, %206, %cst_89 [1] : vector<16x32xf32> to vector<16xf32>
    %210 = vector.shape_cast %209 : vector<16xf32> to vector<16x1xf32>
    %cst_90 = arith.constant 3.200000e+01 : f32
    %211 = vector.broadcast %cst_90 : f32 to vector<16x1xf32>
    %212 = arith.divf %210, %211 : vector<16x1xf32>
    %213 = vector.broadcast %212 : vector<16x1xf32> to vector<16x32xf32>
    %214 = arith.subf %206, %213 : vector<16x32xf32>
    %215 = arith.mulf %214, %214 : vector<16x32xf32>
    %cst_91 = arith.constant dense<0.000000e+00> : vector<16xf32>
    %216 = vector.multi_reduction <add>, %215, %cst_91 [1] : vector<16x32xf32> to vector<16xf32>
    %217 = vector.shape_cast %216 : vector<16xf32> to vector<16x1xf32>
    %cst_92 = arith.constant 3.200000e+01 : f32
    %218 = vector.broadcast %cst_92 : f32 to vector<16x1xf32>
    %219 = arith.divf %217, %218 : vector<16x1xf32>
    %220 = vector.broadcast %212 : vector<16x1xf32> to vector<16x32xf32>
    %221 = arith.subf %206, %220 : vector<16x32xf32>
    %cst_93 = arith.constant 9.99999974E-6 : f32
    %222 = vector.broadcast %cst_93 : f32 to vector<16x1xf32>
    %223 = arith.addf %219, %222 : vector<16x1xf32>
    %224 = math.rsqrt %223 : vector<16x1xf32>
    %225 = vector.broadcast %224 : vector<16x1xf32> to vector<16x32xf32>
    %226 = arith.mulf %221, %225 : vector<16x32xf32>
    %227 = vector.broadcast %207 : vector<1x32xf32> to vector<16x32xf32>
    %228 = arith.mulf %226, %227 : vector<16x32xf32>
    %229 = vector.broadcast %208 : vector<1x32xf32> to vector<16x32xf32>
    %230 = arith.addf %228, %229 : vector<16x32xf32>
    %c0_94 = arith.constant 0 : index
    %c0_95 = arith.constant 0 : index
    %231 = vector.load %arg13[%c0_94, %c0_95] : memref<32x64xf32, #tpu.memory_space<vmem>>, vector<32x64xf32>
    %cst_96 = arith.constant dense<0.000000e+00> : vector<16x64xf32>
    %232 = tpu.matmul %230, %231, %cst_96 {dimension_numbers = #tpu.dot_dimension_numbers<[1], [0], [0], [1], [0, 0, 1, 1], [], []>} : vector<16x32xf32>, vector<32x64xf32>, vector<16x64xf32> -> vector<16x64xf32>
    %c0_97 = arith.constant 0 : index
    %c0_98 = arith.constant 0 : index
    %233 = vector.load %arg14[%c0_97, %c0_98] : memref<1x64xf32, #tpu.memory_space<vmem>>, vector<1x64xf32>
    %234 = vector.broadcast %233 : vector<1x64xf32> to vector<16x64xf32>
    %235 = arith.addf %232, %234 : vector<16x64xf32>
    %cst_99 = arith.constant 5.000000e-01 : f32
    %236 = vector.broadcast %cst_99 : f32 to vector<16x64xf32>
    %237 = arith.mulf %236, %235 : vector<16x64xf32>
    %cst_100 = arith.constant 0.707106769 : f32
    %238 = vector.broadcast %cst_100 : f32 to vector<16x64xf32>
    %239 = arith.mulf %235, %238 : vector<16x64xf32>
    %240 = math.erf %239 : vector<16x64xf32>
    %cst_101 = arith.constant 1.000000e+00 : f32
    %241 = vector.broadcast %cst_101 : f32 to vector<16x64xf32>
    %242 = arith.addf %241, %240 : vector<16x64xf32>
    %243 = arith.mulf %237, %242 : vector<16x64xf32>
    %c0_102 = arith.constant 0 : index
    %c0_103 = arith.constant 0 : index
    %244 = vector.load %arg15[%c0_102, %c0_103] : memref<64x32xf32, #tpu.memory_space<vmem>>, vector<64x32xf32>
    %cst_104 = arith.constant dense<0.000000e+00> : vector<16x32xf32>
    %245 = tpu.matmul %243, %244, %cst_104 {dimension_numbers = #tpu.dot_dimension_numbers<[1], [0], [0], [1], [0, 0, 1, 1], [], []>} : vector<16x64xf32>, vector<64x32xf32>, vector<16x32xf32> -> vector<16x32xf32>
    %c0_105 = arith.constant 0 : index
    %c0_106 = arith.constant 0 : index
    %246 = vector.load %arg16[%c0_105, %c0_106] : memref<1x32xf32, #tpu.memory_space<vmem>>, vector<1x32xf32>
    %247 = vector.broadcast %246 : vector<1x32xf32> to vector<16x32xf32>
    %248 = arith.addf %245, %247 : vector<16x32xf32>
    %249 = arith.addf %206, %248 : vector<16x32xf32>
    %c0_107 = arith.constant 0 : index
    %c0_108 = arith.constant 0 : index
    %250 = vector.load %arg17[%c0_107, %c0_108] : memref<16x32xf32, #tpu.memory_space<vmem>>, vector<16x32xf32>
    tpu.vector_store %arg17[%c0_107, %c0_108], %249 {strides = array<i32>} : memref<16x32xf32, #tpu.memory_space<vmem>>, vector<16x32xf32>,
    return
  }
}

</mosaic_0001>

<llo_original>
// kernel: decoder_block_fwd.1
$region0: #{decoder_block_fwd.1}
  #allocation0 [shape = 'u32[]', space=smem, size = 0x4, offset = 0x4, fixed_abs, tag = 'smem constant byte address 0x4 - core index']
  #allocation1 [shape = 'u32[144,128]{1,0:T(1,128)}', space=vmem, size = 0x12000, scoped, tag = 'internal scratch']
  %s0 = inlined_call_operand.hbm [shape: f32[16,32], index: 0, kind: input, shape index: {}]
  %s1 = inlined_call_operand.hbm [shape: f32[16,32], index: 1, kind: input, shape index: {}]
  %s2 = inlined_call_operand.hbm [shape: f32[16,16], index: 2, kind: input, shape index: {}]
  %s3 = inlined_call_operand.hbm [shape: f32[16,16], index: 3, kind: input, shape index: {}]
  %s4 = inlined_call_operand.vmem [shape: f32[1,32], index: 4, kind: input, shape index: {}]
  %s5 = inlined_call_operand.vmem [shape: f32[1,32], index: 5, kind: input, shape index: {}]
  %s6 = inlined_call_operand.vmem [shape: f32[1,32], index: 6, kind: input, shape index: {}]
  %s7 = inlined_call_operand.vmem [shape: f32[1,32], index: 7, kind: input, shape index: {}]
  %s8 = inlined_call_operand.vmem [shape: f32[32,96], index: 8, kind: input, shape index: {}]
  %s9 = inlined_call_operand.vmem [shape: f32[32,32], index: 9, kind: input, shape index: {}]
  %s10 = inlined_call_operand.vmem [shape: f32[32,32], index: 10, kind: input, shape index: {}]
  %s11 = inlined_call_operand.hbm [shape: f32[32,64], index: 11, kind: input, shape index: {}]
  %s12 = inlined_call_operand.hbm [shape: f32[32,32], index: 12, kind: input, shape index: {}]
  %s13 = inlined_call_operand.hbm [shape: f32[32,64], index: 13, kind: input, shape index: {}]
  %s14 = inlined_call_operand.vmem [shape: f32[1,64], index: 14, kind: input, shape index: {}]
  %s15 = inlined_call_operand.vmem [shape: f32[64,32], index: 15, kind: input, shape index: {}]
  %s16 = inlined_call_operand.vmem [shape: f32[1,32], index: 16, kind: input, shape index: {}]
  %s17 = inlined_call_operand.hbm [shape: f32[16,32], index: 17, kind: output, shape index: {}]
  %s18 = sld [smem:[#allocation0]]
  $region106: #{decoder_block_fwd.1} parent=0
    _
  %s20 = ssub.s32 1, %s18
  %s21 = scalar_select 0, %s20, %s18
  $region1: #{decoder_block_fwd.1} parent=0
    #allocation2 [shape = 'u8[8192]{0}', space=vmem, size = 0x2000, scoped, tag = 'input window, operand 0, single buffered']
    #allocation3 [shape = 's32[1]{0}', space=sflag, size = 0x4, scoped, tag = 'scoped memory for decoder_block_fwd.1']
    #allocation4 [shape = 's32[1]{0}', space=sflag, size = 0x4, scoped, tag = 'scoped memory for decoder_block_fwd.1']
    #allocation5 [shape = 'u8[8192]{0}', space=vmem, size = 0x2000, scoped, tag = 'input window, operand 1, single buffered']
    #allocation6 [shape = 's32[1]{0}', space=sflag, size = 0x4, scoped, tag = 'scoped memory for decoder_block_fwd.1']
    #allocation7 [shape = 'u8[8192]{0}', space=vmem, size = 0x2000, scoped, tag = 'input window, operand 2, single buffered']
    #allocation8 [shape = 'u8[8192]{0}', space=vmem, size = 0x2000, scoped, tag = 'input window, operand 3, single buffered']
    #allocation9 [shape = 's32[1]{0}', space=sflag, size = 0x4, scoped, tag = 'scoped memory for decoder_block_fwd.1']
    #allocation10 [shape = 'u8[16384]{0}', space=vmem, size = 0x4000, scoped, tag = 'input window, operand 11, single buffered']
    #allocation11 [shape = 'u8[16384]{0}', space=vmem, size = 0x4000, scoped, tag = 'input window, operand 12, single buffered']
    #allocation12 [shape = 's32[1]{0}', space=sflag, size = 0x4, scoped, tag = 'scoped memory for decoder_block_fwd.1']
    #allocation13 [shape = 'u8[16384]{0}', space=vmem, size = 0x4000, scoped, tag = 'input window, operand 13, single buffered']
    #allocation14 [shape = 'u8[8192]{0}', space=vmem, size = 0x2000, scoped, tag = 'output window, operand 0, single buffered']
    %22 = vsyncpa [#allocation3], 0
    %23 = vsyncpa [#allocation6], 0
    %24 = vsyncpa [#allocation9], 0
    %25 = vsyncpa [#allocation12], 0
    %26 = vsyncpa [#allocation4], 0
    // Predicated region
    $region2: #{decoder_block_fwd.1} parent=1 // pred_check
      _
    $region3: #{decoder_block_fwd.1} parent=1 // pred_check_branch
      %28 = sbr.rel (0) target = $region5
    $region4: #{decoder_block_fwd.1} parent=1 // pred_region
      %s30 = ssub.s32 256, 256
      %31 = vsyncadd [#allocation3], %s30
      %s32 = sshll.u32 [#allocation2], 4
      %s33 = int_to_ptr.vmem [resolvable:$true] %s32
      %38 = dma.hbm_to_vmem [thread:$0]  %s0, 256, %s33, [#allocation3], 128, 128, 8
    $region5: #{decoder_block_fwd.1} parent=1 // pred_fallthru
      _
    // Predicated region
    $region6: #{decoder_block_fwd.1} parent=1 // pred_check
      _
    $region7: #{decoder_block_fwd.1} parent=1 // pred_check_branch
      %40 = sbr.rel (0) target = $region9
    $region8: #{decoder_block_fwd.1} parent=1 // pred_region
      %s42 = ssub.s32 256, 256
      %43 = vsyncadd [#allocation6], %s42
      %s44 = sshll.u32 [#allocation5], 4
      %s45 = int_to_ptr.vmem [resolvable:$true] %s44
      %50 = dma.hbm_to_vmem [thread:$0]  %s1, 256, %s45, [#allocation6], 128, 128, 8
    $region9: #{decoder_block_fwd.1} parent=1 // pred_fallthru
      _
    // Predicated region
    $region10: #{decoder_block_fwd.1} parent=1 // pred_check
      _
    $region11: #{decoder_block_fwd.1} parent=1 // pred_check_branch
      %52 = sbr.rel (0) target = $region13
    $region12: #{decoder_block_fwd.1} parent=1 // pred_region
      %s54 = ssub.s32 256, 256
      %55 = vsyncadd [#allocation6], %s54
      %s56 = sshll.u32 [#allocation7], 4
      %s57 = int_to_ptr.vmem [resolvable:$true] %s56
      %62 = dma.hbm_to_vmem [thread:$0]  %s2, 256, %s57, [#allocation6], 128, 128, 8
    $region13: #{decoder_block_fwd.1} parent=1 // pred_fallthru
      _
    // Predicated region
    $region14: #{decoder_block_fwd.1} parent=1 // pred_check
      _
    $region15: #{decoder_block_fwd.1} parent=1 // pred_check_branch
      %64 = sbr.rel (0) target = $region17
    $region16: #{decoder_block_fwd.1} parent=1 // pred_region
      %s66 = ssub.s32 256, 256
      %67 = vsyncadd [#allocation9], %s66
      %s68 = sshll.u32 [#allocation8], 4
      %s69 = int_to_ptr.vmem [resolvable:$true] %s68
      %74 = dma.hbm_to_vmem [thread:$0]  %s3, 256, %s69, [#allocation9], 128, 128, 8
    $region17: #{decoder_block_fwd.1} parent=1 // pred_fallthru
      _
    // Predicated region
    $region18: #{decoder_block_fwd.1} parent=1 // pred_check
      _
    $region19: #{decoder_block_fwd.1} parent=1 // pred_check_branch
      %76 = sbr.rel (0) target = $region21
    $region20: #{decoder_block_fwd.1} parent=1 // pred_region
      _
    $region21: #{decoder_block_fwd.1} parent=1 // pred_fallthru
      _
    // Predicated region
    $region22: #{decoder_block_fwd.1} parent=1 // pred_check
      _
    $region23: #{decoder_block_fwd.1} parent=1 // pred_check_branch
      %78 = sbr.rel (0) target = $region25
    $region24: #{decoder_block_fwd.1} parent=1 // pred_region
      _
    $region25: #{decoder_block_fwd.1} parent=1 // pred_fallthru
      _
    // Predicated region
    $region26: #{decoder_block_fwd.1} parent=1 // pred_check
      _
    $region27: #{decoder_block_fwd.1} parent=1 // pred_check_branch
      %80 = sbr.rel (0) target = $region29
    $region28: #{decoder_block_fwd.1} parent=1 // pred_region
      _
    $region29: #{decoder_block_fwd.1} parent=1 // pred_fallthru
      _
    // Predicated region
    $region30: #{decoder_block_fwd.1} parent=1 // pred_check
      _
    $region31: #{decoder_block_fwd.1} parent=1 // pred_check_branch
      %82 = sbr.rel (0) target = $region33
    $region32: #{decoder_block_fwd.1} parent=1 // pred_region
      _
    $region33: #{decoder_block_fwd.1} parent=1 // pred_fallthru
      _
    // Predicated region
    $region34: #{decoder_block_fwd.1} parent=1 // pred_check
      _
    $region35: #{decoder_block_fwd.1} parent=1 // pred_check_branch
      %84 = sbr.rel (0) target = $region37
    $region36: #{decoder_block_fwd.1} parent=1 // pred_region
      _
    $region37: #{decoder_block_fwd.1} parent=1 // pred_fallthru
      _
    // Predicated region
    $region38: #{decoder_block_fwd.1} parent=1 // pred_check
      _
    $region39: #{decoder_block_fwd.1} parent=1 // pred_check_branch
      %86 = sbr.rel (0) target = $region41
    $region40: #{decoder_block_fwd.1} parent=1 // pred_region
      _
    $region41: #{decoder_block_fwd.1} parent=1 // pred_fallthru
      _
    // Predicated region
    $region42: #{decoder_block_fwd.1} parent=1 // pred_check
      _
    $region43: #{decoder_block_fwd.1} parent=1 // pred_check_branch
      %88 = sbr.rel (0) target = $region45
    $region44: #{decoder_block_fwd.1} parent=1 // pred_region
      _
    $region45: #{decoder_block_fwd.1} parent=1 // pred_fallthru
      _
    // Predicated region
    $region46: #{decoder_block_fwd.1} parent=1 // pred_check
      _
    $region47: #{decoder_block_fwd.1} parent=1 // pred_check_branch
      %90 = sbr.rel (0) target = $region49
    $region48: #{decoder_block_fwd.1} parent=1 // pred_region
      %s92 = ssub.s32 512, 512
      %93 = vsyncadd [#allocation9], %s92
      %s94 = sshll.u32 [#allocation10], 4
      %s95 = int_to_ptr.vmem [resolvable:$true] %s94
      %100 = dma.hbm_to_vmem [thread:$0]  %s11, 512, %s95, [#allocation9], 128, 128, 8
    $region49: #{decoder_block_fwd.1} parent=1 // pred_fallthru
      _
    // Predicated region
    $region50: #{decoder_block_fwd.1} parent=1 // pred_check
      _
    $region51: #{decoder_block_fwd.1} parent=1 // pred_check_branch
      %102 = sbr.rel (0) target = $region53
    $region52: #{decoder_block_fwd.1} parent=1 // pred_region
      %s104 = ssub.s32 512, 512
      %105 = vsyncadd [#allocation12], %s104
      %s106 = sshll.u32 [#allocation11], 4
      %s107 = int_to_ptr.vmem [resolvable:$true] %s106
      %112 = dma.hbm_to_vmem [thread:$0]  %s12, 512, %s107, [#allocation12], 128, 128, 8
    $region53: #{decoder_block_fwd.1} parent=1 // pred_fallthru
      _
    // Predicated region
    $region54: #{decoder_block_fwd.1} parent=1 // pred_check
      _
    $region55: #{decoder_block_fwd.1} parent=1 // pred_check_branch
      %114 = sbr.rel (0) target = $region57
    $region56: #{decoder_block_fwd.1} parent=1 // pred_region
      %s116 = ssub.s32 512, 512
      %117 = vsyncadd [#allocation12], %s116
      %s118 = sshll.u32 [#allocation13], 4
      %s119 = int_to_ptr.vmem [resolvable:$true] %s118
      %124 = dma.hbm_to_vmem [thread:$0]  %s13, 512, %s119, [#allocation12], 128, 128, 8
    $region57: #{decoder_block_fwd.1} parent=1 // pred_fallthru
      _
    // Predicated region
    $region58: #{decoder_block_fwd.1} parent=1 // pred_check
      _
    $region59: #{decoder_block_fwd.1} parent=1 // pred_check_branch
      %126 = sbr.rel (0) target = $region61
    $region60: #{decoder_block_fwd.1} parent=1 // pred_region
      _
    $region61: #{decoder_block_fwd.1} parent=1 // pred_fallthru
      _
    // Predicated region
    $region62: #{decoder_block_fwd.1} parent=1 // pred_check
      _
    $region63: #{decoder_block_fwd.1} parent=1 // pred_check_branch
      %128 = sbr.rel (0) target = $region65
    $region64: #{decoder_block_fwd.1} parent=1 // pred_region
      _
    $region65: #{decoder_block_fwd.1} parent=1 // pred_fallthru
      _
    // Predicated region
    $region66: #{decoder_block_fwd.1} parent=1 // pred_check
      _
    $region67: #{decoder_block_fwd.1} parent=1 // pred_check_branch
      %130 = sbr.rel (0) target = $region69
    $region68: #{decoder_block_fwd.1} parent=1 // pred_region
      _
    $region69: #{decoder_block_fwd.1} parent=1 // pred_fallthru
      _
    // Predicated region
    $region70: #{decoder_block_fwd.1} parent=1 // pred_check
      _
    $region71: #{decoder_block_fwd.1} parent=1 // pred_check_branch
      %132 = sbr.rel (0) target = $region73
    $region72: #{decoder_block_fwd.1} parent=1 // pred_region
      %133 = dma.done [#allocation3], 256
    $region73: #{decoder_block_fwd.1} parent=1 // pred_fallthru
      _
    // Predicated region
    $region74: #{decoder_block_fwd.1} parent=1 // pred_check
      _
    $region75: #{decoder_block_fwd.1} parent=1 // pred_check_branch
      %135 = sbr.rel (0) target = $region77
    $region76: #{decoder_block_fwd.1} parent=1 // pred_region
      %136 = dma.done [#allocation6], 256
    $region77: #{decoder_block_fwd.1} parent=1 // pred_fallthru
      _
    // Predicated region
    $region78: #{decoder_block_fwd.1} parent=1 // pred_check
      _
    $region79: #{decoder_block_fwd.1} parent=1 // pred_check_branch
      %138 = sbr.rel (0) target = $region81
    $region80: #{decoder_block_fwd.1} parent=1 // pred_region
      %139 = dma.done [#allocation6], 256
    $region81: #{decoder_block_fwd.1} parent=1 // pred_fallthru
      _
    // Predicated region
    $region82: #{decoder_block_fwd.1} parent=1 // pred_check
      _
    $region83: #{decoder_block_fwd.1} parent=1 // pred_check_branch
      %141 = sbr.rel (0) target = $region85
    $region84: #{decoder_block_fwd.1} parent=1 // pred_region
      %142 = dma.done [#allocation9], 256
    $region85: #{decoder_block_fwd.1} parent=1 // pred_fallthru
      _
    // Predicated region
    $region86: #{decoder_block_fwd.1} parent=1 // pred_check
      _
    $region87: #{decoder_block_fwd.1} parent=1 // pred_check_branch
      %144 = sbr.rel (0) target = $region89
    $region88: #{decoder_block_fwd.1} parent=1 // pred_region
      %145 = dma.done [#allocation9], 512
    $region89: #{decoder_block_fwd.1} parent=1 // pred_fallthru
      _
    // Predicated region
    $region90: #{decoder_block_fwd.1} parent=1 // pred_check
      _
    $region91: #{decoder_block_fwd.1} parent=1 // pred_check_branch
      %147 = sbr.rel (0) target = $region93
    $region92: #{decoder_block_fwd.1} parent=1 // pred_region
      %148 = dma.done [#allocation12], 512
    $region93: #{decoder_block_fwd.1} parent=1 // pred_fallthru
      _
    // Predicated region
    $region94: #{decoder_block_fwd.1} parent=1 // pred_check
      _
    $region95: #{decoder_block_fwd.1} parent=1 // pred_check_branch
      %150 = sbr.rel (0) target = $region97
    $region96: #{decoder_block_fwd.1} parent=1 // pred_region
      %151 = dma.done [#allocation12], 512
    $region97: #{decoder_block_fwd.1} parent=1 // pred_fallthru
      _
    %v152 = vld [vmem:[#allocation2] sm:$0xff]
    %v153 = vld [vmem:[#allocation2 + $0x8] sm:$0xff]
    %v154 = vld [vmem:[#allocation5] sm:$0xff]
    %v155 = vld [vmem:[#allocation5 + $0x8] sm:$0xff]
    %v156 = vld [vmem:[%s4] sm:$0x1]
    %v157 = vld [vmem:[%s5] sm:$0x1]
    %vm158 = vcmask 261120
    %v159 = vsel %vm158, %v152, 0.0
    %160 = vadd.xlane.f32.xlu0 %v159
    %v161 = vpop.xlane.xlu0 %160
    %v162 = vsel %vm158, %v153, 0.0
    %163 = vadd.xlane.f32.xlu0 %v162
    %v164 = vpop.xlane.xlu0 %163
    %v165 = vrcp.pop 32.0
    %v166 = vmul.f32 %v161, %v165
    %v167 = vmul.f32 %v164, %v165
    %v168 = vsub.f32 %v152, %v166
    %v169 = vsub.f32 %v153, %v167
    %v170 = vmul.f32 %v168, %v168
    %v171 = vmul.f32 %v169, %v169
    %v172 = vsel %vm158, %v170, 0.0
    %173 = vadd.xlane.f32.xlu0 %v172
    %v174 = vpop.xlane.xlu0 %173
    %v175 = vsel %vm158, %v171, 0.0
    %176 = vadd.xlane.f32.xlu0 %v175
    %v177 = vpop.xlane.xlu0 %176
    %v178 = vmul.f32 %v174, %v165
    %v179 = vmul.f32 %v177, %v165
    %v180 = vadd.f32 %v178, 1e-05
    %v181 = vadd.f32 %v179, 1e-05
    %v182 = vrsqrt.pop %v180
    %v183 = vrsqrt.pop %v181
    %v184 = vmul.f32 %v168, %v182
    %v185 = vmul.f32 %v169, %v183
    %v187 = vlaneseq
    %v188 = vshrl.u32 %v187, 7
    %v189 = vsub.s32 0, %v188
    %v190 = vrot.slane %v156, %v189
    %v192 = vmul.f32 %v184, %v190
    %v193 = vmul.f32 %v185, %v190
    %v195 = vlaneseq
    %v196 = vshrl.u32 %v195, 7
    %v197 = vsub.s32 0, %v196
    %v198 = vrot.slane %v157, %v197
    %v200 = vadd.f32 %v192, %v198
    %v201 = vadd.f32 %v193, %v198
    %v202 = vld [vmem:[%s8] sm:$0xff]
    %v203 = vld [vmem:[%s8 + $0x8] sm:$0xff]
    %v204 = vld [vmem:[%s8 + $0x10] sm:$0xff]
    %v205 = vld [vmem:[%s8 + $0x18] sm:$0xff]
    %v207 = vsel %vm158, %v200, 0
    %v210 = vsel %vm158, %v201, 0
    %212 = vmatprep.subr.mxu0 0.0
    %213 = vmatpush1.msra.mxu0 0.0
    %214 = vmatprep.subr.mxu0 0.0
    %215 = vmatpush1.msra.mxu0 0.0
    %216 = vmatprep.subr.mxu0 0.0
    %217 = vmatpush1.msra.mxu0 0.0
    %218 = vmatprep.subr.mxu0 0.0
    %219 = vmatpush1.msra.mxu0 0.0
    %220 = vmatprep.subr.mxu0 0.0
    %221 = vmatpush1.msra.mxu0 0.0
    %222 = vmatprep.subr.mxu0 0.0
    %223 = vmatpush1.msra.mxu0 0.0
    %224 = vmatprep.subr.mxu0 0.0
    %225 = vmatpush1.msra.mxu0 0.0
    %226 = vmatprep.subr.mxu0 0.0
    %227 = vmatpush1.msra.mxu0 0.0
    %228 = vmatprep.subr.mxu0 0.0
    %229 = vmatpush1.msra.mxu0 0.0
    %230 = vmatprep.subr.mxu0 0.0
    %231 = vmatpush1.msra.mxu0 0.0
    %232 = vmatprep.subr.mxu0 0.0
    %233 = vmatpush1.msra.mxu0 0.0
    %234 = vmatprep.subr.mxu0 0.0
    %235 = vmatpush1.msra.mxu0 0.0
    %236 = vmatprep.subr.mxu0 0.0
    %237 = vmatpush1.msra.mxu0 %v205
    %238 = vmatprep.subr.mxu0 0.0
    %239 = vmatpush1.msra.mxu0 %v204
    %240 = vmatprep.subr.mxu0 0.0
    %241 = vmatpush1.msra.mxu0 %v203
    %242 = vmatprep.subr.mxu0 0.0
    %243 = vmatpush1.msra.mxu0 %v202
    %244 = vmatprep.subr.mxu0 0.0
    %245 = vmatpush2.msra.mxu0 0.0
    %246 = vmatprep.subr.mxu0 0.0
    %247 = vmatpush2.msra.mxu0 0.0
    %248 = vmatprep.subr.mxu0 0.0
    %249 = vmatpush2.msra.mxu0 0.0
    %250 = vmatprep.subr.mxu0 0.0
    %251 = vmatpush2.msra.mxu0 0.0
    %252 = vmatprep.subr.mxu0 0.0
    %253 = vmatpush2.msra.mxu0 0.0
    %254 = vmatprep.subr.mxu0 0.0
    %255 = vmatpush2.msra.mxu0 0.0
    %256 = vmatprep.subr.mxu0 0.0
    %257 = vmatpush2.msra.mxu0 0.0
    %258 = vmatprep.subr.mxu0 0.0
    %259 = vmatpush2.msra.mxu0 0.0
    %260 = vmatprep.subr.mxu0 0.0
    %261 = vmatpush2.msra.mxu0 0.0
    %262 = vmatprep.subr.mxu0 0.0
    %263 = vmatpush2.msra.mxu0 0.0
    %264 = vmatprep.subr.mxu0 0.0
    %265 = vmatpush2.msra.mxu0 0.0
    %266 = vmatprep.subr.mxu0 0.0
    %267 = vmatpush2.msra.mxu0 0.0
    %268 = vmatprep.subr.mxu0 0.0
    %269 = vmatpush2.msra.mxu0 0.0
    %270 = vmatprep.subr.mxu0 0.0
    %271 = vmatpush2.msra.mxu0 0.0
    %272 = vmatprep.subr.mxu0 0.0
    %273 = vmatpush2.msra.mxu0 0.0
    %274 = vmatprep.subr.mxu0 0.0
    %275 = vmatpush2.msra.mxu0 0.0
    %276 = vmatprep.mubr.f32.mxu0 0.0
    %277 = vmatmul.mubr.f32.gmra.mxu0 %v207
    %v278 = vpop.f32.mrf.mxu0
    %v279 = vadd.f32 0.0, %v278
    %v280 = vpop.f32.mrf.mxu0
    %281 = vmatprep.mubr.f32.mxu0 0.0
    %282 = vmatmul.mubr.f32.gmra.mxu0 %v210
    %v283 = vpop.f32.mrf.mxu0
    %v284 = vadd.f32 0.0, %v283
    %v285 = vpop.f32.mrf.mxu0
    %286 = vdwg.mxu0
    %v287 = vld [vmem:[#allocation7] sm:$0xff]
    %v288 = vld [vmem:[#allocation7 + $0x8] sm:$0xff]
    %291 = vrot.lane.b32.xlu0 %v279, 96
    %v292 = vpop.permute.xlu0 %291
    %293 = vrot.lane.b32.xlu0 %v284, 96
    %v294 = vpop.permute.xlu0 %293
    %vm295 = vcmask 64512
    %v296 = vsel %vm295, %v279, 0
    %v298 = vsel %vm295, %v284, 0
    %v300 = vsel %vm295, %v292, 0
    %v302 = vsel %vm295, %v294, 0
    %304 = vmatprep.subr.mxu0 0.0
    %305 = vmatpush1.xpose.msra.mxu0 0.0
    %306 = vmatprep.subr.mxu0 0.0
    %307 = vmatpush1.xpose.msra.mxu0 0.0
    %308 = vmatprep.subr.mxu0 0.0
    %309 = vmatpush1.xpose.msra.mxu0 0.0
    %310 = vmatprep.subr.mxu0 0.0
    %311 = vmatpush1.xpose.msra.mxu0 0.0
    %312 = vmatprep.subr.mxu0 0.0
    %313 = vmatpush1.xpose.msra.mxu0 0.0
    %314 = vmatprep.subr.mxu0 0.0
    %315 = vmatpush1.xpose.msra.mxu0 0.0
    %316 = vmatprep.subr.mxu0 0.0
    %317 = vmatpush1.xpose.msra.mxu0 0.0
    %318 = vmatprep.subr.mxu0 0.0
    %319 = vmatpush1.xpose.msra.mxu0 0.0
    %320 = vmatprep.subr.mxu0 0.0
    %321 = vmatpush1.xpose.msra.mxu0 0.0
    %322 = vmatprep.subr.mxu0 0.0
    %323 = vmatpush1.xpose.msra.mxu0 0.0
    %324 = vmatprep.subr.mxu0 0.0
    %325 = vmatpush1.xpose.msra.mxu0 0.0
    %326 = vmatprep.subr.mxu0 0.0
    %327 = vmatpush1.xpose.msra.mxu0 0.0
    %328 = vmatprep.subr.mxu0 0.0
    %329 = vmatpush1.xpose.msra.mxu0 0.0
    %330 = vmatprep.subr.mxu0 0.0
    %331 = vmatpush1.xpose.msra.mxu0 0.0
    %332 = vmatprep.subr.mxu0 0.0
    %333 = vmatpush1.xpose.msra.mxu0 %v302
    %334 = vmatprep.subr.mxu0 0.0
    %335 = vmatpush1.xpose.msra.mxu0 %v300
    %336 = vmatprep.subr.mxu0 0.0
    %337 = vmatpush2.xpose.msra.mxu0 0.0
    %338 = vmatprep.subr.mxu0 0.0
    %339 = vmatpush2.xpose.msra.mxu0 0.0
    %340 = vmatprep.subr.mxu0 0.0
    %341 = vmatpush2.xpose.msra.mxu0 0.0
    %342 = vmatprep.subr.mxu0 0.0
    %343 = vmatpush2.xpose.msra.mxu0 0.0
    %344 = vmatprep.subr.mxu0 0.0
    %345 = vmatpush2.xpose.msra.mxu0 0.0
    %346 = vmatprep.subr.mxu0 0.0
    %347 = vmatpush2.xpose.msra.mxu0 0.0
    %348 = vmatprep.subr.mxu0 0.0
    %349 = vmatpush2.xpose.msra.mxu0 0.0
    %350 = vmatprep.subr.mxu0 0.0
    %351 = vmatpush2.xpose.msra.mxu0 0.0
    %352 = vmatprep.subr.mxu0 0.0
    %353 = vmatpush2.xpose.msra.mxu0 0.0
    %354 = vmatprep.subr.mxu0 0.0
    %355 = vmatpush2.xpose.msra.mxu0 0.0
    %356 = vmatprep.subr.mxu0 0.0
    %357 = vmatpush2.xpose.msra.mxu0 0.0
    %358 = vmatprep.subr.mxu0 0.0
    %359 = vmatpush2.xpose.msra.mxu0 0.0
    %360 = vmatprep.subr.mxu0 0.0
    %361 = vmatpush2.xpose.msra.mxu0 0.0
    %362 = vmatprep.subr.mxu0 0.0
    %363 = vmatpush2.xpose.msra.mxu0 0.0
    %364 = vmatprep.subr.mxu0 0.0
    %365 = vmatpush2.xpose.msra.mxu0 0.0
    %366 = vmatprep.subr.mxu0 0.0
    %367 = vmatpush2.xpose.msra.mxu0 0.0
    %368 = vmatprep.mubr.f32.mxu0 0.0
    %369 = vmatmul.mubr.f32.gmra.mxu0 %v296
    %v370 = vpop.f32.mrf.mxu0
    %v371 = vadd.f32 0.0, %v370
    %v372 = vpop.f32.mrf.mxu0
    %373 = vmatprep.mubr.f32.mxu0 0.0
    %374 = vmatmul.mubr.f32.gmra.mxu0 %v298
    %v375 = vpop.f32.mrf.mxu0
    %v376 = vadd.f32 0.0, %v375
    %v377 = vpop.f32.mrf.mxu0
    %378 = vdwg.mxu0
    %v379 = vmul.f32 %v371, 0.35355338
    %v380 = vmul.f32 %v376, 0.35355338
    %v381 = vadd.f32 %v379, %v287
    %v382 = vadd.f32 %v380, %v288
    %vm383 = vcmask 130048
    %v384 = vsel %vm383, %v381, -inf
    %385 = vmax.xlane.f32.xlu0 %v384
    %v386 = vpop.xlane.xlu0 %385
    %v387 = vsel %vm383, %v382, -inf
    %388 = vmax.xlane.f32.xlu0 %v387
    %v389 = vpop.xlane.xlu0 %388
    %v390 = vsub.f32 %v381, %v386
    %v391 = vsub.f32 %v382, %v389
    %v392 = vmul.f32 %v390, 1.442695
    %v393 = vpow.pop %v392
    %v394 = vmul.f32 %v391, 1.442695
    %v395 = vpow.pop %v394
    %v396 = vsel %vm383, %v393, 0.0
    %397 = vadd.xlane.f32.xlu0 %v396
    %v398 = vpop.xlane.xlu0 %397
    %v399 = vsel %vm383, %v395, 0.0
    %400 = vadd.xlane.f32.xlu0 %v399
    %v401 = vpop.xlane.xlu0 %400
    %v402 = vrcp.pop %v398
    %v403 = vmul.f32 %v393, %v402
    %v404 = vrcp.pop %v401
    %v405 = vmul.f32 %v395, %v404
    %406 = vrot.lane.b32.xlu0 %v279, 64
    %v407 = vpop.permute.xlu0 %406
    %408 = vrot.lane.b32.xlu0 %v284, 64
    %v409 = vpop.permute.xlu0 %408
    %v413 = vsel %vm383, %v403, 0
    %v416 = vsel %vm383, %v405, 0
    %418 = vmatprep.subr.mxu0 0.0
    %419 = vmatpush1.msra.mxu0 0.0
    %420 = vmatprep.subr.mxu0 0.0
    %421 = vmatpush1.msra.mxu0 0.0
    %422 = vmatprep.subr.mxu0 0.0
    %423 = vmatpush1.msra.mxu0 0.0
    %424 = vmatprep.subr.mxu0 0.0
    %425 = vmatpush1.msra.mxu0 0.0
    %426 = vmatprep.subr.mxu0 0.0
    %427 = vmatpush1.msra.mxu0 0.0
    %428 = vmatprep.subr.mxu0 0.0
    %429 = vmatpush1.msra.mxu0 0.0
    %430 = vmatprep.subr.mxu0 0.0
    %431 = vmatpush1.msra.mxu0 0.0
    %432 = vmatprep.subr.mxu0 0.0
    %433 = vmatpush1.msra.mxu0 0.0
    %434 = vmatprep.subr.mxu0 0.0
    %435 = vmatpush1.msra.mxu0 0.0
    %436 = vmatprep.subr.mxu0 0.0
    %437 = vmatpush1.msra.mxu0 0.0
    %438 = vmatprep.subr.mxu0 0.0
    %439 = vmatpush1.msra.mxu0 0.0
    %440 = vmatprep.subr.mxu0 0.0
    %441 = vmatpush1.msra.mxu0 0.0
    %442 = vmatprep.subr.mxu0 0.0
    %443 = vmatpush1.msra.mxu0 0.0
    %444 = vmatprep.subr.mxu0 0.0
    %445 = vmatpush1.msra.mxu0 0.0
    %446 = vmatprep.subr.mxu0 0.0
    %447 = vmatpush1.msra.mxu0 %v409
    %448 = vmatprep.subr.mxu0 0.0
    %449 = vmatpush1.msra.mxu0 %v407
    %450 = vmatprep.subr.mxu0 0.0
    %451 = vmatpush2.msra.mxu0 0.0
    %452 = vmatprep.subr.mxu0 0.0
    %453 = vmatpush2.msra.mxu0 0.0
    %454 = vmatprep.subr.mxu0 0.0
    %455 = vmatpush2.msra.mxu0 0.0
    %456 = vmatprep.subr.mxu0 0.0
    %457 = vmatpush2.msra.mxu0 0.0
    %458 = vmatprep.subr.mxu0 0.0
    %459 = vmatpush2.msra.mxu0 0.0
    %460 = vmatprep.subr.mxu0 0.0
    %461 = vmatpush2.msra.mxu0 0.0
    %462 = vmatprep.subr.mxu0 0.0
    %463 = vmatpush2.msra.mxu0 0.0
    %464 = vmatprep.subr.mxu0 0.0
    %465 = vmatpush2.msra.mxu0 0.0
    %466 = vmatprep.subr.mxu0 0.0
    %467 = vmatpush2.msra.mxu0 0.0
    %468 = vmatprep.subr.mxu0 0.0
    %469 = vmatpush2.msra.mxu0 0.0
    %470 = vmatprep.subr.mxu0 0.0
    %471 = vmatpush2.msra.mxu0 0.0
    %472 = vmatprep.subr.mxu0 0.0
    %473 = vmatpush2.msra.mxu0 0.0
    %474 = vmatprep.subr.mxu0 0.0
    %475 = vmatpush2.msra.mxu0 0.0
    %476 = vmatprep.subr.mxu0 0.0
    %477 = vmatpush2.msra.mxu0 0.0
    %478 = vmatprep.subr.mxu0 0.0
    %479 = vmatpush2.msra.mxu0 0.0
    %480 = vmatprep.subr.mxu0 0.0
    %481 = vmatpush2.msra.mxu0 0.0
    %482 = vmatprep.mubr.f32.mxu0 0.0
    %483 = vmatmul.mubr.f32.gmra.mxu0 %v413
    %v484 = vpop.f32.mrf.mxu0
    %v485 = vadd.f32 0.0, %v484
    %v486 = vpop.f32.mrf.mxu0
    %487 = vmatprep.mubr.f32.mxu0 0.0
    %488 = vmatmul.mubr.f32.gmra.mxu0 %v416
    %v489 = vpop.f32.mrf.mxu0
    %v490 = vadd.f32 0.0, %v489
    %v491 = vpop.f32.mrf.mxu0
    %492 = vdwg.mxu0
    %v493 = vld [vmem:[%s9] sm:$0xff]
    %494 = vrot.lane.b32.xlu0 %v279, 120
    %v495 = vpop.permute.xlu0 %494
    %496 = vrot.lane.b32.xlu0 %v284, 120
    %v497 = vpop.permute.xlu0 %496
    %498 = vrot.lane.b32.xlu0 %v279, 88
    %v499 = vpop.permute.xlu0 %498
    %500 = vrot.lane.b32.xlu0 %v284, 88
    %v501 = vpop.permute.xlu0 %500
    %v502 = vsel %vm295, %v495, 0
    %v504 = vsel %vm295, %v497, 0
    %v506 = vsel %vm295, %v499, 0
    %v508 = vsel %vm295, %v501, 0
    %510 = vmatprep.subr.mxu0 0.0
    %511 = vmatpush1.xpose.msra.mxu0 0.0
    %512 = vmatprep.subr.mxu0 0.0
    %513 = vmatpush1.xpose.msra.mxu0 0.0
    %514 = vmatprep.subr.mxu0 0.0
    %515 = vmatpush1.xpose.msra.mxu0 0.0
    %516 = vmatprep.subr.mxu0 0.0
    %517 = vmatpush1.xpose.msra.mxu0 0.0
    %518 = vmatprep.subr.mxu0 0.0
    %519 = vmatpush1.xpose.msra.mxu0 0.0
    %520 = vmatprep.subr.mxu0 0.0
    %521 = vmatpush1.xpose.msra.mxu0 0.0
    %522 = vmatprep.subr.mxu0 0.0
    %523 = vmatpush1.xpose.msra.mxu0 0.0
    %524 = vmatprep.subr.mxu0 0.0
    %525 = vmatpush1.xpose.msra.mxu0 0.0
    %526 = vmatprep.subr.mxu0 0.0
    %527 = vmatpush1.xpose.msra.mxu0 0.0
    %528 = vmatprep.subr.mxu0 0.0
    %529 = vmatpush1.xpose.msra.mxu0 0.0
    %530 = vmatprep.subr.mxu0 0.0
    %531 = vmatpush1.xpose.msra.mxu0 0.0
    %532 = vmatprep.subr.mxu0 0.0
    %533 = vmatpush1.xpose.msra.mxu0 0.0
    %534 = vmatprep.subr.mxu0 0.0
    %535 = vmatpush1.xpose.msra.mxu0 0.0
    %536 = vmatprep.subr.mxu0 0.0
    %537 = vmatpush1.xpose.msra.mxu0 0.0
    %538 = vmatprep.subr.mxu0 0.0
    %539 = vmatpush1.xpose.msra.mxu0 %v508
    %540 = vmatprep.subr.mxu0 0.0
    %541 = vmatpush1.xpose.msra.mxu0 %v506
    %542 = vmatprep.subr.mxu0 0.0
    %543 = vmatpush2.xpose.msra.mxu0 0.0
    %544 = vmatprep.subr.mxu0 0.0
    %545 = vmatpush2.xpose.msra.mxu0 0.0
    %546 = vmatprep.subr.mxu0 0.0
    %547 = vmatpush2.xpose.msra.mxu0 0.0
    %548 = vmatprep.subr.mxu0 0.0
    %549 = vmatpush2.xpose.msra.mxu0 0.0
    %550 = vmatprep.subr.mxu0 0.0
    %551 = vmatpush2.xpose.msra.mxu0 0.0
    %552 = vmatprep.subr.mxu0 0.0
    %553 = vmatpush2.xpose.msra.mxu0 0.0
    %554 = vmatprep.subr.mxu0 0.0
    %555 = vmatpush2.xpose.msra.mxu0 0.0
    %556 = vmatprep.subr.mxu0 0.0
    %557 = vmatpush2.xpose.msra.mxu0 0.0
    %558 = vmatprep.subr.mxu0 0.0
    %559 = vmatpush2.xpose.msra.mxu0 0.0
    %560 = vmatprep.subr.mxu0 0.0
    %561 = vmatpush2.xpose.msra.mxu0 0.0
    %562 = vmatprep.subr.mxu0 0.0
    %563 = vmatpush2.xpose.msra.mxu0 0.0
    %564 = vmatprep.subr.mxu0 0.0
    %565 = vmatpush2.xpose.msra.mxu0 0.0
    %566 = vmatprep.subr.mxu0 0.0
    %567 = vmatpush2.xpose.msra.mxu0 0.0
    %568 = vmatprep.subr.mxu0 0.0
    %569 = vmatpush2.xpose.msra.mxu0 0.0
    %570 = vmatprep.subr.mxu0 0.0
    %571 = vmatpush2.xpose.msra.mxu0 0.0
    %572 = vmatprep.subr.mxu0 0.0
    %573 = vmatpush2.xpose.msra.mxu0 0.0
    %574 = vmatprep.mubr.f32.mxu0 0.0
    %575 = vmatmul.mubr.f32.gmra.mxu0 %v502
    %v576 = vpop.f32.mrf.mxu0
    %v577 = vadd.f32 0.0, %v576
    %v578 = vpop.f32.mrf.mxu0
    %579 = vmatprep.mubr.f32.mxu0 0.0
    %580 = vmatmul.mubr.f32.gmra.mxu0 %v504
    %v581 = vpop.f32.mrf.mxu0
    %v582 = vadd.f32 0.0, %v581
    %v583 = vpop.f32.mrf.mxu0
    %584 = vdwg.mxu0
    %v585 = vmul.f32 %v577, 0.35355338
    %v586 = vmul.f32 %v582, 0.35355338
    %v587 = vadd.f32 %v585, %v287
    %v588 = vadd.f32 %v586, %v288
    %v589 = vsel %vm383, %v587, -inf
    %590 = vmax.xlane.f32.xlu0 %v589
    %v591 = vpop.xlane.xlu0 %590
    %v592 = vsel %vm383, %v588, -inf
    %593 = vmax.xlane.f32.xlu0 %v592
    %v594 = vpop.xlane.xlu0 %593
    %v595 = vsub.f32 %v587, %v591
    %v596 = vsub.f32 %v588, %v594
    %v597 = vmul.f32 %v595, 1.442695
    %v598 = vpow.pop %v597
    %v599 = vmul.f32 %v596, 1.442695
    %v600 = vpow.pop %v599
    %v601 = vsel %vm383, %v598, 0.0
    %602 = vadd.xlane.f32.xlu0 %v601
    %v603 = vpop.xlane.xlu0 %602
    %v604 = vsel %vm383, %v600, 0.0
    %605 = vadd.xlane.f32.xlu0 %v604
    %v606 = vpop.xlane.xlu0 %605
    %v607 = vrcp.pop %v603
    %v608 = vmul.f32 %v598, %v607
    %v609 = vrcp.pop %v606
    %v610 = vmul.f32 %v600, %v609
    %611 = vrot.lane.b32.xlu0 %v279, 56
    %v612 = vpop.permute.xlu0 %611
    %613 = vrot.lane.b32.xlu0 %v284, 56
    %v614 = vpop.permute.xlu0 %613
    %v618 = vsel %vm383, %v608, 0
    %v621 = vsel %vm383, %v610, 0
    %623 = vmatprep.subr.mxu0 0.0
    %624 = vmatpush1.msra.mxu0 0.0
    %625 = vmatprep.subr.mxu0 0.0
    %626 = vmatpush1.msra.mxu0 0.0
    %627 = vmatprep.subr.mxu0 0.0
    %628 = vmatpush1.msra.mxu0 0.0
    %629 = vmatprep.subr.mxu0 0.0
    %630 = vmatpush1.msra.mxu0 0.0
    %631 = vmatprep.subr.mxu0 0.0
    %632 = vmatpush1.msra.mxu0 0.0
    %633 = vmatprep.subr.mxu0 0.0
    %634 = vmatpush1.msra.mxu0 0.0
    %635 = vmatprep.subr.mxu0 0.0
    %636 = vmatpush1.msra.mxu0 0.0
    %637 = vmatprep.subr.mxu0 0.0
    %638 = vmatpush1.msra.mxu0 0.0
    %639 = vmatprep.subr.mxu0 0.0
    %640 = vmatpush1.msra.mxu0 0.0
    %641 = vmatprep.subr.mxu0 0.0
    %642 = vmatpush1.msra.mxu0 0.0
    %643 = vmatprep.subr.mxu0 0.0
    %644 = vmatpush1.msra.mxu0 0.0
    %645 = vmatprep.subr.mxu0 0.0
    %646 = vmatpush1.msra.mxu0 0.0
    %647 = vmatprep.subr.mxu0 0.0
    %648 = vmatpush1.msra.mxu0 0.0
    %649 = vmatprep.subr.mxu0 0.0
    %650 = vmatpush1.msra.mxu0 0.0
    %651 = vmatprep.subr.mxu0 0.0
    %652 = vmatpush1.msra.mxu0 %v614
    %653 = vmatprep.subr.mxu0 0.0
    %654 = vmatpush1.msra.mxu0 %v612
    %655 = vmatprep.subr.mxu0 0.0
    %656 = vmatpush2.msra.mxu0 0.0
    %657 = vmatprep.subr.mxu0 0.0
    %658 = vmatpush2.msra.mxu0 0.0
    %659 = vmatprep.subr.mxu0 0.0
    %660 = vmatpush2.msra.mxu0 0.0
    %661 = vmatprep.subr.mxu0 0.0
    %662 = vmatpush2.msra.mxu0 0.0
    %663 = vmatprep.subr.mxu0 0.0
    %664 = vmatpush2.msra.mxu0 0.0
    %665 = vmatprep.subr.mxu0 0.0
    %666 = vmatpush2.msra.mxu0 0.0
    %667 = vmatprep.subr.mxu0 0.0
    %668 = vmatpush2.msra.mxu0 0.0
    %669 = vmatprep.subr.mxu0 0.0
    %670 = vmatpush2.msra.mxu0 0.0
    %671 = vmatprep.subr.mxu0 0.0
    %672 = vmatpush2.msra.mxu0 0.0
    %673 = vmatprep.subr.mxu0 0.0
    %674 = vmatpush2.msra.mxu0 0.0
    %675 = vmatprep.subr.mxu0 0.0
    %676 = vmatpush2.msra.mxu0 0.0
    %677 = vmatprep.subr.mxu0 0.0
    %678 = vmatpush2.msra.mxu0 0.0
    %679 = vmatprep.subr.mxu0 0.0
    %680 = vmatpush2.msra.mxu0 0.0
    %681 = vmatprep.subr.mxu0 0.0
    %682 = vmatpush2.msra.mxu0 0.0
    %683 = vmatprep.subr.mxu0 0.0
    %684 = vmatpush2.msra.mxu0 0.0
    %685 = vmatprep.subr.mxu0 0.0
    %686 = vmatpush2.msra.mxu0 0.0
    %687 = vmatprep.mubr.f32.mxu0 0.0
    %688 = vmatmul.mubr.f32.gmra.mxu0 %v618
    %v689 = vpop.f32.mrf.mxu0
    %v690 = vadd.f32 0.0, %v689
    %v691 = vpop.f32.mrf.mxu0
    %692 = vmatprep.mubr.f32.mxu0 0.0
    %693 = vmatmul.mubr.f32.gmra.mxu0 %v621
    %v694 = vpop.f32.mrf.mxu0
    %v695 = vadd.f32 0.0, %v694
    %v696 = vpop.f32.mrf.mxu0
    %697 = vdwg.mxu0
    %v698 = vld [vmem:[%s9 + $0x8] sm:$0xff]
    %v700 = vsel %vm295, %v690, 0
    %v703 = vsel %vm295, %v695, 0
    %705 = vmatprep.subr.mxu0 0.0
    %706 = vmatpush1.msra.mxu0 0.0
    %707 = vmatprep.subr.mxu0 0.0
    %708 = vmatpush1.msra.mxu0 0.0
    %709 = vmatprep.subr.mxu0 0.0
    %710 = vmatpush1.msra.mxu0 0.0
    %711 = vmatprep.subr.mxu0 0.0
    %712 = vmatpush1.msra.mxu0 0.0
    %713 = vmatprep.subr.mxu0 0.0
    %714 = vmatpush1.msra.mxu0 0.0
    %715 = vmatprep.subr.mxu0 0.0
    %716 = vmatpush1.msra.mxu0 0.0
    %717 = vmatprep.subr.mxu0 0.0
    %718 = vmatpush1.msra.mxu0 0.0
    %719 = vmatprep.subr.mxu0 0.0
    %720 = vmatpush1.msra.mxu0 0.0
    %721 = vmatprep.subr.mxu0 0.0
    %722 = vmatpush1.msra.mxu0 0.0
    %723 = vmatprep.subr.mxu0 0.0
    %724 = vmatpush1.msra.mxu0 0.0
    %725 = vmatprep.subr.mxu0 0.0
    %726 = vmatpush1.msra.mxu0 0.0
    %727 = vmatprep.subr.mxu0 0.0
    %728 = vmatpush1.msra.mxu0 0.0
    %729 = vmatprep.subr.mxu0 0.0
    %730 = vmatpush1.msra.mxu0 0.0
    %731 = vmatprep.subr.mxu0 0.0
    %732 = vmatpush1.msra.mxu0 0.0
    %733 = vmatprep.subr.mxu0 0.0
    %734 = vmatpush1.msra.mxu0 0.0
    %735 = vmatprep.subr.mxu0 0.0
    %736 = vmatpush1.msra.mxu0 %v698
    %737 = vmatprep.subr.mxu0 0.0
    %738 = vmatpush2.msra.mxu0 0.0
    %739 = vmatprep.subr.mxu0 0.0
    %740 = vmatpush2.msra.mxu0 0.0
    %741 = vmatprep.subr.mxu0 0.0
    %742 = vmatpush2.msra.mxu0 0.0
    %743 = vmatprep.subr.mxu0 0.0
    %744 = vmatpush2.msra.mxu0 0.0
    %745 = vmatprep.subr.mxu0 0.0
    %746 = vmatpush2.msra.mxu0 0.0
    %747 = vmatprep.subr.mxu0 0.0
    %748 = vmatpush2.msra.mxu0 0.0
    %749 = vmatprep.subr.mxu0 0.0
    %750 = vmatpush2.msra.mxu0 0.0
    %751 = vmatprep.subr.mxu0 0.0
    %752 = vmatpush2.msra.mxu0 0.0
    %753 = vmatprep.subr.mxu0 0.0
    %754 = vmatpush2.msra.mxu0 0.0
    %755 = vmatprep.subr.mxu0 0.0
    %756 = vmatpush2.msra.mxu0 0.0
    %757 = vmatprep.subr.mxu0 0.0
    %758 = vmatpush2.msra.mxu0 0.0
    %759 = vmatprep.subr.mxu0 0.0
    %760 = vmatpush2.msra.mxu0 0.0
    %761 = vmatprep.subr.mxu0 0.0
    %762 = vmatpush2.msra.mxu0 0.0
    %763 = vmatprep.subr.mxu0 0.0
    %764 = vmatpush2.msra.mxu0 0.0
    %765 = vmatprep.subr.mxu0 0.0
    %766 = vmatpush2.msra.mxu0 0.0
    %767 = vmatprep.subr.mxu0 0.0
    %768 = vmatpush2.msra.mxu0 0.0
    %769 = vmatprep.mubr.f32.mxu0 0.0
    %770 = vmatmul.mubr.f32.gmra.mxu0 %v700
    %v771 = vpop.f32.mrf.mxu0
    %v772 = vadd.f32 0.0, %v771
    %v773 = vpop.f32.mrf.mxu0
    %774 = vmatprep.mubr.f32.mxu0 0.0
    %775 = vmatmul.mubr.f32.gmra.mxu0 %v703
    %v776 = vpop.f32.mrf.mxu0
    %v777 = vadd.f32 0.0, %v776
    %v778 = vpop.f32.mrf.mxu0
    %779 = vdwg.mxu0
    %v781 = vsel %vm295, %v485, 0
    %v784 = vsel %vm295, %v490, 0
    %786 = vmatprep.subr.mxu0 0.0
    %787 = vmatpush1.msra.mxu0 0.0
    %788 = vmatprep.subr.mxu0 0.0
    %789 = vmatpush1.msra.mxu0 0.0
    %790 = vmatprep.subr.mxu0 0.0
    %791 = vmatpush1.msra.mxu0 0.0
    %792 = vmatprep.subr.mxu0 0.0
    %793 = vmatpush1.msra.mxu0 0.0
    %794 = vmatprep.subr.mxu0 0.0
    %795 = vmatpush1.msra.mxu0 0.0
    %796 = vmatprep.subr.mxu0 0.0
    %797 = vmatpush1.msra.mxu0 0.0
    %798 = vmatprep.subr.mxu0 0.0
    %799 = vmatpush1.msra.mxu0 0.0
    %800 = vmatprep.subr.mxu0 0.0
    %801 = vmatpush1.msra.mxu0 0.0
    %802 = vmatprep.subr.mxu0 0.0
    %803 = vmatpush1.msra.mxu0 0.0
    %804 = vmatprep.subr.mxu0 0.0
    %805 = vmatpush1.msra.mxu0 0.0
    %806 = vmatprep.subr.mxu0 0.0
    %807 = vmatpush1.msra.mxu0 0.0
    %808 = vmatprep.subr.mxu0 0.0
    %809 = vmatpush1.msra.mxu0 0.0
    %810 = vmatprep.subr.mxu0 0.0
    %811 = vmatpush1.msra.mxu0 0.0
    %812 = vmatprep.subr.mxu0 0.0
    %813 = vmatpush1.msra.mxu0 0.0
    %814 = vmatprep.subr.mxu0 0.0
    %815 = vmatpush1.msra.mxu0 0.0
    %816 = vmatprep.subr.mxu0 0.0
    %817 = vmatpush1.msra.mxu0 %v493
    %818 = vmatprep.subr.mxu0 0.0
    %819 = vmatpush2.msra.mxu0 0.0
    %820 = vmatprep.subr.mxu0 0.0
    %821 = vmatpush2.msra.mxu0 0.0
    %822 = vmatprep.subr.mxu0 0.0
    %823 = vmatpush2.msra.mxu0 0.0
    %824 = vmatprep.subr.mxu0 0.0
    %825 = vmatpush2.msra.mxu0 0.0
    %826 = vmatprep.subr.mxu0 0.0
    %827 = vmatpush2.msra.mxu0 0.0
    %828 = vmatprep.subr.mxu0 0.0
    %829 = vmatpush2.msra.mxu0 0.0
    %830 = vmatprep.subr.mxu0 0.0
    %831 = vmatpush2.msra.mxu0 0.0
    %832 = vmatprep.subr.mxu0 0.0
    %833 = vmatpush2.msra.mxu0 0.0
    %834 = vmatprep.subr.mxu0 0.0
    %835 = vmatpush2.msra.mxu0 0.0
    %836 = vmatprep.subr.mxu0 0.0
    %837 = vmatpush2.msra.mxu0 0.0
    %838 = vmatprep.subr.mxu0 0.0
    %839 = vmatpush2.msra.mxu0 0.0
    %840 = vmatprep.subr.mxu0 0.0
    %841 = vmatpush2.msra.mxu0 0.0
    %842 = vmatprep.subr.mxu0 0.0
    %843 = vmatpush2.msra.mxu0 0.0
    %844 = vmatprep.subr.mxu0 0.0
    %845 = vmatpush2.msra.mxu0 0.0
    %846 = vmatprep.subr.mxu0 0.0
    %847 = vmatpush2.msra.mxu0 0.0
    %848 = vmatprep.subr.mxu0 0.0
    %849 = vmatpush2.msra.mxu0 0.0
    %850 = vmatprep.mubr.f32.mxu0 0.0
    %851 = vmatmul.mubr.f32.gmra.mxu0 %v781
    %v852 = vpop.f32.mrf.mxu0
    %v853 = vadd.f32 %v772, %v852
    %v854 = vpop.f32.mrf.mxu0
    %855 = vmatprep.mubr.f32.mxu0 0.0
    %856 = vmatmul.mubr.f32.gmra.mxu0 %v784
    %v857 = vpop.f32.mrf.mxu0
    %v858 = vadd.f32 %v777, %v857
    %v859 = vpop.f32.mrf.mxu0
    %860 = vdwg.mxu0
    %861 = vrot.lane.b32.xlu0 %v279, 112
    %v862 = vpop.permute.xlu0 %861
    %863 = vrot.lane.b32.xlu0 %v284, 112
    %v864 = vpop.permute.xlu0 %863
    %865 = vrot.lane.b32.xlu0 %v279, 80
    %v866 = vpop.permute.xlu0 %865
    %867 = vrot.lane.b32.xlu0 %v284, 80
    %v868 = vpop.permute.xlu0 %867
    %v869 = vsel %vm295, %v862, 0
    %v871 = vsel %vm295, %v864, 0
    %v873 = vsel %vm295, %v866, 0
    %v875 = vsel %vm295, %v868, 0
    %877 = vmatprep.subr.mxu0 0.0
    %878 = vmatpush1.xpose.msra.mxu0 0.0
    %879 = vmatprep.subr.mxu0 0.0
    %880 = vmatpush1.xpose.msra.mxu0 0.0
    %881 = vmatprep.subr.mxu0 0.0
    %882 = vmatpush1.xpose.msra.mxu0 0.0
    %883 = vmatprep.subr.mxu0 0.0
    %884 = vmatpush1.xpose.msra.mxu0 0.0
    %885 = vmatprep.subr.mxu0 0.0
    %886 = vmatpush1.xpose.msra.mxu0 0.0
    %887 = vmatprep.subr.mxu0 0.0
    %888 = vmatpush1.xpose.msra.mxu0 0.0
    %889 = vmatprep.subr.mxu0 0.0
    %890 = vmatpush1.xpose.msra.mxu0 0.0
    %891 = vmatprep.subr.mxu0 0.0
    %892 = vmatpush1.xpose.msra.mxu0 0.0
    %893 = vmatprep.subr.mxu0 0.0
    %894 = vmatpush1.xpose.msra.mxu0 0.0
    %895 = vmatprep.subr.mxu0 0.0
    %896 = vmatpush1.xpose.msra.mxu0 0.0
    %897 = vmatprep.subr.mxu0 0.0
    %898 = vmatpush1.xpose.msra.mxu0 0.0
    %899 = vmatprep.subr.mxu0 0.0
    %900 = vmatpush1.xpose.msra.mxu0 0.0
    %901 = vmatprep.subr.mxu0 0.0
    %902 = vmatpush1.xpose.msra.mxu0 0.0
    %903 = vmatprep.subr.mxu0 0.0
    %904 = vmatpush1.xpose.msra.mxu0 0.0
    %905 = vmatprep.subr.mxu0 0.0
    %906 = vmatpush1.xpose.msra.mxu0 %v875
    %907 = vmatprep.subr.mxu0 0.0
    %908 = vmatpush1.xpose.msra.mxu0 %v873
    %909 = vmatprep.subr.mxu0 0.0
    %910 = vmatpush2.xpose.msra.mxu0 0.0
    %911 = vmatprep.subr.mxu0 0.0
    %912 = vmatpush2.xpose.msra.mxu0 0.0
    %913 = vmatprep.subr.mxu0 0.0
    %914 = vmatpush2.xpose.msra.mxu0 0.0
    %915 = vmatprep.subr.mxu0 0.0
    %916 = vmatpush2.xpose.msra.mxu0 0.0
    %917 = vmatprep.subr.mxu0 0.0
    %918 = vmatpush2.xpose.msra.mxu0 0.0
    %919 = vmatprep.subr.mxu0 0.0
    %920 = vmatpush2.xpose.msra.mxu0 0.0
    %921 = vmatprep.subr.mxu0 0.0
    %922 = vmatpush2.xpose.msra.mxu0 0.0
    %923 = vmatprep.subr.mxu0 0.0
    %924 = vmatpush2.xpose.msra.mxu0 0.0
    %925 = vmatprep.subr.mxu0 0.0
    %926 = vmatpush2.xpose.msra.mxu0 0.0
    %927 = vmatprep.subr.mxu0 0.0
    %928 = vmatpush2.xpose.msra.mxu0 0.0
    %929 = vmatprep.subr.mxu0 0.0
    %930 = vmatpush2.xpose.msra.mxu0 0.0
    %931 = vmatprep.subr.mxu0 0.0
    %932 = vmatpush2.xpose.msra.mxu0 0.0
    %933 = vmatprep.subr.mxu0 0.0
    %934 = vmatpush2.xpose.msra.mxu0 0.0
    %935 = vmatprep.subr.mxu0 0.0
    %936 = vmatpush2.xpose.msra.mxu0 0.0
    %937 = vmatprep.subr.mxu0 0.0
    %938 = vmatpush2.xpose.msra.mxu0 0.0
    %939 = vmatprep.subr.mxu0 0.0
    %940 = vmatpush2.xpose.msra.mxu0 0.0
    %941 = vmatprep.mubr.f32.mxu0 0.0
    %942 = vmatmul.mubr.f32.gmra.mxu0 %v869
    %v943 = vpop.f32.mrf.mxu0
    %v944 = vadd.f32 0.0, %v943
    %v945 = vpop.f32.mrf.mxu0
    %946 = vmatprep.mubr.f32.mxu0 0.0
    %947 = vmatmul.mubr.f32.gmra.mxu0 %v871
    %v948 = vpop.f32.mrf.mxu0
    %v949 = vadd.f32 0.0, %v948
    %v950 = vpop.f32.mrf.mxu0
    %951 = vdwg.mxu0
    %v952 = vmul.f32 %v944, 0.35355338
    %v953 = vmul.f32 %v949, 0.35355338
    %v954 = vadd.f32 %v952, %v287
    %v955 = vadd.f32 %v953, %v288
    %v956 = vsel %vm383, %v954, -inf
    %957 = vmax.xlane.f32.xlu0 %v956
    %v958 = vpop.xlane.xlu0 %957
    %v959 = vsel %vm383, %v955, -inf
    %960 = vmax.xlane.f32.xlu0 %v959
    %v961 = vpop.xlane.xlu0 %960
    %v962 = vsub.f32 %v954, %v958
    %v963 = vsub.f32 %v955, %v961
    %v964 = vmul.f32 %v962, 1.442695
    %v965 = vpow.pop %v964
    %v966 = vmul.f32 %v963, 1.442695
    %v967 = vpow.pop %v966
    %v968 = vsel %vm383, %v965, 0.0
    %969 = vadd.xlane.f32.xlu0 %v968
    %v970 = vpop.xlane.xlu0 %969
    %v971 = vsel %vm383, %v967, 0.0
    %972 = vadd.xlane.f32.xlu0 %v971
    %v973 = vpop.xlane.xlu0 %972
    %v974 = vrcp.pop %v970
    %v975 = vmul.f32 %v965, %v974
    %v976 = vrcp.pop %v973
    %v977 = vmul.f32 %v967, %v976
    %978 = vrot.lane.b32.xlu0 %v279, 48
    %v979 = vpop.permute.xlu0 %978
    %980 = vrot.lane.b32.xlu0 %v284, 48
    %v981 = vpop.permute.xlu0 %980
    %v985 = vsel %vm383, %v975, 0
    %v988 = vsel %vm383, %v977, 0
    %990 = vmatprep.subr.mxu0 0.0
    %991 = vmatpush1.msra.mxu0 0.0
    %992 = vmatprep.subr.mxu0 0.0
    %993 = vmatpush1.msra.mxu0 0.0
    %994 = vmatprep.subr.mxu0 0.0
    %995 = vmatpush1.msra.mxu0 0.0
    %996 = vmatprep.subr.mxu0 0.0
    %997 = vmatpush1.msra.mxu0 0.0
    %998 = vmatprep.subr.mxu0 0.0
    %999 = vmatpush1.msra.mxu0 0.0
    %1000 = vmatprep.subr.mxu0 0.0
    %1001 = vmatpush1.msra.mxu0 0.0
    %1002 = vmatprep.subr.mxu0 0.0
    %1003 = vmatpush1.msra.mxu0 0.0
    %1004 = vmatprep.subr.mxu0 0.0
    %1005 = vmatpush1.msra.mxu0 0.0
    %1006 = vmatprep.subr.mxu0 0.0
    %1007 = vmatpush1.msra.mxu0 0.0
    %1008 = vmatprep.subr.mxu0 0.0
    %1009 = vmatpush1.msra.mxu0 0.0
    %1010 = vmatprep.subr.mxu0 0.0
    %1011 = vmatpush1.msra.mxu0 0.0
    %1012 = vmatprep.subr.mxu0 0.0
    %1013 = vmatpush1.msra.mxu0 0.0
    %1014 = vmatprep.subr.mxu0 0.0
    %1015 = vmatpush1.msra.mxu0 0.0
    %1016 = vmatprep.subr.mxu0 0.0
    %1017 = vmatpush1.msra.mxu0 0.0
    %1018 = vmatprep.subr.mxu0 0.0
    %1019 = vmatpush1.msra.mxu0 %v981
    %1020 = vmatprep.subr.mxu0 0.0
    %1021 = vmatpush1.msra.mxu0 %v979
    %1022 = vmatprep.subr.mxu0 0.0
    %1023 = vmatpush2.msra.mxu0 0.0
    %1024 = vmatprep.subr.mxu0 0.0
    %1025 = vmatpush2.msra.mxu0 0.0
    %1026 = vmatprep.subr.mxu0 0.0
    %1027 = vmatpush2.msra.mxu0 0.0
    %1028 = vmatprep.subr.mxu0 0.0
    %1029 = vmatpush2.msra.mxu0 0.0
    %1030 = vmatprep.subr.mxu0 0.0
    %1031 = vmatpush2.msra.mxu0 0.0
    %1032 = vmatprep.subr.mxu0 0.0
    %1033 = vmatpush2.msra.mxu0 0.0
    %1034 = vmatprep.subr.mxu0 0.0
    %1035 = vmatpush2.msra.mxu0 0.0
    %1036 = vmatprep.subr.mxu0 0.0
    %1037 = vmatpush2.msra.mxu0 0.0
    %1038 = vmatprep.subr.mxu0 0.0
    %1039 = vmatpush2.msra.mxu0 0.0
    %1040 = vmatprep.subr.mxu0 0.0
    %1041 = vmatpush2.msra.mxu0 0.0
    %1042 = vmatprep.subr.mxu0 0.0
    %1043 = vmatpush2.msra.mxu0 0.0
    %1044 = vmatprep.subr.mxu0 0.0
    %1045 = vmatpush2.msra.mxu0 0.0
    %1046 = vmatprep.subr.mxu0 0.0
    %1047 = vmatpush2.msra.mxu0 0.0
    %1048 = vmatprep.subr.mxu0 0.0
    %1049 = vmatpush2.msra.mxu0 0.0
    %1050 = vmatprep.subr.mxu0 0.0
    %1051 = vmatpush2.msra.mxu0 0.0
    %1052 = vmatprep.subr.mxu0 0.0
    %1053 = vmatpush2.msra.mxu0 0.0
    %1054 = vmatprep.mubr.f32.mxu0 0.0
    %1055 = vmatmul.mubr.f32.gmra.mxu0 %v985
    %v1056 = vpop.f32.mrf.mxu0
    %v1057 = vadd.f32 0.0, %v1056
    %v1058 = vpop.f32.mrf.mxu0
    %1059 = vmatprep.mubr.f32.mxu0 0.0
    %1060 = vmatmul.mubr.f32.gmra.mxu0 %v988
    %v1061 = vpop.f32.mrf.mxu0
    %v1062 = vadd.f32 0.0, %v1061
    %v1063 = vpop.f32.mrf.mxu0
    %1064 = vdwg.mxu0
    %v1065 = vld [vmem:[%s9 + $0x10] sm:$0xff]
    %v1067 = vsel %vm295, %v1057, 0
    %v1070 = vsel %vm295, %v1062, 0
    %1072 = vmatprep.subr.mxu0 0.0
    %1073 = vmatpush1.msra.mxu0 0.0
    %1074 = vmatprep.subr.mxu0 0.0
    %1075 = vmatpush1.msra.mxu0 0.0
    %1076 = vmatprep.subr.mxu0 0.0
    %1077 = vmatpush1.msra.mxu0 0.0
    %1078 = vmatprep.subr.mxu0 0.0
    %1079 = vmatpush1.msra.mxu0 0.0
    %1080 = vmatprep.subr.mxu0 0.0
    %1081 = vmatpush1.msra.mxu0 0.0
    %1082 = vmatprep.subr.mxu0 0.0
    %1083 = vmatpush1.msra.mxu0 0.0
    %1084 = vmatprep.subr.mxu0 0.0
    %1085 = vmatpush1.msra.mxu0 0.0
    %1086 = vmatprep.subr.mxu0 0.0
    %1087 = vmatpush1.msra.mxu0 0.0
    %1088 = vmatprep.subr.mxu0 0.0
    %1089 = vmatpush1.msra.mxu0 0.0
    %1090 = vmatprep.subr.mxu0 0.0
    %1091 = vmatpush1.msra.mxu0 0.0
    %1092 = vmatprep.subr.mxu0 0.0
    %1093 = vmatpush1.msra.mxu0 0.0
    %1094 = vmatprep.subr.mxu0 0.0
    %1095 = vmatpush1.msra.mxu0 0.0
    %1096 = vmatprep.subr.mxu0 0.0
    %1097 = vmatpush1.msra.mxu0 0.0
    %1098 = vmatprep.subr.mxu0 0.0
    %1099 = vmatpush1.msra.mxu0 0.0
    %1100 = vmatprep.subr.mxu0 0.0
    %1101 = vmatpush1.msra.mxu0 0.0
    %1102 = vmatprep.subr.mxu0 0.0
    %1103 = vmatpush1.msra.mxu0 %v1065
    %1104 = vmatprep.subr.mxu0 0.0
    %1105 = vmatpush2.msra.mxu0 0.0
    %1106 = vmatprep.subr.mxu0 0.0
    %1107 = vmatpush2.msra.mxu0 0.0
    %1108 = vmatprep.subr.mxu0 0.0
    %1109 = vmatpush2.msra.mxu0 0.0
    %1110 = vmatprep.subr.mxu0 0.0
    %1111 = vmatpush2.msra.mxu0 0.0
    %1112 = vmatprep.subr.mxu0 0.0
    %1113 = vmatpush2.msra.mxu0 0.0
    %1114 = vmatprep.subr.mxu0 0.0
    %1115 = vmatpush2.msra.mxu0 0.0
    %1116 = vmatprep.subr.mxu0 0.0
    %1117 = vmatpush2.msra.mxu0 0.0
    %1118 = vmatprep.subr.mxu0 0.0
    %1119 = vmatpush2.msra.mxu0 0.0
    %1120 = vmatprep.subr.mxu0 0.0
    %1121 = vmatpush2.msra.mxu0 0.0
    %1122 = vmatprep.subr.mxu0 0.0
    %1123 = vmatpush2.msra.mxu0 0.0
    %1124 = vmatprep.subr.mxu0 0.0
    %1125 = vmatpush2.msra.mxu0 0.0
    %1126 = vmatprep.subr.mxu0 0.0
    %1127 = vmatpush2.msra.mxu0 0.0
    %1128 = vmatprep.subr.mxu0 0.0
    %1129 = vmatpush2.msra.mxu0 0.0
    %1130 = vmatprep.subr.mxu0 0.0
    %1131 = vmatpush2.msra.mxu0 0.0
    %1132 = vmatprep.subr.mxu0 0.0
    %1133 = vmatpush2.msra.mxu0 0.0
    %1134 = vmatprep.subr.mxu0 0.0
    %1135 = vmatpush2.msra.mxu0 0.0
    %1136 = vmatprep.mubr.f32.mxu0 0.0
    %1137 = vmatmul.mubr.f32.gmra.mxu0 %v1067
    %v1138 = vpop.f32.mrf.mxu0
    %v1139 = vadd.f32 0.0, %v1138
    %v1140 = vpop.f32.mrf.mxu0
    %1141 = vmatprep.mubr.f32.mxu0 0.0
    %1142 = vmatmul.mubr.f32.gmra.mxu0 %v1070
    %v1143 = vpop.f32.mrf.mxu0
    %v1144 = vadd.f32 0.0, %v1143
    %v1145 = vpop.f32.mrf.mxu0
    %1146 = vdwg.mxu0
    %v1147 = vadd.f32 %v853, %v1139
    %v1148 = vadd.f32 %v858, %v1144
    %1149 = vrot.lane.b32.xlu0 %v279, 104
    %v1150 = vpop.permute.xlu0 %1149
    %1151 = vrot.lane.b32.xlu0 %v284, 104
    %v1152 = vpop.permute.xlu0 %1151
    %1153 = vrot.lane.b32.xlu0 %v279, 72
    %v1154 = vpop.permute.xlu0 %1153
    %1155 = vrot.lane.b32.xlu0 %v284, 72
    %v1156 = vpop.permute.xlu0 %1155
    %v1157 = vsel %vm295, %v1150, 0
    %v1159 = vsel %vm295, %v1152, 0
    %v1161 = vsel %vm295, %v1154, 0
    %v1163 = vsel %vm295, %v1156, 0
    %1165 = vmatprep.subr.mxu0 0.0
    %1166 = vmatpush1.xpose.msra.mxu0 0.0
    %1167 = vmatprep.subr.mxu0 0.0
    %1168 = vmatpush1.xpose.msra.mxu0 0.0
    %1169 = vmatprep.subr.mxu0 0.0
    %1170 = vmatpush1.xpose.msra.mxu0 0.0
    %1171 = vmatprep.subr.mxu0 0.0
    %1172 = vmatpush1.xpose.msra.mxu0 0.0
    %1173 = vmatprep.subr.mxu0 0.0
    %1174 = vmatpush1.xpose.msra.mxu0 0.0
    %1175 = vmatprep.subr.mxu0 0.0
    %1176 = vmatpush1.xpose.msra.mxu0 0.0
    %1177 = vmatprep.subr.mxu0 0.0
    %1178 = vmatpush1.xpose.msra.mxu0 0.0
    %1179 = vmatprep.subr.mxu0 0.0
    %1180 = vmatpush1.xpose.msra.mxu0 0.0
    %1181 = vmatprep.subr.mxu0 0.0
    %1182 = vmatpush1.xpose.msra.mxu0 0.0
    %1183 = vmatprep.subr.mxu0 0.0
    %1184 = vmatpush1.xpose.msra.mxu0 0.0
    %1185 = vmatprep.subr.mxu0 0.0
    %1186 = vmatpush1.xpose.msra.mxu0 0.0
    %1187 = vmatprep.subr.mxu0 0.0
    %1188 = vmatpush1.xpose.msra.mxu0 0.0
    %1189 = vmatprep.subr.mxu0 0.0
    %1190 = vmatpush1.xpose.msra.mxu0 0.0
    %1191 = vmatprep.subr.mxu0 0.0
    %1192 = vmatpush1.xpose.msra.mxu0 0.0
    %1193 = vmatprep.subr.mxu0 0.0
    %1194 = vmatpush1.xpose.msra.mxu0 %v1163
    %1195 = vmatprep.subr.mxu0 0.0
    %1196 = vmatpush1.xpose.msra.mxu0 %v1161
    %1197 = vmatprep.subr.mxu0 0.0
    %1198 = vmatpush2.xpose.msra.mxu0 0.0
    %1199 = vmatprep.subr.mxu0 0.0
    %1200 = vmatpush2.xpose.msra.mxu0 0.0
    %1201 = vmatprep.subr.mxu0 0.0
    %1202 = vmatpush2.xpose.msra.mxu0 0.0
    %1203 = vmatprep.subr.mxu0 0.0
    %1204 = vmatpush2.xpose.msra.mxu0 0.0
    %1205 = vmatprep.subr.mxu0 0.0
    %1206 = vmatpush2.xpose.msra.mxu0 0.0
    %1207 = vmatprep.subr.mxu0 0.0
    %1208 = vmatpush2.xpose.msra.mxu0 0.0
    %1209 = vmatprep.subr.mxu0 0.0
    %1210 = vmatpush2.xpose.msra.mxu0 0.0
    %1211 = vmatprep.subr.mxu0 0.0
    %1212 = vmatpush2.xpose.msra.mxu0 0.0
    %1213 = vmatprep.subr.mxu0 0.0
    %1214 = vmatpush2.xpose.msra.mxu0 0.0
    %1215 = vmatprep.subr.mxu0 0.0
    %1216 = vmatpush2.xpose.msra.mxu0 0.0
    %1217 = vmatprep.subr.mxu0 0.0
    %1218 = vmatpush2.xpose.msra.mxu0 0.0
    %1219 = vmatprep.subr.mxu0 0.0
    %1220 = vmatpush2.xpose.msra.mxu0 0.0
    %1221 = vmatprep.subr.mxu0 0.0
    %1222 = vmatpush2.xpose.msra.mxu0 0.0
    %1223 = vmatprep.subr.mxu0 0.0
    %1224 = vmatpush2.xpose.msra.mxu0 0.0
    %1225 = vmatprep.subr.mxu0 0.0
    %1226 = vmatpush2.xpose.msra.mxu0 0.0
    %1227 = vmatprep.subr.mxu0 0.0
    %1228 = vmatpush2.xpose.msra.mxu0 0.0
    %1229 = vmatprep.mubr.f32.mxu0 0.0
    %1230 = vmatmul.mubr.f32.gmra.mxu0 %v1157
    %v1231 = vpop.f32.mrf.mxu0
    %v1232 = vadd.f32 0.0, %v1231
    %v1233 = vpop.f32.mrf.mxu0
    %1234 = vmatprep.mubr.f32.mxu0 0.0
    %1235 = vmatmul.mubr.f32.gmra.mxu0 %v1159
    %v1236 = vpop.f32.mrf.mxu0
    %v1237 = vadd.f32 0.0, %v1236
    %v1238 = vpop.f32.mrf.mxu0
    %1239 = vdwg.mxu0
    %v1240 = vmul.f32 %v1232, 0.35355338
    %v1241 = vmul.f32 %v1237, 0.35355338
    %v1242 = vadd.f32 %v1240, %v287
    %v1243 = vadd.f32 %v1241, %v288
    %v1244 = vsel %vm383, %v1242, -inf
    %1245 = vmax.xlane.f32.xlu0 %v1244
    %v1246 = vpop.xlane.xlu0 %1245
    %v1247 = vsel %vm383, %v1243, -inf
    %1248 = vmax.xlane.f32.xlu0 %v1247
    %v1249 = vpop.xlane.xlu0 %1248
    %v1250 = vsub.f32 %v1242, %v1246
    %v1251 = vsub.f32 %v1243, %v1249
    %v1252 = vmul.f32 %v1250, 1.442695
    %v1253 = vpow.pop %v1252
    %v1254 = vmul.f32 %v1251, 1.442695
    %v1255 = vpow.pop %v1254
    %v1256 = vsel %vm383, %v1253, 0.0
    %1257 = vadd.xlane.f32.xlu0 %v1256
    %v1258 = vpop.xlane.xlu0 %1257
    %v1259 = vsel %vm383, %v1255, 0.0
    %1260 = vadd.xlane.f32.xlu0 %v1259
    %v1261 = vpop.xlane.xlu0 %1260
    %v1262 = vrcp.pop %v1258
    %v1263 = vmul.f32 %v1253, %v1262
    %v1264 = vrcp.pop %v1261
    %v1265 = vmul.f32 %v1255, %v1264
    %1266 = vrot.lane.b32.xlu0 %v279, 40
    %v1267 = vpop.permute.xlu0 %1266
    %1268 = vrot.lane.b32.xlu0 %v284, 40
    %v1269 = vpop.permute.xlu0 %1268
    %v1273 = vsel %vm383, %v1263, 0
    %v1276 = vsel %vm383, %v1265, 0
    %1278 = vmatprep.subr.mxu0 0.0
    %1279 = vmatpush1.msra.mxu0 0.0
    %1280 = vmatprep.subr.mxu0 0.0
    %1281 = vmatpush1.msra.mxu0 0.0
    %1282 = vmatprep.subr.mxu0 0.0
    %1283 = vmatpush1.msra.mxu0 0.0
    %1284 = vmatprep.subr.mxu0 0.0
    %1285 = vmatpush1.msra.mxu0 0.0
    %1286 = vmatprep.subr.mxu0 0.0
    %1287 = vmatpush1.msra.mxu0 0.0
    %1288 = vmatprep.subr.mxu0 0.0
    %1289 = vmatpush1.msra.mxu0 0.0
    %1290 = vmatprep.subr.mxu0 0.0
    %1291 = vmatpush1.msra.mxu0 0.0
    %1292 = vmatprep.subr.mxu0 0.0
    %1293 = vmatpush1.msra.mxu0 0.0
    %1294 = vmatprep.subr.mxu0 0.0
    %1295 = vmatpush1.msra.mxu0 0.0
    %1296 = vmatprep.subr.mxu0 0.0
    %1297 = vmatpush1.msra.mxu0 0.0
    %1298 = vmatprep.subr.mxu0 0.0
    %1299 = vmatpush1.msra.mxu0 0.0
    %1300 = vmatprep.subr.mxu0 0.0
    %1301 = vmatpush1.msra.mxu0 0.0
    %1302 = vmatprep.subr.mxu0 0.0
    %1303 = vmatpush1.msra.mxu0 0.0
    %1304 = vmatprep.subr.mxu0 0.0
    %1305 = vmatpush1.msra.mxu0 0.0
    %1306 = vmatprep.subr.mxu0 0.0
    %1307 = vmatpush1.msra.mxu0 %v1269
    %1308 = vmatprep.subr.mxu0 0.0
    %1309 = vmatpush1.msra.mxu0 %v1267
    %1310 = vmatprep.subr.mxu0 0.0
    %1311 = vmatpush2.msra.mxu0 0.0
    %1312 = vmatprep.subr.mxu0 0.0
    %1313 = vmatpush2.msra.mxu0 0.0
    %1314 = vmatprep.subr.mxu0 0.0
    %1315 = vmatpush2.msra.mxu0 0.0
    %1316 = vmatprep.subr.mxu0 0.0
    %1317 = vmatpush2.msra.mxu0 0.0
    %1318 = vmatprep.subr.mxu0 0.0
    %1319 = vmatpush2.msra.mxu0 0.0
    %1320 = vmatprep.subr.mxu0 0.0
    %1321 = vmatpush2.msra.mxu0 0.0
    %1322 = vmatprep.subr.mxu0 0.0
    %1323 = vmatpush2.msra.mxu0 0.0
    %1324 = vmatprep.subr.mxu0 0.0
    %1325 = vmatpush2.msra.mxu0 0.0
    %1326 = vmatprep.subr.mxu0 0.0
    %1327 = vmatpush2.msra.mxu0 0.0
    %1328 = vmatprep.subr.mxu0 0.0
    %1329 = vmatpush2.msra.mxu0 0.0
    %1330 = vmatprep.subr.mxu0 0.0
    %1331 = vmatpush2.msra.mxu0 0.0
    %1332 = vmatprep.subr.mxu0 0.0
    %1333 = vmatpush2.msra.mxu0 0.0
    %1334 = vmatprep.subr.mxu0 0.0
    %1335 = vmatpush2.msra.mxu0 0.0
    %1336 = vmatprep.subr.mxu0 0.0
    %1337 = vmatpush2.msra.mxu0 0.0
    %1338 = vmatprep.subr.mxu0 0.0
    %1339 = vmatpush2.msra.mxu0 0.0
    %1340 = vmatprep.subr.mxu0 0.0
    %1341 = vmatpush2.msra.mxu0 0.0
    %1342 = vmatprep.mubr.f32.mxu0 0.0
    %1343 = vmatmul.mubr.f32.gmra.mxu0 %v1273
    %v1344 = vpop.f32.mrf.mxu0
    %v1345 = vadd.f32 0.0, %v1344
    %v1346 = vpop.f32.mrf.mxu0
    %1347 = vmatprep.mubr.f32.mxu0 0.0
    %1348 = vmatmul.mubr.f32.gmra.mxu0 %v1276
    %v1349 = vpop.f32.mrf.mxu0
    %v1350 = vadd.f32 0.0, %v1349
    %v1351 = vpop.f32.mrf.mxu0
    %1352 = vdwg.mxu0
    %v1353 = vld [vmem:[%s9 + $0x18] sm:$0xff]
    %v1355 = vsel %vm295, %v1345, 0
    %v1358 = vsel %vm295, %v1350, 0
    %1360 = vmatprep.subr.mxu0 0.0
    %1361 = vmatpush1.msra.mxu0 0.0
    %1362 = vmatprep.subr.mxu0 0.0
    %1363 = vmatpush1.msra.mxu0 0.0
    %1364 = vmatprep.subr.mxu0 0.0
    %1365 = vmatpush1.msra.mxu0 0.0
    %1366 = vmatprep.subr.mxu0 0.0
    %1367 = vmatpush1.msra.mxu0 0.0
    %1368 = vmatprep.subr.mxu0 0.0
    %1369 = vmatpush1.msra.mxu0 0.0
    %1370 = vmatprep.subr.mxu0 0.0
    %1371 = vmatpush1.msra.mxu0 0.0
    %1372 = vmatprep.subr.mxu0 0.0
    %1373 = vmatpush1.msra.mxu0 0.0
    %1374 = vmatprep.subr.mxu0 0.0
    %1375 = vmatpush1.msra.mxu0 0.0
    %1376 = vmatprep.subr.mxu0 0.0
    %1377 = vmatpush1.msra.mxu0 0.0
    %1378 = vmatprep.subr.mxu0 0.0
    %1379 = vmatpush1.msra.mxu0 0.0
    %1380 = vmatprep.subr.mxu0 0.0
    %1381 = vmatpush1.msra.mxu0 0.0
    %1382 = vmatprep.subr.mxu0 0.0
    %1383 = vmatpush1.msra.mxu0 0.0
    %1384 = vmatprep.subr.mxu0 0.0
    %1385 = vmatpush1.msra.mxu0 0.0
    %1386 = vmatprep.subr.mxu0 0.0
    %1387 = vmatpush1.msra.mxu0 0.0
    %1388 = vmatprep.subr.mxu0 0.0
    %1389 = vmatpush1.msra.mxu0 0.0
    %1390 = vmatprep.subr.mxu0 0.0
    %1391 = vmatpush1.msra.mxu0 %v1353
    %1392 = vmatprep.subr.mxu0 0.0
    %1393 = vmatpush2.msra.mxu0 0.0
    %1394 = vmatprep.subr.mxu0 0.0
    %1395 = vmatpush2.msra.mxu0 0.0
    %1396 = vmatprep.subr.mxu0 0.0
    %1397 = vmatpush2.msra.mxu0 0.0
    %1398 = vmatprep.subr.mxu0 0.0
    %1399 = vmatpush2.msra.mxu0 0.0
    %1400 = vmatprep.subr.mxu0 0.0
    %1401 = vmatpush2.msra.mxu0 0.0
    %1402 = vmatprep.subr.mxu0 0.0
    %1403 = vmatpush2.msra.mxu0 0.0
    %1404 = vmatprep.subr.mxu0 0.0
    %1405 = vmatpush2.msra.mxu0 0.0
    %1406 = vmatprep.subr.mxu0 0.0
    %1407 = vmatpush2.msra.mxu0 0.0
    %1408 = vmatprep.subr.mxu0 0.0
    %1409 = vmatpush2.msra.mxu0 0.0
    %1410 = vmatprep.subr.mxu0 0.0
    %1411 = vmatpush2.msra.mxu0 0.0
    %1412 = vmatprep.subr.mxu0 0.0
    %1413 = vmatpush2.msra.mxu0 0.0
    %1414 = vmatprep.subr.mxu0 0.0
    %1415 = vmatpush2.msra.mxu0 0.0
    %1416 = vmatprep.subr.mxu0 0.0
    %1417 = vmatpush2.msra.mxu0 0.0
    %1418 = vmatprep.subr.mxu0 0.0
    %1419 = vmatpush2.msra.mxu0 0.0
    %1420 = vmatprep.subr.mxu0 0.0
    %1421 = vmatpush2.msra.mxu0 0.0
    %1422 = vmatprep.subr.mxu0 0.0
    %1423 = vmatpush2.msra.mxu0 0.0
    %1424 = vmatprep.mubr.f32.mxu0 0.0
    %1425 = vmatmul.mubr.f32.gmra.mxu0 %v1355
    %v1426 = vpop.f32.mrf.mxu0
    %v1427 = vadd.f32 0.0, %v1426
    %v1428 = vpop.f32.mrf.mxu0
    %1429 = vmatprep.mubr.f32.mxu0 0.0
    %1430 = vmatmul.mubr.f32.gmra.mxu0 %v1358
    %v1431 = vpop.f32.mrf.mxu0
    %v1432 = vadd.f32 0.0, %v1431
    %v1433 = vpop.f32.mrf.mxu0
    %1434 = vdwg.mxu0
    %v1435 = vadd.f32 %v1147, %v1427
    %v1436 = vadd.f32 %v1148, %v1432
    %v1437 = vadd.f32 %v152, %v1435
    %v1438 = vadd.f32 %v153, %v1436
    %v1439 = vld [vmem:[%s10] sm:$0xff]
    %v1440 = vld [vmem:[%s10 + $0x8] sm:$0xff]
    %v1441 = vld [vmem:[%s10 + $0x10] sm:$0xff]
    %v1442 = vld [vmem:[%s10 + $0x18] sm:$0xff]
    %1443 = vmatprep.subr.mxu0 0.0
    %1444 = vmatpush1.msra.mxu0 0.0
    %1445 = vmatprep.subr.mxu0 0.0
    %1446 = vmatpush1.msra.mxu0 0.0
    %1447 = vmatprep.subr.mxu0 0.0
    %1448 = vmatpush1.msra.mxu0 0.0
    %1449 = vmatprep.subr.mxu0 0.0
    %1450 = vmatpush1.msra.mxu0 0.0
    %1451 = vmatprep.subr.mxu0 0.0
    %1452 = vmatpush1.msra.mxu0 0.0
    %1453 = vmatprep.subr.mxu0 0.0
    %1454 = vmatpush1.msra.mxu0 0.0
    %1455 = vmatprep.subr.mxu0 0.0
    %1456 = vmatpush1.msra.mxu0 0.0
    %1457 = vmatprep.subr.mxu0 0.0
    %1458 = vmatpush1.msra.mxu0 0.0
    %1459 = vmatprep.subr.mxu0 0.0
    %1460 = vmatpush1.msra.mxu0 0.0
    %1461 = vmatprep.subr.mxu0 0.0
    %1462 = vmatpush1.msra.mxu0 0.0
    %1463 = vmatprep.subr.mxu0 0.0
    %1464 = vmatpush1.msra.mxu0 0.0
    %1465 = vmatprep.subr.mxu0 0.0
    %1466 = vmatpush1.msra.mxu0 0.0
    %1467 = vmatprep.subr.mxu0 0.0
    %1468 = vmatpush1.msra.mxu0 %v1442
    %1469 = vmatprep.subr.mxu0 0.0
    %1470 = vmatpush1.msra.mxu0 %v1441
    %1471 = vmatprep.subr.mxu0 0.0
    %1472 = vmatpush1.msra.mxu0 %v1440
    %1473 = vmatprep.subr.mxu0 0.0
    %1474 = vmatpush1.msra.mxu0 %v1439
    %1475 = vmatprep.subr.mxu0 0.0
    %1476 = vmatpush2.msra.mxu0 0.0
    %1477 = vmatprep.subr.mxu0 0.0
    %1478 = vmatpush2.msra.mxu0 0.0
    %1479 = vmatprep.subr.mxu0 0.0
    %1480 = vmatpush2.msra.mxu0 0.0
    %1481 = vmatprep.subr.mxu0 0.0
    %1482 = vmatpush2.msra.mxu0 0.0
    %1483 = vmatprep.subr.mxu0 0.0
    %1484 = vmatpush2.msra.mxu0 0.0
    %1485 = vmatprep.subr.mxu0 0.0
    %1486 = vmatpush2.msra.mxu0 0.0
    %1487 = vmatprep.subr.mxu0 0.0
    %1488 = vmatpush2.msra.mxu0 0.0
    %1489 = vmatprep.subr.mxu0 0.0
    %1490 = vmatpush2.msra.mxu0 0.0
    %1491 = vmatprep.subr.mxu0 0.0
    %1492 = vmatpush2.msra.mxu0 0.0
    %1493 = vmatprep.subr.mxu0 0.0
    %1494 = vmatpush2.msra.mxu0 0.0
    %1495 = vmatprep.subr.mxu0 0.0
    %1496 = vmatpush2.msra.mxu0 0.0
    %1497 = vmatprep.subr.mxu0 0.0
    %1498 = vmatpush2.msra.mxu0 0.0
    %1499 = vmatprep.subr.mxu0 0.0
    %1500 = vmatpush2.msra.mxu0 0.0
    %1501 = vmatprep.subr.mxu0 0.0
    %1502 = vmatpush2.msra.mxu0 0.0
    %1503 = vmatprep.subr.mxu0 0.0
    %1504 = vmatpush2.msra.mxu0 0.0
    %1505 = vmatprep.subr.mxu0 0.0
    %1506 = vmatpush2.msra.mxu0 0.0
    %1507 = vmatprep.mubr.f32.mxu0 0.0
    %1508 = vmatmul.mubr.f32.gmra.mxu0 %v207
    %v1509 = vpop.f32.mrf.mxu0
    %v1510 = vadd.f32 0.0, %v1509
    %v1511 = vpop.f32.mrf.mxu0
    %1512 = vmatprep.mubr.f32.mxu0 0.0
    %1513 = vmatmul.mubr.f32.gmra.mxu0 %v210
    %v1514 = vpop.f32.mrf.mxu0
    %v1515 = vadd.f32 0.0, %v1514
    %v1516 = vpop.f32.mrf.mxu0
    %1517 = vdwg.mxu0
    %v1518 = vld [vmem:[#allocation10] sm:$0xff]
    %v1519 = vld [vmem:[#allocation10 + $0x8] sm:$0xff]
    %v1520 = vld [vmem:[#allocation10 + $0x10] sm:$0xff]
    %v1521 = vld [vmem:[#allocation10 + $0x18] sm:$0xff]
    %v1523 = vsel %vm158, %v154, 0
    %v1526 = vsel %vm158, %v155, 0
    %1528 = vmatprep.subr.mxu0 0.0
    %1529 = vmatpush1.msra.mxu0 0.0
    %1530 = vmatprep.subr.mxu0 0.0
    %1531 = vmatpush1.msra.mxu0 0.0
    %1532 = vmatprep.subr.mxu0 0.0
    %1533 = vmatpush1.msra.mxu0 0.0
    %1534 = vmatprep.subr.mxu0 0.0
    %1535 = vmatpush1.msra.mxu0 0.0
    %1536 = vmatprep.subr.mxu0 0.0
    %1537 = vmatpush1.msra.mxu0 0.0
    %1538 = vmatprep.subr.mxu0 0.0
    %1539 = vmatpush1.msra.mxu0 0.0
    %1540 = vmatprep.subr.mxu0 0.0
    %1541 = vmatpush1.msra.mxu0 0.0
    %1542 = vmatprep.subr.mxu0 0.0
    %1543 = vmatpush1.msra.mxu0 0.0
    %1544 = vmatprep.subr.mxu0 0.0
    %1545 = vmatpush1.msra.mxu0 0.0
    %1546 = vmatprep.subr.mxu0 0.0
    %1547 = vmatpush1.msra.mxu0 0.0
    %1548 = vmatprep.subr.mxu0 0.0
    %1549 = vmatpush1.msra.mxu0 0.0
    %1550 = vmatprep.subr.mxu0 0.0
    %1551 = vmatpush1.msra.mxu0 0.0
    %1552 = vmatprep.subr.mxu0 0.0
    %1553 = vmatpush1.msra.mxu0 %v1521
    %1554 = vmatprep.subr.mxu0 0.0
    %1555 = vmatpush1.msra.mxu0 %v1520
    %1556 = vmatprep.subr.mxu0 0.0
    %1557 = vmatpush1.msra.mxu0 %v1519
    %1558 = vmatprep.subr.mxu0 0.0
    %1559 = vmatpush1.msra.mxu0 %v1518
    %1560 = vmatprep.subr.mxu0 0.0
    %1561 = vmatpush2.msra.mxu0 0.0
    %1562 = vmatprep.subr.mxu0 0.0
    %1563 = vmatpush2.msra.mxu0 0.0
    %1564 = vmatprep.subr.mxu0 0.0
    %1565 = vmatpush2.msra.mxu0 0.0
    %1566 = vmatprep.subr.mxu0 0.0
    %1567 = vmatpush2.msra.mxu0 0.0
    %1568 = vmatprep.subr.mxu0 0.0
    %1569 = vmatpush2.msra.mxu0 0.0
    %1570 = vmatprep.subr.mxu0 0.0
    %1571 = vmatpush2.msra.mxu0 0.0
    %1572 = vmatprep.subr.mxu0 0.0
    %1573 = vmatpush2.msra.mxu0 0.0
    %1574 = vmatprep.subr.mxu0 0.0
    %1575 = vmatpush2.msra.mxu0 0.0
    %1576 = vmatprep.subr.mxu0 0.0
    %1577 = vmatpush2.msra.mxu0 0.0
    %1578 = vmatprep.subr.mxu0 0.0
    %1579 = vmatpush2.msra.mxu0 0.0
    %1580 = vmatprep.subr.mxu0 0.0
    %1581 = vmatpush2.msra.mxu0 0.0
    %1582 = vmatprep.subr.mxu0 0.0
    %1583 = vmatpush2.msra.mxu0 0.0
    %1584 = vmatprep.subr.mxu0 0.0
    %1585 = vmatpush2.msra.mxu0 0.0
    %1586 = vmatprep.subr.mxu0 0.0
    %1587 = vmatpush2.msra.mxu0 0.0
    %1588 = vmatprep.subr.mxu0 0.0
    %1589 = vmatpush2.msra.mxu0 0.0
    %1590 = vmatprep.subr.mxu0 0.0
    %1591 = vmatpush2.msra.mxu0 0.0
    %1592 = vmatprep.mubr.f32.mxu0 0.0
    %1593 = vmatmul.mubr.f32.gmra.mxu0 %v1523
    %v1594 = vpop.f32.mrf.mxu0
    %v1595 = vadd.f32 0.0, %v1594
    %v1596 = vpop.f32.mrf.mxu0
    %1597 = vmatprep.mubr.f32.mxu0 0.0
    %1598 = vmatmul.mubr.f32.gmra.mxu0 %v1526
    %v1599 = vpop.f32.mrf.mxu0
    %v1600 = vadd.f32 0.0, %v1599
    %v1601 = vpop.f32.mrf.mxu0
    %1602 = vdwg.mxu0
    %v1603 = vld [vmem:[#allocation8] sm:$0xff]
    %v1604 = vld [vmem:[#allocation8 + $0x8] sm:$0xff]
    %v1606 = vsel %vm295, %v1510, 0
    %v1609 = vsel %vm295, %v1515, 0
    %v1612 = vsel %vm295, %v1595, 0
    %v1615 = vsel %vm295, %v1600, 0
    %1617 = vmatprep.subr.mxu0 0.0
    %1618 = vmatpush1.xpose.msra.mxu0 0.0
    %1619 = vmatprep.subr.mxu0 0.0
    %1620 = vmatpush1.xpose.msra.mxu0 0.0
    %1621 = vmatprep.subr.mxu0 0.0
    %1622 = vmatpush1.xpose.msra.mxu0 0.0
    %1623 = vmatprep.subr.mxu0 0.0
    %1624 = vmatpush1.xpose.msra.mxu0 0.0
    %1625 = vmatprep.subr.mxu0 0.0
    %1626 = vmatpush1.xpose.msra.mxu0 0.0
    %1627 = vmatprep.subr.mxu0 0.0
    %1628 = vmatpush1.xpose.msra.mxu0 0.0
    %1629 = vmatprep.subr.mxu0 0.0
    %1630 = vmatpush1.xpose.msra.mxu0 0.0
    %1631 = vmatprep.subr.mxu0 0.0
    %1632 = vmatpush1.xpose.msra.mxu0 0.0
    %1633 = vmatprep.subr.mxu0 0.0
    %1634 = vmatpush1.xpose.msra.mxu0 0.0
    %1635 = vmatprep.subr.mxu0 0.0
    %1636 = vmatpush1.xpose.msra.mxu0 0.0
    %1637 = vmatprep.subr.mxu0 0.0
    %1638 = vmatpush1.xpose.msra.mxu0 0.0
    %1639 = vmatprep.subr.mxu0 0.0
    %1640 = vmatpush1.xpose.msra.mxu0 0.0
    %1641 = vmatprep.subr.mxu0 0.0
    %1642 = vmatpush1.xpose.msra.mxu0 0.0
    %1643 = vmatprep.subr.mxu0 0.0
    %1644 = vmatpush1.xpose.msra.mxu0 0.0
    %1645 = vmatprep.subr.mxu0 0.0
    %1646 = vmatpush1.xpose.msra.mxu0 %v1615
    %1647 = vmatprep.subr.mxu0 0.0
    %1648 = vmatpush1.xpose.msra.mxu0 %v1612
    %1649 = vmatprep.subr.mxu0 0.0
    %1650 = vmatpush2.xpose.msra.mxu0 0.0
    %1651 = vmatprep.subr.mxu0 0.0
    %1652 = vmatpush2.xpose.msra.mxu0 0.0
    %1653 = vmatprep.subr.mxu0 0.0
    %1654 = vmatpush2.xpose.msra.mxu0 0.0
    %1655 = vmatprep.subr.mxu0 0.0
    %1656 = vmatpush2.xpose.msra.mxu0 0.0
    %1657 = vmatprep.subr.mxu0 0.0
    %1658 = vmatpush2.xpose.msra.mxu0 0.0
    %1659 = vmatprep.subr.mxu0 0.0
    %1660 = vmatpush2.xpose.msra.mxu0 0.0
    %1661 = vmatprep.subr.mxu0 0.0
    %1662 = vmatpush2.xpose.msra.mxu0 0.0
    %1663 = vmatprep.subr.mxu0 0.0
    %1664 = vmatpush2.xpose.msra.mxu0 0.0
    %1665 = vmatprep.subr.mxu0 0.0
    %1666 = vmatpush2.xpose.msra.mxu0 0.0
    %1667 = vmatprep.subr.mxu0 0.0
    %1668 = vmatpush2.xpose.msra.mxu0 0.0
    %1669 = vmatprep.subr.mxu0 0.0
    %1670 = vmatpush2.xpose.msra.mxu0 0.0
    %1671 = vmatprep.subr.mxu0 0.0
    %1672 = vmatpush2.xpose.msra.mxu0 0.0
    %1673 = vmatprep.subr.mxu0 0.0
    %1674 = vmatpush2.xpose.msra.mxu0 0.0
    %1675 = vmatprep.subr.mxu0 0.0
    %1676 = vmatpush2.xpose.msra.mxu0 0.0
    %1677 = vmatprep.subr.mxu0 0.0
    %1678 = vmatpush2.xpose.msra.mxu0 0.0
    %1679 = vmatprep.subr.mxu0 0.0
    %1680 = vmatpush2.xpose.msra.mxu0 0.0
    %1681 = vmatprep.mubr.f32.mxu0 0.0
    %1682 = vmatmul.mubr.f32.gmra.mxu0 %v1606
    %v1683 = vpop.f32.mrf.mxu0
    %v1684 = vadd.f32 0.0, %v1683
    %v1685 = vpop.f32.mrf.mxu0
    %1686 = vmatprep.mubr.f32.mxu0 0.0
    %1687 = vmatmul.mubr.f32.gmra.mxu0 %v1609
    %v1688 = vpop.f32.mrf.mxu0
    %v1689 = vadd.f32 0.0, %v1688
    %v1690 = vpop.f32.mrf.mxu0
    %1691 = vdwg.mxu0
    %v1692 = vmul.f32 %v1684, 0.35355338
    %v1693 = vmul.f32 %v1689, 0.35355338
    %v1694 = vadd.f32 %v1692, %v1603
    %v1695 = vadd.f32 %v1693, %v1604
    %v1696 = vsel %vm383, %v1694, -inf
    %1697 = vmax.xlane.f32.xlu0 %v1696
    %v1698 = vpop.xlane.xlu0 %1697
    %v1699 = vsel %vm383, %v1695, -inf
    %1700 = vmax.xlane.f32.xlu0 %v1699
    %v1701 = vpop.xlane.xlu0 %1700
    %v1702 = vsub.f32 %v1694, %v1698
    %v1703 = vsub.f32 %v1695, %v1701
    %v1704 = vmul.f32 %v1702, 1.442695
    %v1705 = vpow.pop %v1704
    %v1706 = vmul.f32 %v1703, 1.442695
    %v1707 = vpow.pop %v1706
    %v1708 = vsel %vm383, %v1705, 0.0
    %1709 = vadd.xlane.f32.xlu0 %v1708
    %v1710 = vpop.xlane.xlu0 %1709
    %v1711 = vsel %vm383, %v1707, 0.0
    %1712 = vadd.xlane.f32.xlu0 %v1711
    %v1713 = vpop.xlane.xlu0 %1712
    %v1714 = vrcp.pop %v1710
    %v1715 = vmul.f32 %v1705, %v1714
    %v1716 = vrcp.pop %v1713
    %v1717 = vmul.f32 %v1707, %v1716
    %1718 = vrot.lane.b32.xlu0 %v1595, 96
    %v1719 = vpop.permute.xlu0 %1718
    %1720 = vrot.lane.b32.xlu0 %v1600, 96
    %v1721 = vpop.permute.xlu0 %1720
    %v1725 = vsel %vm383, %v1715, 0
    %v1728 = vsel %vm383, %v1717, 0
    %1730 = vmatprep.subr.mxu0 0.0
    %1731 = vmatpush1.msra.mxu0 0.0
    %1732 = vmatprep.subr.mxu0 0.0
    %1733 = vmatpush1.msra.mxu0 0.0
    %1734 = vmatprep.subr.mxu0 0.0
    %1735 = vmatpush1.msra.mxu0 0.0
    %1736 = vmatprep.subr.mxu0 0.0
    %1737 = vmatpush1.msra.mxu0 0.0
    %1738 = vmatprep.subr.mxu0 0.0
    %1739 = vmatpush1.msra.mxu0 0.0
    %1740 = vmatprep.subr.mxu0 0.0
    %1741 = vmatpush1.msra.mxu0 0.0
    %1742 = vmatprep.subr.mxu0 0.0
    %1743 = vmatpush1.msra.mxu0 0.0
    %1744 = vmatprep.subr.mxu0 0.0
    %1745 = vmatpush1.msra.mxu0 0.0
    %1746 = vmatprep.subr.mxu0 0.0
    %1747 = vmatpush1.msra.mxu0 0.0
    %1748 = vmatprep.subr.mxu0 0.0
    %1749 = vmatpush1.msra.mxu0 0.0
    %1750 = vmatprep.subr.mxu0 0.0
    %1751 = vmatpush1.msra.mxu0 0.0
    %1752 = vmatprep.subr.mxu0 0.0
    %1753 = vmatpush1.msra.mxu0 0.0
    %1754 = vmatprep.subr.mxu0 0.0
    %1755 = vmatpush1.msra.mxu0 0.0
    %1756 = vmatprep.subr.mxu0 0.0
    %1757 = vmatpush1.msra.mxu0 0.0
    %1758 = vmatprep.subr.mxu0 0.0
    %1759 = vmatpush1.msra.mxu0 %v1721
    %1760 = vmatprep.subr.mxu0 0.0
    %1761 = vmatpush1.msra.mxu0 %v1719
    %1762 = vmatprep.subr.mxu0 0.0
    %1763 = vmatpush2.msra.mxu0 0.0
    %1764 = vmatprep.subr.mxu0 0.0
    %1765 = vmatpush2.msra.mxu0 0.0
    %1766 = vmatprep.subr.mxu0 0.0
    %1767 = vmatpush2.msra.mxu0 0.0
    %1768 = vmatprep.subr.mxu0 0.0
    %1769 = vmatpush2.msra.mxu0 0.0
    %1770 = vmatprep.subr.mxu0 0.0
    %1771 = vmatpush2.msra.mxu0 0.0
    %1772 = vmatprep.subr.mxu0 0.0
    %1773 = vmatpush2.msra.mxu0 0.0
    %1774 = vmatprep.subr.mxu0 0.0
    %1775 = vmatpush2.msra.mxu0 0.0
    %1776 = vmatprep.subr.mxu0 0.0
    %1777 = vmatpush2.msra.mxu0 0.0
    %1778 = vmatprep.subr.mxu0 0.0
    %1779 = vmatpush2.msra.mxu0 0.0
    %1780 = vmatprep.subr.mxu0 0.0
    %1781 = vmatpush2.msra.mxu0 0.0
    %1782 = vmatprep.subr.mxu0 0.0
    %1783 = vmatpush2.msra.mxu0 0.0
    %1784 = vmatprep.subr.mxu0 0.0
    %1785 = vmatpush2.msra.mxu0 0.0
    %1786 = vmatprep.subr.mxu0 0.0
    %1787 = vmatpush2.msra.mxu0 0.0
    %1788 = vmatprep.subr.mxu0 0.0
    %1789 = vmatpush2.msra.mxu0 0.0
    %1790 = vmatprep.subr.mxu0 0.0
    %1791 = vmatpush2.msra.mxu0 0.0
    %1792 = vmatprep.subr.mxu0 0.0
    %1793 = vmatpush2.msra.mxu0 0.0
    %1794 = vmatprep.mubr.f32.mxu0 0.0
    %1795 = vmatmul.mubr.f32.gmra.mxu0 %v1725
    %v1796 = vpop.f32.mrf.mxu0
    %v1797 = vadd.f32 0.0, %v1796
    %v1798 = vpop.f32.mrf.mxu0
    %1799 = vmatprep.mubr.f32.mxu0 0.0
    %1800 = vmatmul.mubr.f32.gmra.mxu0 %v1728
    %v1801 = vpop.f32.mrf.mxu0
    %v1802 = vadd.f32 0.0, %v1801
    %v1803 = vpop.f32.mrf.mxu0
    %1804 = vdwg.mxu0
    %v1805 = vld [vmem:[#allocation11] sm:$0xff]
    %1806 = vrot.lane.b32.xlu0 %v1510, 120
    %v1807 = vpop.permute.xlu0 %1806
    %1808 = vrot.lane.b32.xlu0 %v1515, 120
    %v1809 = vpop.permute.xlu0 %1808
    %1810 = vrot.lane.b32.xlu0 %v1595, 120
    %v1811 = vpop.permute.xlu0 %1810
    %1812 = vrot.lane.b32.xlu0 %v1600, 120
    %v1813 = vpop.permute.xlu0 %1812
    %v1814 = vsel %vm295, %v1807, 0
    %v1816 = vsel %vm295, %v1809, 0
    %v1818 = vsel %vm295, %v1811, 0
    %v1820 = vsel %vm295, %v1813, 0
    %1822 = vmatprep.subr.mxu0 0.0
    %1823 = vmatpush1.xpose.msra.mxu0 0.0
    %1824 = vmatprep.subr.mxu0 0.0
    %1825 = vmatpush1.xpose.msra.mxu0 0.0
    %1826 = vmatprep.subr.mxu0 0.0
    %1827 = vmatpush1.xpose.msra.mxu0 0.0
    %1828 = vmatprep.subr.mxu0 0.0
    %1829 = vmatpush1.xpose.msra.mxu0 0.0
    %1830 = vmatprep.subr.mxu0 0.0
    %1831 = vmatpush1.xpose.msra.mxu0 0.0
    %1832 = vmatprep.subr.mxu0 0.0
    %1833 = vmatpush1.xpose.msra.mxu0 0.0
    %1834 = vmatprep.subr.mxu0 0.0
    %1835 = vmatpush1.xpose.msra.mxu0 0.0
    %1836 = vmatprep.subr.mxu0 0.0
    %1837 = vmatpush1.xpose.msra.mxu0 0.0
    %1838 = vmatprep.subr.mxu0 0.0
    %1839 = vmatpush1.xpose.msra.mxu0 0.0
    %1840 = vmatprep.subr.mxu0 0.0
    %1841 = vmatpush1.xpose.msra.mxu0 0.0
    %1842 = vmatprep.subr.mxu0 0.0
    %1843 = vmatpush1.xpose.msra.mxu0 0.0
    %1844 = vmatprep.subr.mxu0 0.0
    %1845 = vmatpush1.xpose.msra.mxu0 0.0
    %1846 = vmatprep.subr.mxu0 0.0
    %1847 = vmatpush1.xpose.msra.mxu0 0.0
    %1848 = vmatprep.subr.mxu0 0.0
    %1849 = vmatpush1.xpose.msra.mxu0 0.0
    %1850 = vmatprep.subr.mxu0 0.0
    %1851 = vmatpush1.xpose.msra.mxu0 %v1820
    %1852 = vmatprep.subr.mxu0 0.0
    %1853 = vmatpush1.xpose.msra.mxu0 %v1818
    %1854 = vmatprep.subr.mxu0 0.0
    %1855 = vmatpush2.xpose.msra.mxu0 0.0
    %1856 = vmatprep.subr.mxu0 0.0
    %1857 = vmatpush2.xpose.msra.mxu0 0.0
    %1858 = vmatprep.subr.mxu0 0.0
    %1859 = vmatpush2.xpose.msra.mxu0 0.0
    %1860 = vmatprep.subr.mxu0 0.0
    %1861 = vmatpush2.xpose.msra.mxu0 0.0
    %1862 = vmatprep.subr.mxu0 0.0
    %1863 = vmatpush2.xpose.msra.mxu0 0.0
    %1864 = vmatprep.subr.mxu0 0.0
    %1865 = vmatpush2.xpose.msra.mxu0 0.0
    %1866 = vmatprep.subr.mxu0 0.0
    %1867 = vmatpush2.xpose.msra.mxu0 0.0
    %1868 = vmatprep.subr.mxu0 0.0
    %1869 = vmatpush2.xpose.msra.mxu0 0.0
    %1870 = vmatprep.subr.mxu0 0.0
    %1871 = vmatpush2.xpose.msra.mxu0 0.0
    %1872 = vmatprep.subr.mxu0 0.0
    %1873 = vmatpush2.xpose.msra.mxu0 0.0
    %1874 = vmatprep.subr.mxu0 0.0
    %1875 = vmatpush2.xpose.msra.mxu0 0.0
    %1876 = vmatprep.subr.mxu0 0.0
    %1877 = vmatpush2.xpose.msra.mxu0 0.0
    %1878 = vmatprep.subr.mxu0 0.0
    %1879 = vmatpush2.xpose.msra.mxu0 0.0
    %1880 = vmatprep.subr.mxu0 0.0
    %1881 = vmatpush2.xpose.msra.mxu0 0.0
    %1882 = vmatprep.subr.mxu0 0.0
    %1883 = vmatpush2.xpose.msra.mxu0 0.0
    %1884 = vmatprep.subr.mxu0 0.0
    %1885 = vmatpush2.xpose.msra.mxu0 0.0
    %1886 = vmatprep.mubr.f32.mxu0 0.0
    %1887 = vmatmul.mubr.f32.gmra.mxu0 %v1814
    %v1888 = vpop.f32.mrf.mxu0
    %v1889 = vadd.f32 0.0, %v1888
    %v1890 = vpop.f32.mrf.mxu0
    %1891 = vmatprep.mubr.f32.mxu0 0.0
    %1892 = vmatmul.mubr.f32.gmra.mxu0 %v1816
    %v1893 = vpop.f32.mrf.mxu0
    %v1894 = vadd.f32 0.0, %v1893
    %v1895 = vpop.f32.mrf.mxu0
    %1896 = vdwg.mxu0
    %v1897 = vmul.f32 %v1889, 0.35355338
    %v1898 = vmul.f32 %v1894, 0.35355338
    %v1899 = vadd.f32 %v1897, %v1603
    %v1900 = vadd.f32 %v1898, %v1604
    %v1901 = vsel %vm383, %v1899, -inf
    %1902 = vmax.xlane.f32.xlu0 %v1901
    %v1903 = vpop.xlane.xlu0 %1902
    %v1904 = vsel %vm383, %v1900, -inf
    %1905 = vmax.xlane.f32.xlu0 %v1904
    %v1906 = vpop.xlane.xlu0 %1905
    %v1907 = vsub.f32 %v1899, %v1903
    %v1908 = vsub.f32 %v1900, %v1906
    %v1909 = vmul.f32 %v1907, 1.442695
    %v1910 = vpow.pop %v1909
    %v1911 = vmul.f32 %v1908, 1.442695
    %v1912 = vpow.pop %v1911
    %v1913 = vsel %vm383, %v1910, 0.0
    %1914 = vadd.xlane.f32.xlu0 %v1913
    %v1915 = vpop.xlane.xlu0 %1914
    %v1916 = vsel %vm383, %v1912, 0.0
    %1917 = vadd.xlane.f32.xlu0 %v1916
    %v1918 = vpop.xlane.xlu0 %1917
    %v1919 = vrcp.pop %v1915
    %v1920 = vmul.f32 %v1910, %v1919
    %v1921 = vrcp.pop %v1918
    %v1922 = vmul.f32 %v1912, %v1921
    %1923 = vrot.lane.b32.xlu0 %v1595, 88
    %v1924 = vpop.permute.xlu0 %1923
    %1925 = vrot.lane.b32.xlu0 %v1600, 88
    %v1926 = vpop.permute.xlu0 %1925
    %v1930 = vsel %vm383, %v1920, 0
    %v1933 = vsel %vm383, %v1922, 0
    %1935 = vmatprep.subr.mxu0 0.0
    %1936 = vmatpush1.msra.mxu0 0.0
    %1937 = vmatprep.subr.mxu0 0.0
    %1938 = vmatpush1.msra.mxu0 0.0
    %1939 = vmatprep.subr.mxu0 0.0
    %1940 = vmatpush1.msra.mxu0 0.0
    %1941 = vmatprep.subr.mxu0 0.0
    %1942 = vmatpush1.msra.mxu0 0.0
    %1943 = vmatprep.subr.mxu0 0.0
    %1944 = vmatpush1.msra.mxu0 0.0
    %1945 = vmatprep.subr.mxu0 0.0
    %1946 = vmatpush1.msra.mxu0 0.0
    %1947 = vmatprep.subr.mxu0 0.0
    %1948 = vmatpush1.msra.mxu0 0.0
    %1949 = vmatprep.subr.mxu0 0.0
    %1950 = vmatpush1.msra.mxu0 0.0
    %1951 = vmatprep.subr.mxu0 0.0
    %1952 = vmatpush1.msra.mxu0 0.0
    %1953 = vmatprep.subr.mxu0 0.0
    %1954 = vmatpush1.msra.mxu0 0.0
    %1955 = vmatprep.subr.mxu0 0.0
    %1956 = vmatpush1.msra.mxu0 0.0
    %1957 = vmatprep.subr.mxu0 0.0
    %1958 = vmatpush1.msra.mxu0 0.0
    %1959 = vmatprep.subr.mxu0 0.0
    %1960 = vmatpush1.msra.mxu0 0.0
    %1961 = vmatprep.subr.mxu0 0.0
    %1962 = vmatpush1.msra.mxu0 0.0
    %1963 = vmatprep.subr.mxu0 0.0
    %1964 = vmatpush1.msra.mxu0 %v1926
    %1965 = vmatprep.subr.mxu0 0.0
    %1966 = vmatpush1.msra.mxu0 %v1924
    %1967 = vmatprep.subr.mxu0 0.0
    %1968 = vmatpush2.msra.mxu0 0.0
    %1969 = vmatprep.subr.mxu0 0.0
    %1970 = vmatpush2.msra.mxu0 0.0
    %1971 = vmatprep.subr.mxu0 0.0
    %1972 = vmatpush2.msra.mxu0 0.0
    %1973 = vmatprep.subr.mxu0 0.0
    %1974 = vmatpush2.msra.mxu0 0.0
    %1975 = vmatprep.subr.mxu0 0.0
    %1976 = vmatpush2.msra.mxu0 0.0
    %1977 = vmatprep.subr.mxu0 0.0
    %1978 = vmatpush2.msra.mxu0 0.0
    %1979 = vmatprep.subr.mxu0 0.0
    %1980 = vmatpush2.msra.mxu0 0.0
    %1981 = vmatprep.subr.mxu0 0.0
    %1982 = vmatpush2.msra.mxu0 0.0
    %1983 = vmatprep.subr.mxu0 0.0
    %1984 = vmatpush2.msra.mxu0 0.0
    %1985 = vmatprep.subr.mxu0 0.0
    %1986 = vmatpush2.msra.mxu0 0.0
    %1987 = vmatprep.subr.mxu0 0.0
    %1988 = vmatpush2.msra.mxu0 0.0
    %1989 = vmatprep.subr.mxu0 0.0
    %1990 = vmatpush2.msra.mxu0 0.0
    %1991 = vmatprep.subr.mxu0 0.0
    %1992 = vmatpush2.msra.mxu0 0.0
    %1993 = vmatprep.subr.mxu0 0.0
    %1994 = vmatpush2.msra.mxu0 0.0
    %1995 = vmatprep.subr.mxu0 0.0
    %1996 = vmatpush2.msra.mxu0 0.0
    %1997 = vmatprep.subr.mxu0 0.0
    %1998 = vmatpush2.msra.mxu0 0.0
    %1999 = vmatprep.mubr.f32.mxu0 0.0
    %2000 = vmatmul.mubr.f32.gmra.mxu0 %v1930
    %v2001 = vpop.f32.mrf.mxu0
    %v2002 = vadd.f32 0.0, %v2001
    %v2003 = vpop.f32.mrf.mxu0
    %2004 = vmatprep.mubr.f32.mxu0 0.0
    %2005 = vmatmul.mubr.f32.gmra.mxu0 %v1933
    %v2006 = vpop.f32.mrf.mxu0
    %v2007 = vadd.f32 0.0, %v2006
    %v2008 = vpop.f32.mrf.mxu0
    %2009 = vdwg.mxu0
    %v2010 = vld [vmem:[#allocation11 + $0x8] sm:$0xff]
    %v2012 = vsel %vm295, %v2002, 0
    %v2015 = vsel %vm295, %v2007, 0
    %2017 = vmatprep.subr.mxu0 0.0
    %2018 = vmatpush1.msra.mxu0 0.0
    %2019 = vmatprep.subr.mxu0 0.0
    %2020 = vmatpush1.msra.mxu0 0.0
    %2021 = vmatprep.subr.mxu0 0.0
    %2022 = vmatpush1.msra.mxu0 0.0
    %2023 = vmatprep.subr.mxu0 0.0
    %2024 = vmatpush1.msra.mxu0 0.0
    %2025 = vmatprep.subr.mxu0 0.0
    %2026 = vmatpush1.msra.mxu0 0.0
    %2027 = vmatprep.subr.mxu0 0.0
    %2028 = vmatpush1.msra.mxu0 0.0
    %2029 = vmatprep.subr.mxu0 0.0
    %2030 = vmatpush1.msra.mxu0 0.0
    %2031 = vmatprep.subr.mxu0 0.0
    %2032 = vmatpush1.msra.mxu0 0.0
    %2033 = vmatprep.subr.mxu0 0.0
    %2034 = vmatpush1.msra.mxu0 0.0
    %2035 = vmatprep.subr.mxu0 0.0
    %2036 = vmatpush1.msra.mxu0 0.0
    %2037 = vmatprep.subr.mxu0 0.0
    %2038 = vmatpush1.msra.mxu0 0.0
    %2039 = vmatprep.subr.mxu0 0.0
    %2040 = vmatpush1.msra.mxu0 0.0
    %2041 = vmatprep.subr.mxu0 0.0
    %2042 = vmatpush1.msra.mxu0 0.0
    %2043 = vmatprep.subr.mxu0 0.0
    %2044 = vmatpush1.msra.mxu0 0.0
    %2045 = vmatprep.subr.mxu0 0.0
    %2046 = vmatpush1.msra.mxu0 0.0
    %2047 = vmatprep.subr.mxu0 0.0
    %2048 = vmatpush1.msra.mxu0 %v2010
    %2049 = vmatprep.subr.mxu0 0.0
    %2050 = vmatpush2.msra.mxu0 0.0
    %2051 = vmatprep.subr.mxu0 0.0
    %2052 = vmatpush2.msra.mxu0 0.0
    %2053 = vmatprep.subr.mxu0 0.0
    %2054 = vmatpush2.msra.mxu0 0.0
    %2055 = vmatprep.subr.mxu0 0.0
    %2056 = vmatpush2.msra.mxu0 0.0
    %2057 = vmatprep.subr.mxu0 0.0
    %2058 = vmatpush2.msra.mxu0 0.0
    %2059 = vmatprep.subr.mxu0 0.0
    %2060 = vmatpush2.msra.mxu0 0.0
    %2061 = vmatprep.subr.mxu0 0.0
    %2062 = vmatpush2.msra.mxu0 0.0
    %2063 = vmatprep.subr.mxu0 0.0
    %2064 = vmatpush2.msra.mxu0 0.0
    %2065 = vmatprep.subr.mxu0 0.0
    %2066 = vmatpush2.msra.mxu0 0.0
    %2067 = vmatprep.subr.mxu0 0.0
    %2068 = vmatpush2.msra.mxu0 0.0
    %2069 = vmatprep.subr.mxu0 0.0
    %2070 = vmatpush2.msra.mxu0 0.0
    %2071 = vmatprep.subr.mxu0 0.0
    %2072 = vmatpush2.msra.mxu0 0.0
    %2073 = vmatprep.subr.mxu0 0.0
    %2074 = vmatpush2.msra.mxu0 0.0
    %2075 = vmatprep.subr.mxu0 0.0
    %2076 = vmatpush2.msra.mxu0 0.0
    %2077 = vmatprep.subr.mxu0 0.0
    %2078 = vmatpush2.msra.mxu0 0.0
    %2079 = vmatprep.subr.mxu0 0.0
    %2080 = vmatpush2.msra.mxu0 0.0
    %2081 = vmatprep.mubr.f32.mxu0 0.0
    %2082 = vmatmul.mubr.f32.gmra.mxu0 %v2012
    %v2083 = vpop.f32.mrf.mxu0
    %v2084 = vadd.f32 0.0, %v2083
    %v2085 = vpop.f32.mrf.mxu0
    %2086 = vmatprep.mubr.f32.mxu0 0.0
    %2087 = vmatmul.mubr.f32.gmra.mxu0 %v2015
    %v2088 = vpop.f32.mrf.mxu0
    %v2089 = vadd.f32 0.0, %v2088
    %v2090 = vpop.f32.mrf.mxu0
    %2091 = vdwg.mxu0
    %v2093 = vsel %vm295, %v1797, 0
    %v2096 = vsel %vm295, %v1802, 0
    %2098 = vmatprep.subr.mxu0 0.0
    %2099 = vmatpush1.msra.mxu0 0.0
    %2100 = vmatprep.subr.mxu0 0.0
    %2101 = vmatpush1.msra.mxu0 0.0
    %2102 = vmatprep.subr.mxu0 0.0
    %2103 = vmatpush1.msra.mxu0 0.0
    %2104 = vmatprep.subr.mxu0 0.0
    %2105 = vmatpush1.msra.mxu0 0.0
    %2106 = vmatprep.subr.mxu0 0.0
    %2107 = vmatpush1.msra.mxu0 0.0
    %2108 = vmatprep.subr.mxu0 0.0
    %2109 = vmatpush1.msra.mxu0 0.0
    %2110 = vmatprep.subr.mxu0 0.0
    %2111 = vmatpush1.msra.mxu0 0.0
    %2112 = vmatprep.subr.mxu0 0.0
    %2113 = vmatpush1.msra.mxu0 0.0
    %2114 = vmatprep.subr.mxu0 0.0
    %2115 = vmatpush1.msra.mxu0 0.0
    %2116 = vmatprep.subr.mxu0 0.0
    %2117 = vmatpush1.msra.mxu0 0.0
    %2118 = vmatprep.subr.mxu0 0.0
    %2119 = vmatpush1.msra.mxu0 0.0
    %2120 = vmatprep.subr.mxu0 0.0
    %2121 = vmatpush1.msra.mxu0 0.0
    %2122 = vmatprep.subr.mxu0 0.0
    %2123 = vmatpush1.msra.mxu0 0.0
    %2124 = vmatprep.subr.mxu0 0.0
    %2125 = vmatpush1.msra.mxu0 0.0
    %2126 = vmatprep.subr.mxu0 0.0
    %2127 = vmatpush1.msra.mxu0 0.0
    %2128 = vmatprep.subr.mxu0 0.0
    %2129 = vmatpush1.msra.mxu0 %v1805
    %2130 = vmatprep.subr.mxu0 0.0
    %2131 = vmatpush2.msra.mxu0 0.0
    %2132 = vmatprep.subr.mxu0 0.0
    %2133 = vmatpush2.msra.mxu0 0.0
    %2134 = vmatprep.subr.mxu0 0.0
    %2135 = vmatpush2.msra.mxu0 0.0
    %2136 = vmatprep.subr.mxu0 0.0
    %2137 = vmatpush2.msra.mxu0 0.0
    %2138 = vmatprep.subr.mxu0 0.0
    %2139 = vmatpush2.msra.mxu0 0.0
    %2140 = vmatprep.subr.mxu0 0.0
    %2141 = vmatpush2.msra.mxu0 0.0
    %2142 = vmatprep.subr.mxu0 0.0
    %2143 = vmatpush2.msra.mxu0 0.0
    %2144 = vmatprep.subr.mxu0 0.0
    %2145 = vmatpush2.msra.mxu0 0.0
    %2146 = vmatprep.subr.mxu0 0.0
    %2147 = vmatpush2.msra.mxu0 0.0
    %2148 = vmatprep.subr.mxu0 0.0
    %2149 = vmatpush2.msra.mxu0 0.0
    %2150 = vmatprep.subr.mxu0 0.0
    %2151 = vmatpush2.msra.mxu0 0.0
    %2152 = vmatprep.subr.mxu0 0.0
    %2153 = vmatpush2.msra.mxu0 0.0
    %2154 = vmatprep.subr.mxu0 0.0
    %2155 = vmatpush2.msra.mxu0 0.0
    %2156 = vmatprep.subr.mxu0 0.0
    %2157 = vmatpush2.msra.mxu0 0.0
    %2158 = vmatprep.subr.mxu0 0.0
    %2159 = vmatpush2.msra.mxu0 0.0
    %2160 = vmatprep.subr.mxu0 0.0
    %2161 = vmatpush2.msra.mxu0 0.0
    %2162 = vmatprep.mubr.f32.mxu0 0.0
    %2163 = vmatmul.mubr.f32.gmra.mxu0 %v2093
    %v2164 = vpop.f32.mrf.mxu0
    %v2165 = vadd.f32 %v2084, %v2164
    %v2166 = vpop.f32.mrf.mxu0
    %2167 = vmatprep.mubr.f32.mxu0 0.0
    %2168 = vmatmul.mubr.f32.gmra.mxu0 %v2096
    %v2169 = vpop.f32.mrf.mxu0
    %v2170 = vadd.f32 %v2089, %v2169
    %v2171 = vpop.f32.mrf.mxu0
    %2172 = vdwg.mxu0
    %2173 = vrot.lane.b32.xlu0 %v1510, 112
    %v2174 = vpop.permute.xlu0 %2173
    %2175 = vrot.lane.b32.xlu0 %v1515, 112
    %v2176 = vpop.permute.xlu0 %2175
    %2177 = vrot.lane.b32.xlu0 %v1595, 112
    %v2178 = vpop.permute.xlu0 %2177
    %2179 = vrot.lane.b32.xlu0 %v1600, 112
    %v2180 = vpop.permute.xlu0 %2179
    %v2181 = vsel %vm295, %v2174, 0
    %v2183 = vsel %vm295, %v2176, 0
    %v2185 = vsel %vm295, %v2178, 0
    %v2187 = vsel %vm295, %v2180, 0
    %2189 = vmatprep.subr.mxu0 0.0
    %2190 = vmatpush1.xpose.msra.mxu0 0.0
    %2191 = vmatprep.subr.mxu0 0.0
    %2192 = vmatpush1.xpose.msra.mxu0 0.0
    %2193 = vmatprep.subr.mxu0 0.0
    %2194 = vmatpush1.xpose.msra.mxu0 0.0
    %2195 = vmatprep.subr.mxu0 0.0
    %2196 = vmatpush1.xpose.msra.mxu0 0.0
    %2197 = vmatprep.subr.mxu0 0.0
    %2198 = vmatpush1.xpose.msra.mxu0 0.0
    %2199 = vmatprep.subr.mxu0 0.0
    %2200 = vmatpush1.xpose.msra.mxu0 0.0
    %2201 = vmatprep.subr.mxu0 0.0
    %2202 = vmatpush1.xpose.msra.mxu0 0.0
    %2203 = vmatprep.subr.mxu0 0.0
    %2204 = vmatpush1.xpose.msra.mxu0 0.0
    %2205 = vmatprep.subr.mxu0 0.0
    %2206 = vmatpush1.xpose.msra.mxu0 0.0
    %2207 = vmatprep.subr.mxu0 0.0
    %2208 = vmatpush1.xpose.msra.mxu0 0.0
    %2209 = vmatprep.subr.mxu0 0.0
    %2210 = vmatpush1.xpose.msra.mxu0 0.0
    %2211 = vmatprep.subr.mxu0 0.0
    %2212 = vmatpush1.xpose.msra.mxu0 0.0
    %2213 = vmatprep.subr.mxu0 0.0
    %2214 = vmatpush1.xpose.msra.mxu0 0.0
    %2215 = vmatprep.subr.mxu0 0.0
    %2216 = vmatpush1.xpose.msra.mxu0 0.0
    %2217 = vmatprep.subr.mxu0 0.0
    %2218 = vmatpush1.xpose.msra.mxu0 %v2187
    %2219 = vmatprep.subr.mxu0 0.0
    %2220 = vmatpush1.xpose.msra.mxu0 %v2185
    %2221 = vmatprep.subr.mxu0 0.0
    %2222 = vmatpush2.xpose.msra.mxu0 0.0
    %2223 = vmatprep.subr.mxu0 0.0
    %2224 = vmatpush2.xpose.msra.mxu0 0.0
    %2225 = vmatprep.subr.mxu0 0.0
    %2226 = vmatpush2.xpose.msra.mxu0 0.0
    %2227 = vmatprep.subr.mxu0 0.0
    %2228 = vmatpush2.xpose.msra.mxu0 0.0
    %2229 = vmatprep.subr.mxu0 0.0
    %2230 = vmatpush2.xpose.msra.mxu0 0.0
    %2231 = vmatprep.subr.mxu0 0.0
    %2232 = vmatpush2.xpose.msra.mxu0 0.0
    %2233 = vmatprep.subr.mxu0 0.0
    %2234 = vmatpush2.xpose.msra.mxu0 0.0
    %2235 = vmatprep.subr.mxu0 0.0
    %2236 = vmatpush2.xpose.msra.mxu0 0.0
    %2237 = vmatprep.subr.mxu0 0.0
    %2238 = vmatpush2.xpose.msra.mxu0 0.0
    %2239 = vmatprep.subr.mxu0 0.0
    %2240 = vmatpush2.xpose.msra.mxu0 0.0
    %2241 = vmatprep.subr.mxu0 0.0
    %2242 = vmatpush2.xpose.msra.mxu0 0.0
    %2243 = vmatprep.subr.mxu0 0.0
    %2244 = vmatpush2.xpose.msra.mxu0 0.0
    %2245 = vmatprep.subr.mxu0 0.0
    %2246 = vmatpush2.xpose.msra.mxu0 0.0
    %2247 = vmatprep.subr.mxu0 0.0
    %2248 = vmatpush2.xpose.msra.mxu0 0.0
    %2249 = vmatprep.subr.mxu0 0.0
    %2250 = vmatpush2.xpose.msra.mxu0 0.0
    %2251 = vmatprep.subr.mxu0 0.0
    %2252 = vmatpush2.xpose.msra.mxu0 0.0
    %2253 = vmatprep.mubr.f32.mxu0 0.0
    %2254 = vmatmul.mubr.f32.gmra.mxu0 %v2181
    %v2255 = vpop.f32.mrf.mxu0
    %v2256 = vadd.f32 0.0, %v2255
    %v2257 = vpop.f32.mrf.mxu0
    %2258 = vmatprep.mubr.f32.mxu0 0.0
    %2259 = vmatmul.mubr.f32.gmra.mxu0 %v2183
    %v2260 = vpop.f32.mrf.mxu0
    %v2261 = vadd.f32 0.0, %v2260
    %v2262 = vpop.f32.mrf.mxu0
    %2263 = vdwg.mxu0
    %v2264 = vmul.f32 %v2256, 0.35355338
    %v2265 = vmul.f32 %v2261, 0.35355338
    %v2266 = vadd.f32 %v2264, %v1603
    %v2267 = vadd.f32 %v2265, %v1604
    %v2268 = vsel %vm383, %v2266, -inf
    %2269 = vmax.xlane.f32.xlu0 %v2268
    %v2270 = vpop.xlane.xlu0 %2269
    %v2271 = vsel %vm383, %v2267, -inf
    %2272 = vmax.xlane.f32.xlu0 %v2271
    %v2273 = vpop.xlane.xlu0 %2272
    %v2274 = vsub.f32 %v2266, %v2270
    %v2275 = vsub.f32 %v2267, %v2273
    %v2276 = vmul.f32 %v2274, 1.442695
    %v2277 = vpow.pop %v2276
    %v2278 = vmul.f32 %v2275, 1.442695
    %v2279 = vpow.pop %v2278
    %v2280 = vsel %vm383, %v2277, 0.0
    %2281 = vadd.xlane.f32.xlu0 %v2280
    %v2282 = vpop.xlane.xlu0 %2281
    %v2283 = vsel %vm383, %v2279, 0.0
    %2284 = vadd.xlane.f32.xlu0 %v2283
    %v2285 = vpop.xlane.xlu0 %2284
    %v2286 = vrcp.pop %v2282
    %v2287 = vmul.f32 %v2277, %v2286
    %v2288 = vrcp.pop %v2285
    %v2289 = vmul.f32 %v2279, %v2288
    %2290 = vrot.lane.b32.xlu0 %v1595, 80
    %v2291 = vpop.permute.xlu0 %2290
    %2292 = vrot.lane.b32.xlu0 %v1600, 80
    %v2293 = vpop.permute.xlu0 %2292
    %v2297 = vsel %vm383, %v2287, 0
    %v2300 = vsel %vm383, %v2289, 0
    %2302 = vmatprep.subr.mxu0 0.0
    %2303 = vmatpush1.msra.mxu0 0.0
    %2304 = vmatprep.subr.mxu0 0.0
    %2305 = vmatpush1.msra.mxu0 0.0
    %2306 = vmatprep.subr.mxu0 0.0
    %2307 = vmatpush1.msra.mxu0 0.0
    %2308 = vmatprep.subr.mxu0 0.0
    %2309 = vmatpush1.msra.mxu0 0.0
    %2310 = vmatprep.subr.mxu0 0.0
    %2311 = vmatpush1.msra.mxu0 0.0
    %2312 = vmatprep.subr.mxu0 0.0
    %2313 = vmatpush1.msra.mxu0 0.0
    %2314 = vmatprep.subr.mxu0 0.0
    %2315 = vmatpush1.msra.mxu0 0.0
    %2316 = vmatprep.subr.mxu0 0.0
    %2317 = vmatpush1.msra.mxu0 0.0
    %2318 = vmatprep.subr.mxu0 0.0
    %2319 = vmatpush1.msra.mxu0 0.0
    %2320 = vmatprep.subr.mxu0 0.0
    %2321 = vmatpush1.msra.mxu0 0.0
    %2322 = vmatprep.subr.mxu0 0.0
    %2323 = vmatpush1.msra.mxu0 0.0
    %2324 = vmatprep.subr.mxu0 0.0
    %2325 = vmatpush1.msra.mxu0 0.0
    %2326 = vmatprep.subr.mxu0 0.0
    %2327 = vmatpush1.msra.mxu0 0.0
    %2328 = vmatprep.subr.mxu0 0.0
    %2329 = vmatpush1.msra.mxu0 0.0
    %2330 = vmatprep.subr.mxu0 0.0
    %2331 = vmatpush1.msra.mxu0 %v2293
    %2332 = vmatprep.subr.mxu0 0.0
    %2333 = vmatpush1.msra.mxu0 %v2291
    %2334 = vmatprep.subr.mxu0 0.0
    %2335 = vmatpush2.msra.mxu0 0.0
    %2336 = vmatprep.subr.mxu0 0.0
    %2337 = vmatpush2.msra.mxu0 0.0
    %2338 = vmatprep.subr.mxu0 0.0
    %2339 = vmatpush2.msra.mxu0 0.0
    %2340 = vmatprep.subr.mxu0 0.0
    %2341 = vmatpush2.msra.mxu0 0.0
    %2342 = vmatprep.subr.mxu0 0.0
    %2343 = vmatpush2.msra.mxu0 0.0
    %2344 = vmatprep.subr.mxu0 0.0
    %2345 = vmatpush2.msra.mxu0 0.0
    %2346 = vmatprep.subr.mxu0 0.0
    %2347 = vmatpush2.msra.mxu0 0.0
    %2348 = vmatprep.subr.mxu0 0.0
    %2349 = vmatpush2.msra.mxu0 0.0
    %2350 = vmatprep.subr.mxu0 0.0
    %2351 = vmatpush2.msra.mxu0 0.0
    %2352 = vmatprep.subr.mxu0 0.0
    %2353 = vmatpush2.msra.mxu0 0.0
    %2354 = vmatprep.subr.mxu0 0.0
    %2355 = vmatpush2.msra.mxu0 0.0
    %2356 = vmatprep.subr.mxu0 0.0
    %2357 = vmatpush2.msra.mxu0 0.0
    %2358 = vmatprep.subr.mxu0 0.0
    %2359 = vmatpush2.msra.mxu0 0.0
    %2360 = vmatprep.subr.mxu0 0.0
    %2361 = vmatpush2.msra.mxu0 0.0
    %2362 = vmatprep.subr.mxu0 0.0
    %2363 = vmatpush2.msra.mxu0 0.0
    %2364 = vmatprep.subr.mxu0 0.0
    %2365 = vmatpush2.msra.mxu0 0.0
    %2366 = vmatprep.mubr.f32.mxu0 0.0
    %2367 = vmatmul.mubr.f32.gmra.mxu0 %v2297
    %v2368 = vpop.f32.mrf.mxu0
    %v2369 = vadd.f32 0.0, %v2368
    %v2370 = vpop.f32.mrf.mxu0
    %2371 = vmatprep.mubr.f32.mxu0 0.0
    %2372 = vmatmul.mubr.f32.gmra.mxu0 %v2300
    %v2373 = vpop.f32.mrf.mxu0
    %v2374 = vadd.f32 0.0, %v2373
    %v2375 = vpop.f32.mrf.mxu0
    %2376 = vdwg.mxu0
    %v2377 = vld [vmem:[#allocation11 + $0x10] sm:$0xff]
    %v2379 = vsel %vm295, %v2369, 0
    %v2382 = vsel %vm295, %v2374, 0
    %2384 = vmatprep.subr.mxu0 0.0
    %2385 = vmatpush1.msra.mxu0 0.0
    %2386 = vmatprep.subr.mxu0 0.0
    %2387 = vmatpush1.msra.mxu0 0.0
    %2388 = vmatprep.subr.mxu0 0.0
    %2389 = vmatpush1.msra.mxu0 0.0
    %2390 = vmatprep.subr.mxu0 0.0
    %2391 = vmatpush1.msra.mxu0 0.0
    %2392 = vmatprep.subr.mxu0 0.0
    %2393 = vmatpush1.msra.mxu0 0.0
    %2394 = vmatprep.subr.mxu0 0.0
    %2395 = vmatpush1.msra.mxu0 0.0
    %2396 = vmatprep.subr.mxu0 0.0
    %2397 = vmatpush1.msra.mxu0 0.0
    %2398 = vmatprep.subr.mxu0 0.0
    %2399 = vmatpush1.msra.mxu0 0.0
    %2400 = vmatprep.subr.mxu0 0.0
    %2401 = vmatpush1.msra.mxu0 0.0
    %2402 = vmatprep.subr.mxu0 0.0
    %2403 = vmatpush1.msra.mxu0 0.0
    %2404 = vmatprep.subr.mxu0 0.0
    %2405 = vmatpush1.msra.mxu0 0.0
    %2406 = vmatprep.subr.mxu0 0.0
    %2407 = vmatpush1.msra.mxu0 0.0
    %2408 = vmatprep.subr.mxu0 0.0
    %2409 = vmatpush1.msra.mxu0 0.0
    %2410 = vmatprep.subr.mxu0 0.0
    %2411 = vmatpush1.msra.mxu0 0.0
    %2412 = vmatprep.subr.mxu0 0.0
    %2413 = vmatpush1.msra.mxu0 0.0
    %2414 = vmatprep.subr.mxu0 0.0
    %2415 = vmatpush1.msra.mxu0 %v2377
    %2416 = vmatprep.subr.mxu0 0.0
    %2417 = vmatpush2.msra.mxu0 0.0
    %2418 = vmatprep.subr.mxu0 0.0
    %2419 = vmatpush2.msra.mxu0 0.0
    %2420 = vmatprep.subr.mxu0 0.0
    %2421 = vmatpush2.msra.mxu0 0.0
    %2422 = vmatprep.subr.mxu0 0.0
    %2423 = vmatpush2.msra.mxu0 0.0
    %2424 = vmatprep.subr.mxu0 0.0
    %2425 = vmatpush2.msra.mxu0 0.0
    %2426 = vmatprep.subr.mxu0 0.0
    %2427 = vmatpush2.msra.mxu0 0.0
    %2428 = vmatprep.subr.mxu0 0.0
    %2429 = vmatpush2.msra.mxu0 0.0
    %2430 = vmatprep.subr.mxu0 0.0
    %2431 = vmatpush2.msra.mxu0 0.0
    %2432 = vmatprep.subr.mxu0 0.0
    %2433 = vmatpush2.msra.mxu0 0.0
    %2434 = vmatprep.subr.mxu0 0.0
    %2435 = vmatpush2.msra.mxu0 0.0
    %2436 = vmatprep.subr.mxu0 0.0
    %2437 = vmatpush2.msra.mxu0 0.0
    %2438 = vmatprep.subr.mxu0 0.0
    %2439 = vmatpush2.msra.mxu0 0.0
    %2440 = vmatprep.subr.mxu0 0.0
    %2441 = vmatpush2.msra.mxu0 0.0
    %2442 = vmatprep.subr.mxu0 0.0
    %2443 = vmatpush2.msra.mxu0 0.0
    %2444 = vmatprep.subr.mxu0 0.0
    %2445 = vmatpush2.msra.mxu0 0.0
    %2446 = vmatprep.subr.mxu0 0.0
    %2447 = vmatpush2.msra.mxu0 0.0
    %2448 = vmatprep.mubr.f32.mxu0 0.0
    %2449 = vmatmul.mubr.f32.gmra.mxu0 %v2379
    %v2450 = vpop.f32.mrf.mxu0
    %v2451 = vadd.f32 0.0, %v2450
    %v2452 = vpop.f32.mrf.mxu0
    %2453 = vmatprep.mubr.f32.mxu0 0.0
    %2454 = vmatmul.mubr.f32.gmra.mxu0 %v2382
    %v2455 = vpop.f32.mrf.mxu0
    %v2456 = vadd.f32 0.0, %v2455
    %v2457 = vpop.f32.mrf.mxu0
    %2458 = vdwg.mxu0
    %v2459 = vadd.f32 %v2165, %v2451
    %v2460 = vadd.f32 %v2170, %v2456
    %2461 = vrot.lane.b32.xlu0 %v1510, 104
    %v2462 = vpop.permute.xlu0 %2461
    %2463 = vrot.lane.b32.xlu0 %v1515, 104
    %v2464 = vpop.permute.xlu0 %2463
    %2465 = vrot.lane.b32.xlu0 %v1595, 104
    %v2466 = vpop.permute.xlu0 %2465
    %2467 = vrot.lane.b32.xlu0 %v1600, 104
    %v2468 = vpop.permute.xlu0 %2467
    %v2469 = vsel %vm295, %v2462, 0
    %v2471 = vsel %vm295, %v2464, 0
    %v2473 = vsel %vm295, %v2466, 0
    %v2475 = vsel %vm295, %v2468, 0
    %2477 = vmatprep.subr.mxu0 0.0
    %2478 = vmatpush1.xpose.msra.mxu0 0.0
    %2479 = vmatprep.subr.mxu0 0.0
    %2480 = vmatpush1.xpose.msra.mxu0 0.0
    %2481 = vmatprep.subr.mxu0 0.0
    %2482 = vmatpush1.xpose.msra.mxu0 0.0
    %2483 = vmatprep.subr.mxu0 0.0
    %2484 = vmatpush1.xpose.msra.mxu0 0.0
    %2485 = vmatprep.subr.mxu0 0.0
    %2486 = vmatpush1.xpose.msra.mxu0 0.0
    %2487 = vmatprep.subr.mxu0 0.0
    %2488 = vmatpush1.xpose.msra.mxu0 0.0
    %2489 = vmatprep.subr.mxu0 0.0
    %2490 = vmatpush1.xpose.msra.mxu0 0.0
    %2491 = vmatprep.subr.mxu0 0.0
    %2492 = vmatpush1.xpose.msra.mxu0 0.0
    %2493 = vmatprep.subr.mxu0 0.0
    %2494 = vmatpush1.xpose.msra.mxu0 0.0
    %2495 = vmatprep.subr.mxu0 0.0
    %2496 = vmatpush1.xpose.msra.mxu0 0.0
    %2497 = vmatprep.subr.mxu0 0.0
    %2498 = vmatpush1.xpose.msra.mxu0 0.0
    %2499 = vmatprep.subr.mxu0 0.0
    %2500 = vmatpush1.xpose.msra.mxu0 0.0
    %2501 = vmatprep.subr.mxu0 0.0
    %2502 = vmatpush1.xpose.msra.mxu0 0.0
    %2503 = vmatprep.subr.mxu0 0.0
    %2504 = vmatpush1.xpose.msra.mxu0 0.0
    %2505 = vmatprep.subr.mxu0 0.0
    %2506 = vmatpush1.xpose.msra.mxu0 %v2475
    %2507 = vmatprep.subr.mxu0 0.0
    %2508 = vmatpush1.xpose.msra.mxu0 %v2473
    %2509 = vmatprep.subr.mxu0 0.0
    %2510 = vmatpush2.xpose.msra.mxu0 0.0
    %2511 = vmatprep.subr.mxu0 0.0
    %2512 = vmatpush2.xpose.msra.mxu0 0.0
    %2513 = vmatprep.subr.mxu0 0.0
    %2514 = vmatpush2.xpose.msra.mxu0 0.0
    %2515 = vmatprep.subr.mxu0 0.0
    %2516 = vmatpush2.xpose.msra.mxu0 0.0
    %2517 = vmatprep.subr.mxu0 0.0
    %2518 = vmatpush2.xpose.msra.mxu0 0.0
    %2519 = vmatprep.subr.mxu0 0.0
    %2520 = vmatpush2.xpose.msra.mxu0 0.0
    %2521 = vmatprep.subr.mxu0 0.0
    %2522 = vmatpush2.xpose.msra.mxu0 0.0
    %2523 = vmatprep.subr.mxu0 0.0
    %2524 = vmatpush2.xpose.msra.mxu0 0.0
    %2525 = vmatprep.subr.mxu0 0.0
    %2526 = vmatpush2.xpose.msra.mxu0 0.0
    %2527 = vmatprep.subr.mxu0 0.0
    %2528 = vmatpush2.xpose.msra.mxu0 0.0
    %2529 = vmatprep.subr.mxu0 0.0
    %2530 = vmatpush2.xpose.msra.mxu0 0.0
    %2531 = vmatprep.subr.mxu0 0.0
    %2532 = vmatpush2.xpose.msra.mxu0 0.0
    %2533 = vmatprep.subr.mxu0 0.0
    %2534 = vmatpush2.xpose.msra.mxu0 0.0
    %2535 = vmatprep.subr.mxu0 0.0
    %2536 = vmatpush2.xpose.msra.mxu0 0.0
    %2537 = vmatprep.subr.mxu0 0.0
    %2538 = vmatpush2.xpose.msra.mxu0 0.0
    %2539 = vmatprep.subr.mxu0 0.0
    %2540 = vmatpush2.xpose.msra.mxu0 0.0
    %2541 = vmatprep.mubr.f32.mxu0 0.0
    %2542 = vmatmul.mubr.f32.gmra.mxu0 %v2469
    %v2543 = vpop.f32.mrf.mxu0
    %v2544 = vadd.f32 0.0, %v2543
    %v2545 = vpop.f32.mrf.mxu0
    %2546 = vmatprep.mubr.f32.mxu0 0.0
    %2547 = vmatmul.mubr.f32.gmra.mxu0 %v2471
    %v2548 = vpop.f32.mrf.mxu0
    %v2549 = vadd.f32 0.0, %v2548
    %v2550 = vpop.f32.mrf.mxu0
    %2551 = vdwg.mxu0
    %v2552 = vmul.f32 %v2544, 0.35355338
    %v2553 = vmul.f32 %v2549, 0.35355338
    %v2554 = vadd.f32 %v2552, %v1603
    %v2555 = vadd.f32 %v2553, %v1604
    %v2556 = vsel %vm383, %v2554, -inf
    %2557 = vmax.xlane.f32.xlu0 %v2556
    %v2558 = vpop.xlane.xlu0 %2557
    %v2559 = vsel %vm383, %v2555, -inf
    %2560 = vmax.xlane.f32.xlu0 %v2559
    %v2561 = vpop.xlane.xlu0 %2560
    %v2562 = vsub.f32 %v2554, %v2558
    %v2563 = vsub.f32 %v2555, %v2561
    %v2564 = vmul.f32 %v2562, 1.442695
    %v2565 = vpow.pop %v2564
    %v2566 = vmul.f32 %v2563, 1.442695
    %v2567 = vpow.pop %v2566
    %v2568 = vsel %vm383, %v2565, 0.0
    %2569 = vadd.xlane.f32.xlu0 %v2568
    %v2570 = vpop.xlane.xlu0 %2569
    %v2571 = vsel %vm383, %v2567, 0.0
    %2572 = vadd.xlane.f32.xlu0 %v2571
    %v2573 = vpop.xlane.xlu0 %2572
    %v2574 = vrcp.pop %v2570
    %v2575 = vmul.f32 %v2565, %v2574
    %v2576 = vrcp.pop %v2573
    %v2577 = vmul.f32 %v2567, %v2576
    %2578 = vrot.lane.b32.xlu0 %v1595, 72
    %v2579 = vpop.permute.xlu0 %2578
    %2580 = vrot.lane.b32.xlu0 %v1600, 72
    %v2581 = vpop.permute.xlu0 %2580
    %v2585 = vsel %vm383, %v2575, 0
    %v2588 = vsel %vm383, %v2577, 0
    %2590 = vmatprep.subr.mxu0 0.0
    %2591 = vmatpush1.msra.mxu0 0.0
    %2592 = vmatprep.subr.mxu0 0.0
    %2593 = vmatpush1.msra.mxu0 0.0
    %2594 = vmatprep.subr.mxu0 0.0
    %2595 = vmatpush1.msra.mxu0 0.0
    %2596 = vmatprep.subr.mxu0 0.0
    %2597 = vmatpush1.msra.mxu0 0.0
    %2598 = vmatprep.subr.mxu0 0.0
    %2599 = vmatpush1.msra.mxu0 0.0
    %2600 = vmatprep.subr.mxu0 0.0
    %2601 = vmatpush1.msra.mxu0 0.0
    %2602 = vmatprep.subr.mxu0 0.0
    %2603 = vmatpush1.msra.mxu0 0.0
    %2604 = vmatprep.subr.mxu0 0.0
    %2605 = vmatpush1.msra.mxu0 0.0
    %2606 = vmatprep.subr.mxu0 0.0
    %2607 = vmatpush1.msra.mxu0 0.0
    %2608 = vmatprep.subr.mxu0 0.0
    %2609 = vmatpush1.msra.mxu0 0.0
    %2610 = vmatprep.subr.mxu0 0.0
    %2611 = vmatpush1.msra.mxu0 0.0
    %2612 = vmatprep.subr.mxu0 0.0
    %2613 = vmatpush1.msra.mxu0 0.0
    %2614 = vmatprep.subr.mxu0 0.0
    %2615 = vmatpush1.msra.mxu0 0.0
    %2616 = vmatprep.subr.mxu0 0.0
    %2617 = vmatpush1.msra.mxu0 0.0
    %2618 = vmatprep.subr.mxu0 0.0
    %2619 = vmatpush1.msra.mxu0 %v2581
    %2620 = vmatprep.subr.mxu0 0.0
    %2621 = vmatpush1.msra.mxu0 %v2579
    %2622 = vmatprep.subr.mxu0 0.0
    %2623 = vmatpush2.msra.mxu0 0.0
    %2624 = vmatprep.subr.mxu0 0.0
    %2625 = vmatpush2.msra.mxu0 0.0
    %2626 = vmatprep.subr.mxu0 0.0
    %2627 = vmatpush2.msra.mxu0 0.0
    %2628 = vmatprep.subr.mxu0 0.0
    %2629 = vmatpush2.msra.mxu0 0.0
    %2630 = vmatprep.subr.mxu0 0.0
    %2631 = vmatpush2.msra.mxu0 0.0
    %2632 = vmatprep.subr.mxu0 0.0
    %2633 = vmatpush2.msra.mxu0 0.0
    %2634 = vmatprep.subr.mxu0 0.0
    %2635 = vmatpush2.msra.mxu0 0.0
    %2636 = vmatprep.subr.mxu0 0.0
    %2637 = vmatpush2.msra.mxu0 0.0
    %2638 = vmatprep.subr.mxu0 0.0
    %2639 = vmatpush2.msra.mxu0 0.0
    %2640 = vmatprep.subr.mxu0 0.0
    %2641 = vmatpush2.msra.mxu0 0.0
    %2642 = vmatprep.subr.mxu0 0.0
    %2643 = vmatpush2.msra.mxu0 0.0
    %2644 = vmatprep.subr.mxu0 0.0
    %2645 = vmatpush2.msra.mxu0 0.0
    %2646 = vmatprep.subr.mxu0 0.0
    %2647 = vmatpush2.msra.mxu0 0.0
    %2648 = vmatprep.subr.mxu0 0.0
    %2649 = vmatpush2.msra.mxu0 0.0
    %2650 = vmatprep.subr.mxu0 0.0
    %2651 = vmatpush2.msra.mxu0 0.0
    %2652 = vmatprep.subr.mxu0 0.0
    %2653 = vmatpush2.msra.mxu0 0.0
    %2654 = vmatprep.mubr.f32.mxu0 0.0
    %2655 = vmatmul.mubr.f32.gmra.mxu0 %v2585
    %v2656 = vpop.f32.mrf.mxu0
    %v2657 = vadd.f32 0.0, %v2656
    %v2658 = vpop.f32.mrf.mxu0
    %2659 = vmatprep.mubr.f32.mxu0 0.0
    %2660 = vmatmul.mubr.f32.gmra.mxu0 %v2588
    %v2661 = vpop.f32.mrf.mxu0
    %v2662 = vadd.f32 0.0, %v2661
    %v2663 = vpop.f32.mrf.mxu0
    %2664 = vdwg.mxu0
    %v2665 = vld [vmem:[#allocation11 + $0x18] sm:$0xff]
    %v2667 = vsel %vm295, %v2657, 0
    %v2670 = vsel %vm295, %v2662, 0
    %2672 = vmatprep.subr.mxu0 0.0
    %2673 = vmatpush1.msra.mxu0 0.0
    %2674 = vmatprep.subr.mxu0 0.0
    %2675 = vmatpush1.msra.mxu0 0.0
    %2676 = vmatprep.subr.mxu0 0.0
    %2677 = vmatpush1.msra.mxu0 0.0
    %2678 = vmatprep.subr.mxu0 0.0
    %2679 = vmatpush1.msra.mxu0 0.0
    %2680 = vmatprep.subr.mxu0 0.0
    %2681 = vmatpush1.msra.mxu0 0.0
    %2682 = vmatprep.subr.mxu0 0.0
    %2683 = vmatpush1.msra.mxu0 0.0
    %2684 = vmatprep.subr.mxu0 0.0
    %2685 = vmatpush1.msra.mxu0 0.0
    %2686 = vmatprep.subr.mxu0 0.0
    %2687 = vmatpush1.msra.mxu0 0.0
    %2688 = vmatprep.subr.mxu0 0.0
    %2689 = vmatpush1.msra.mxu0 0.0
    %2690 = vmatprep.subr.mxu0 0.0
    %2691 = vmatpush1.msra.mxu0 0.0
    %2692 = vmatprep.subr.mxu0 0.0
    %2693 = vmatpush1.msra.mxu0 0.0
    %2694 = vmatprep.subr.mxu0 0.0
    %2695 = vmatpush1.msra.mxu0 0.0
    %2696 = vmatprep.subr.mxu0 0.0
    %2697 = vmatpush1.msra.mxu0 0.0
    %2698 = vmatprep.subr.mxu0 0.0
    %2699 = vmatpush1.msra.mxu0 0.0
    %2700 = vmatprep.subr.mxu0 0.0
    %2701 = vmatpush1.msra.mxu0 0.0
    %2702 = vmatprep.subr.mxu0 0.0
    %2703 = vmatpush1.msra.mxu0 %v2665
    %2704 = vmatprep.subr.mxu0 0.0
    %2705 = vmatpush2.msra.mxu0 0.0
    %2706 = vmatprep.subr.mxu0 0.0
    %2707 = vmatpush2.msra.mxu0 0.0
    %2708 = vmatprep.subr.mxu0 0.0
    %2709 = vmatpush2.msra.mxu0 0.0
    %2710 = vmatprep.subr.mxu0 0.0
    %2711 = vmatpush2.msra.mxu0 0.0
    %2712 = vmatprep.subr.mxu0 0.0
    %2713 = vmatpush2.msra.mxu0 0.0
    %2714 = vmatprep.subr.mxu0 0.0
    %2715 = vmatpush2.msra.mxu0 0.0
    %2716 = vmatprep.subr.mxu0 0.0
    %2717 = vmatpush2.msra.mxu0 0.0
    %2718 = vmatprep.subr.mxu0 0.0
    %2719 = vmatpush2.msra.mxu0 0.0
    %2720 = vmatprep.subr.mxu0 0.0
    %2721 = vmatpush2.msra.mxu0 0.0
    %2722 = vmatprep.subr.mxu0 0.0
    %2723 = vmatpush2.msra.mxu0 0.0
    %2724 = vmatprep.subr.mxu0 0.0
    %2725 = vmatpush2.msra.mxu0 0.0
    %2726 = vmatprep.subr.mxu0 0.0
    %2727 = vmatpush2.msra.mxu0 0.0
    %2728 = vmatprep.subr.mxu0 0.0
    %2729 = vmatpush2.msra.mxu0 0.0
    %2730 = vmatprep.subr.mxu0 0.0
    %2731 = vmatpush2.msra.mxu0 0.0
    %2732 = vmatprep.subr.mxu0 0.0
    %2733 = vmatpush2.msra.mxu0 0.0
    %2734 = vmatprep.subr.mxu0 0.0
    %2735 = vmatpush2.msra.mxu0 0.0
    %2736 = vmatprep.mubr.f32.mxu0 0.0
    %2737 = vmatmul.mubr.f32.gmra.mxu0 %v2667
    %v2738 = vpop.f32.mrf.mxu0
    %v2739 = vadd.f32 0.0, %v2738
    %v2740 = vpop.f32.mrf.mxu0
    %2741 = vmatprep.mubr.f32.mxu0 0.0
    %2742 = vmatmul.mubr.f32.gmra.mxu0 %v2670
    %v2743 = vpop.f32.mrf.mxu0
    %v2744 = vadd.f32 0.0, %v2743
    %v2745 = vpop.f32.mrf.mxu0
    %2746 = vdwg.mxu0
    %v2747 = vadd.f32 %v2459, %v2739
    %v2748 = vadd.f32 %v2460, %v2744
    %v2749 = vadd.f32 %v1437, %v2747
    %v2750 = vadd.f32 %v1438, %v2748
    %v2751 = vld [vmem:[%s6] sm:$0x1]
    %v2752 = vld [vmem:[%s7] sm:$0x1]
    %v2753 = vsel %vm158, %v2749, 0.0
    %2754 = vadd.xlane.f32.xlu0 %v2753
    %v2755 = vpop.xlane.xlu0 %2754
    %v2756 = vsel %vm158, %v2750, 0.0
    %2757 = vadd.xlane.f32.xlu0 %v2756
    %v2758 = vpop.xlane.xlu0 %2757
    %v2759 = vmul.f32 %v2755, %v165
    %v2760 = vmul.f32 %v2758, %v165
    %v2761 = vsub.f32 %v2749, %v2759
    %v2762 = vsub.f32 %v2750, %v2760
    %v2763 = vmul.f32 %v2761, %v2761
    %v2764 = vmul.f32 %v2762, %v2762
    %v2765 = vsel %vm158, %v2763, 0.0
    %2766 = vadd.xlane.f32.xlu0 %v2765
    %v2767 = vpop.xlane.xlu0 %2766
    %v2768 = vsel %vm158, %v2764, 0.0
    %2769 = vadd.xlane.f32.xlu0 %v2768
    %v2770 = vpop.xlane.xlu0 %2769
    %v2771 = vmul.f32 %v2767, %v165
    %v2772 = vmul.f32 %v2770, %v165
    %v2773 = vadd.f32 %v2771, 1e-05
    %v2774 = vadd.f32 %v2772, 1e-05
    %v2775 = vrsqrt.pop %v2773
    %v2776 = vrsqrt.pop %v2774
    %v2777 = vmul.f32 %v2761, %v2775
    %v2778 = vmul.f32 %v2762, %v2776
    %v2780 = vlaneseq
    %v2781 = vshrl.u32 %v2780, 7
    %v2782 = vsub.s32 0, %v2781
    %v2783 = vrot.slane %v2751, %v2782
    %v2785 = vmul.f32 %v2777, %v2783
    %v2786 = vmul.f32 %v2778, %v2783
    %v2788 = vlaneseq
    %v2789 = vshrl.u32 %v2788, 7
    %v2790 = vsub.s32 0, %v2789
    %v2791 = vrot.slane %v2752, %v2790
    %v2793 = vadd.f32 %v2785, %v2791
    %v2794 = vadd.f32 %v2786, %v2791
    %v2795 = vld [vmem:[#allocation13] sm:$0xff]
    %v2796 = vld [vmem:[#allocation13 + $0x8] sm:$0xff]
    %v2797 = vld [vmem:[#allocation13 + $0x10] sm:$0xff]
    %v2798 = vld [vmem:[#allocation13 + $0x18] sm:$0xff]
    %v2799 = vld [vmem:[%s14] sm:$0x1]
    %v2801 = vlaneseq
    %v2802 = vshrl.u32 %v2801, 7
    %v2803 = vsub.s32 0, %v2802
    %v2804 = vrot.slane %v2799, %v2803
    %v2807 = vsel %vm158, %v2793, 0
    %v2810 = vsel %vm158, %v2794, 0
    %2812 = vmatprep.subr.mxu0 0.0
    %2813 = vmatpush1.msra.mxu0 0.0
    %2814 = vmatprep.subr.mxu0 0.0
    %2815 = vmatpush1.msra.mxu0 0.0
    %2816 = vmatprep.subr.mxu0 0.0
    %2817 = vmatpush1.msra.mxu0 0.0
    %2818 = vmatprep.subr.mxu0 0.0
    %2819 = vmatpush1.msra.mxu0 0.0
    %2820 = vmatprep.subr.mxu0 0.0
    %2821 = vmatpush1.msra.mxu0 0.0
    %2822 = vmatprep.subr.mxu0 0.0
    %2823 = vmatpush1.msra.mxu0 0.0
    %2824 = vmatprep.subr.mxu0 0.0
    %2825 = vmatpush1.msra.mxu0 0.0
    %2826 = vmatprep.subr.mxu0 0.0
    %2827 = vmatpush1.msra.mxu0 0.0
    %2828 = vmatprep.subr.mxu0 0.0
    %2829 = vmatpush1.msra.mxu0 0.0
    %2830 = vmatprep.subr.mxu0 0.0
    %2831 = vmatpush1.msra.mxu0 0.0
    %2832 = vmatprep.subr.mxu0 0.0
    %2833 = vmatpush1.msra.mxu0 0.0
    %2834 = vmatprep.subr.mxu0 0.0
    %2835 = vmatpush1.msra.mxu0 0.0
    %2836 = vmatprep.subr.mxu0 0.0
    %2837 = vmatpush1.msra.mxu0 %v2798
    %2838 = vmatprep.subr.mxu0 0.0
    %2839 = vmatpush1.msra.mxu0 %v2797
    %2840 = vmatprep.subr.mxu0 0.0
    %2841 = vmatpush1.msra.mxu0 %v2796
    %2842 = vmatprep.subr.mxu0 0.0
    %2843 = vmatpush1.msra.mxu0 %v2795
    %2844 = vmatprep.subr.mxu0 0.0
    %2845 = vmatpush2.msra.mxu0 0.0
    %2846 = vmatprep.subr.mxu0 0.0
    %2847 = vmatpush2.msra.mxu0 0.0
    %2848 = vmatprep.subr.mxu0 0.0
    %2849 = vmatpush2.msra.mxu0 0.0
    %2850 = vmatprep.subr.mxu0 0.0
    %2851 = vmatpush2.msra.mxu0 0.0
    %2852 = vmatprep.subr.mxu0 0.0
    %2853 = vmatpush2.msra.mxu0 0.0
    %2854 = vmatprep.subr.mxu0 0.0
    %2855 = vmatpush2.msra.mxu0 0.0
    %2856 = vmatprep.subr.mxu0 0.0
    %2857 = vmatpush2.msra.mxu0 0.0
    %2858 = vmatprep.subr.mxu0 0.0
    %2859 = vmatpush2.msra.mxu0 0.0
    %2860 = vmatprep.subr.mxu0 0.0
    %2861 = vmatpush2.msra.mxu0 0.0
    %2862 = vmatprep.subr.mxu0 0.0
    %2863 = vmatpush2.msra.mxu0 0.0
    %2864 = vmatprep.subr.mxu0 0.0
    %2865 = vmatpush2.msra.mxu0 0.0
    %2866 = vmatprep.subr.mxu0 0.0
    %2867 = vmatpush2.msra.mxu0 0.0
    %2868 = vmatprep.subr.mxu0 0.0
    %2869 = vmatpush2.msra.mxu0 0.0
    %2870 = vmatprep.subr.mxu0 0.0
    %2871 = vmatpush2.msra.mxu0 0.0
    %2872 = vmatprep.subr.mxu0 0.0
    %2873 = vmatpush2.msra.mxu0 0.0
    %2874 = vmatprep.subr.mxu0 0.0
    %2875 = vmatpush2.msra.mxu0 0.0
    %2876 = vmatprep.mubr.f32.mxu0 0.0
    %2877 = vmatmul.mubr.f32.gmra.mxu0 %v2807
    %v2878 = vpop.f32.mrf.mxu0
    %v2879 = vadd.f32 %v2804, %v2878
    %v2880 = vpop.f32.mrf.mxu0
    %2881 = vmatprep.mubr.f32.mxu0 0.0
    %2882 = vmatmul.mubr.f32.gmra.mxu0 %v2810
    %v2883 = vpop.f32.mrf.mxu0
    %v2884 = vadd.f32 %v2804, %v2883
    %v2885 = vpop.f32.mrf.mxu0
    %2886 = vdwg.mxu0
    %v2887 = vmul.f32 %v2879, 0.5
    %v2888 = vmul.f32 %v2884, 0.5
    %v2889 = vmul.f32 %v2879, 0.70710677
    %v2890 = vmul.f32 %v2884, 0.70710677
    %v2891 = verf.f32.pop %v2889
    %v2892 = verf.f32.pop %v2890
    %v2893 = vadd.f32 %v2891, 1.0
    %v2894 = vadd.f32 %v2892, 1.0
    %v2895 = vmul.f32 %v2887, %v2893
    %v2896 = vmul.f32 %v2888, %v2894
    %v2897 = vld [vmem:[%s15] sm:$0xff]
    %v2898 = vld [vmem:[%s15 + $0x8] sm:$0xff]
    %v2899 = vld [vmem:[%s15 + $0x10] sm:$0xff]
    %v2900 = vld [vmem:[%s15 + $0x18] sm:$0xff]
    %v2901 = vld [vmem:[%s15 + $0x20] sm:$0xff]
    %v2902 = vld [vmem:[%s15 + $0x28] sm:$0xff]
    %v2903 = vld [vmem:[%s15 + $0x30] sm:$0xff]
    %v2904 = vld [vmem:[%s15 + $0x38] sm:$0xff]
    %v2905 = vld [vmem:[%s16] sm:$0x1]
    %v2907 = vlaneseq
    %v2908 = vshrl.u32 %v2907, 7
    %v2909 = vsub.s32 0, %v2908
    %v2910 = vrot.slane %v2905, %v2909
    %vm2912 = vcmask 523264
    %v2914 = vsel %vm2912, %v2895, 0
    %v2917 = vsel %vm2912, %v2896, 0
    %2919 = vmatprep.subr.mxu0 0.0
    %2920 = vmatpush1.msra.mxu0 0.0
    %2921 = vmatprep.subr.mxu0 0.0
    %2922 = vmatpush1.msra.mxu0 0.0
    %2923 = vmatprep.subr.mxu0 0.0
    %2924 = vmatpush1.msra.mxu0 0.0
    %2925 = vmatprep.subr.mxu0 0.0
    %2926 = vmatpush1.msra.mxu0 0.0
    %2927 = vmatprep.subr.mxu0 0.0
    %2928 = vmatpush1.msra.mxu0 0.0
    %2929 = vmatprep.subr.mxu0 0.0
    %2930 = vmatpush1.msra.mxu0 0.0
    %2931 = vmatprep.subr.mxu0 0.0
    %2932 = vmatpush1.msra.mxu0 0.0
    %2933 = vmatprep.subr.mxu0 0.0
    %2934 = vmatpush1.msra.mxu0 0.0
    %2935 = vmatprep.subr.mxu0 0.0
    %2936 = vmatpush1.msra.mxu0 %v2904
    %2937 = vmatprep.subr.mxu0 0.0
    %2938 = vmatpush1.msra.mxu0 %v2903
    %2939 = vmatprep.subr.mxu0 0.0
    %2940 = vmatpush1.msra.mxu0 %v2902
    %2941 = vmatprep.subr.mxu0 0.0
    %2942 = vmatpush1.msra.mxu0 %v2901
    %2943 = vmatprep.subr.mxu0 0.0
    %2944 = vmatpush1.msra.mxu0 %v2900
    %2945 = vmatprep.subr.mxu0 0.0
    %2946 = vmatpush1.msra.mxu0 %v2899
    %2947 = vmatprep.subr.mxu0 0.0
    %2948 = vmatpush1.msra.mxu0 %v2898
    %2949 = vmatprep.subr.mxu0 0.0
    %2950 = vmatpush1.msra.mxu0 %v2897
    %2951 = vmatprep.subr.mxu0 0.0
    %2952 = vmatpush2.msra.mxu0 0.0
    %2953 = vmatprep.subr.mxu0 0.0
    %2954 = vmatpush2.msra.mxu0 0.0
    %2955 = vmatprep.subr.mxu0 0.0
    %2956 = vmatpush2.msra.mxu0 0.0
    %2957 = vmatprep.subr.mxu0 0.0
    %2958 = vmatpush2.msra.mxu0 0.0
    %2959 = vmatprep.subr.mxu0 0.0
    %2960 = vmatpush2.msra.mxu0 0.0
    %2961 = vmatprep.subr.mxu0 0.0
    %2962 = vmatpush2.msra.mxu0 0.0
    %2963 = vmatprep.subr.mxu0 0.0
    %2964 = vmatpush2.msra.mxu0 0.0
    %2965 = vmatprep.subr.mxu0 0.0
    %2966 = vmatpush2.msra.mxu0 0.0
    %2967 = vmatprep.subr.mxu0 0.0
    %2968 = vmatpush2.msra.mxu0 0.0
    %2969 = vmatprep.subr.mxu0 0.0
    %2970 = vmatpush2.msra.mxu0 0.0
    %2971 = vmatprep.subr.mxu0 0.0
    %2972 = vmatpush2.msra.mxu0 0.0
    %2973 = vmatprep.subr.mxu0 0.0
    %2974 = vmatpush2.msra.mxu0 0.0
    %2975 = vmatprep.subr.mxu0 0.0
    %2976 = vmatpush2.msra.mxu0 0.0
    %2977 = vmatprep.subr.mxu0 0.0
    %2978 = vmatpush2.msra.mxu0 0.0
    %2979 = vmatprep.subr.mxu0 0.0
    %2980 = vmatpush2.msra.mxu0 0.0
    %2981 = vmatprep.subr.mxu0 0.0
    %2982 = vmatpush2.msra.mxu0 0.0
    %2983 = vmatprep.mubr.f32.mxu0 0.0
    %2984 = vmatmul.mubr.f32.gmra.mxu0 %v2914
    %v2985 = vpop.f32.mrf.mxu0
    %v2986 = vadd.f32 %v2910, %v2985
    %v2987 = vpop.f32.mrf.mxu0
    %2988 = vmatprep.mubr.f32.mxu0 0.0
    %2989 = vmatmul.mubr.f32.gmra.mxu0 %v2917
    %v2990 = vpop.f32.mrf.mxu0
    %v2991 = vadd.f32 %v2910, %v2990
    %v2992 = vpop.f32.mrf.mxu0
    %2993 = vdwg.mxu0
    %v2994 = vadd.f32 %v2749, %v2986
    %v2995 = vadd.f32 %v2750, %v2991
    %2996 = vst.msk [vmem:[#allocation14] sm:$0xff] %vm158, %v2994
    %2997 = vst.msk [vmem:[#allocation14 + $0x8] sm:$0xff] %vm158, %v2995
    // Predicated region
    $region98: #{decoder_block_fwd.1} parent=1 // pred_check
      _
    $region99: #{decoder_block_fwd.1} parent=1 // pred_check_branch
      %2999 = sbr.rel (0) target = $region101
    $region100: #{decoder_block_fwd.1} parent=1 // pred_region
      %s3001 = ssub.s32 256, 256
      %3002 = vsyncadd [#allocation4], %s3001
      %s3003 = sshll.u32 [#allocation14], 4
      %s3004 = int_to_ptr.vmem [resolvable:$true] %s3003
      %3009 = dma.vmem_to_hbm [thread:$0]  %s3004, 256, %s17, [#allocation4], 128, 128, 8
    $region101: #{decoder_block_fwd.1} parent=1 // pred_fallthru
      _
    // Predicated region
    $region102: #{decoder_block_fwd.1} parent=1 // pred_check
      _
    $region103: #{decoder_block_fwd.1} parent=1 // pred_check_branch
      %3011 = sbr.rel (0) target = $region105
    $region104: #{decoder_block_fwd.1} parent=1 // pred_region
      %3012 = dma.done [#allocation4], 256
    $region105: #{decoder_block_fwd.1} parent=1 // pred_fallthru
      _
    %3013 = vsyncpa [#allocation3], 1
    %3014 = vsyncpa [#allocation6], 1
    %3015 = vsyncpa [#allocation9], 1
    %3016 = vsyncpa [#allocation12], 1
    %3017 = vsyncpa [#allocation4], 1

</llo_original>
